<compile_context>
chip_gen: v7x
topology: tpu7x:2x2x1
jax: 0.10.0
libtpu: 0.0.40
codegen_flags: <defaults>
</compile_context>

<pallas_src>
import functools

import jax
import jax.numpy as jnp
from jax.experimental import pallas as pl
from jax.experimental.pallas import tpu as pltpu

_HEADS_PAD = 8   # sublane-pad the per-head attention vectors / logits


def _round_up(x, m):
    return ((x + m - 1) // m) * m


def _pad2(x, rows, cols):
    return jnp.pad(x, ((0, rows - x.shape[0]), (0, cols - x.shape[1])))


# ---------------------------------------------------------------------------
# Hardware probing (safe fallbacks)
# ---------------------------------------------------------------------------
def _vmem_capacity_bytes():
    try:
        return int(pltpu.get_tpu_info().vmem_capacity_bytes)
    except Exception:
        pass
    try:
        kind = jax.devices()[0].device_kind.lower()
        if "7" in kind:                       # v7x parts: 64 MiB / TC
            return 64 * 1024 * 1024
    except Exception:
        pass
    return 128 * 1024 * 1024


def _bf16_softmax_ok():
    # bf16 VALU/EUP exists on v6e and later; keep f32 softmax math on v5e and older.
    try:
        kind = jax.devices()[0].device_kind.lower()
    except Exception:
        return False
    return any(t in kind for t in ("v6", "v7", "7x"))


def _plan(V, Ep, layers, sm_bf16):
    """Pick (tile_v, core_splits, vmem_limit) from the VMEM capacity and layer shapes."""
    cap = _vmem_capacity_bytes()
    if cap >= 100 * 1024 * 1024:
        vmem_limit = 96 * 1024 * 1024         # 128 MiB parts: use the headroom
    else:
        vmem_limit = int(cap * 0.65)          # 64 MiB parts (v7x): leave margin
    budget = int(vmem_limit * 0.85)
    sz_sm = 2 if sm_bf16 else 4

    fixed, per_row = 0, 1
    for lp in layers:
        din_p, d_pad, heads = lp["din_p"], lp["d_pad"], lp["num_heads"]
        f = (2 * 2 * Ep * din_p                    # resident efeat (bf16, double-buffered)
             + 2 * 2 * din_p * heads * d_pad       # resident wv (bf16, double-buffered)
             + 4 * _HEADS_PAD * Ep                 # e_e logits scratch (f32)
             + 2 * 4 * Ep * d_pad                  # eout accumulator output (f32, dbuf)
             + 4 * Ep * d_pad)                     # e_acc temporary (f32)
        r = (2 * 4 * din_p                         # vfeat tile (f32, dbuf)
             + 2 * 2 * Ep                          # H tile (bf16, dbuf)
             + 2 * 2 * Ep                          # alpha_sum output tile (bf16, dbuf)
             + 2 * 2 * din_p + 4 * d_pad           # vf / vf_s / lin_h temporaries
             + Ep * (3 * sz_sm + 4 + 2))           # s,p,hf live temps + f32 alpha_sum + bf16 alpha
        fixed = max(fixed, f)
        per_row = max(per_row, r)

    tv = max((budget - fixed) // per_row, 128)
    tv = min(tv, 2048, _round_up(max(V, 1), 256))
    tv = (tv // 256) * 256 if tv >= 256 else 128   # MXU-aligned tile (256), floor 128
    nc = 2                                         # split V reduction over TCs (v7x); cheap loop elsewhere
    return int(tv), nc, int(vmem_limit)


# ---------------------------------------------------------------------------
# Pass 1: per-head edge softmax + hyperedge ('in') aggregation, tiled over V
# ---------------------------------------------------------------------------
def _hcha_pass1_kernel(vfeat_ref, h_ref, dv2_ref, efeat_ref, wv_ref, uv_ref, ue_ref,
                       alpha_ref, eout_ref, ee_ref, *, num_heads, d_pad, sm_dtype):
    i = pl.program_id(1)   # V-tile index within this core's range

    @pl.when(i == 0)
    def _():
        # Grid-invariant, per-core init: zero the hyperedge accumulator and hoist the
        # hyperedge-side attention logits  e_e = u_e @ efeat^T  out of the V-tile loop.
        eout_ref[...] = jnp.zeros(eout_ref.shape, jnp.float32)
        ee_ref[...] = jax.lax.dot_general(
            ue_ref[...], efeat_ref[...], (((1,), (1,)), ((), ())),
            preferred_element_type=jnp.float32)                     # (8, Ep)

    vf = vfeat_ref[...].astype(jnp.bfloat16)                        # (tv, Din_p)
    dv2 = dv2_ref[...]                                              # (tv, 1) f32
    vf_s = vf * dv2.astype(jnp.bfloat16)                            # DV2 folded into the narrow operand
    hf = h_ref[...].astype(sm_dtype)                                # (tv, Ep) 0/1 incidence

    # vertex-side attention logits for all heads: (tv, 8)
    e_v_all = jnp.dot(vf, uv_ref[...],
                      preferred_element_type=jnp.float32).astype(sm_dtype)

    alpha_sum = jnp.zeros(hf.shape, jnp.float32)
    e_acc = jnp.zeros(eout_ref.shape, jnp.float32)

    for h in range(num_heads):            # static unroll, num_heads <= 4; per-head
        # temporaries are dead after each iteration (only alpha_sum / e_acc carried).
        e_e_h = ee_ref[h:h + 1, :].astype(sm_dtype)                 # (1, Ep)

        # relu(e_e[m] + e_v[v]) followed by edge_softmax over incident hyperedges.
        # Masking is a multiply by the 0/1 incidence value (no jnp.where): relu scores
        # are >= 0, so the masked entries (0) never win the row max, and exp(s-m)*hf
        # zeroes them again afterwards (isolated rows give denom == 0 -> guarded).
        s = jnp.maximum(e_v_all[:, h:h + 1] + e_e_h, 0) * hf        # (tv, Ep)
        m = jnp.max(s, axis=1, keepdims=True)
        p = jnp.exp(s - m) * hf
        denom = jnp.sum(p.astype(jnp.float32), axis=1, keepdims=True)
        denom = jnp.where(denom > 0.0, denom, 1.0)
        recip = pl.reciprocal(denom, approx=True).astype(sm_dtype)  # (tv, 1)
        alpha = p * recip
        alpha_bf = alpha.astype(jnp.bfloat16)
        alpha_sum = alpha_sum + alpha.astype(jnp.float32)

        # 'in' aggregation: e_acc[m,:] += sum_v alpha[v,m] * (lin_v(vfeat)[v] * DV2[v])
        lin_h = jnp.dot(vf_s, wv_ref[:, h * d_pad:(h + 1) * d_pad],
                        preferred_element_type=jnp.float32).astype(jnp.bfloat16)
        e_acc = e_acc + jax.lax.dot_general(
            alpha_bf, lin_h, (((0,), (0,)), ((), ())),
            preferred_element_type=jnp.float32)                     # (Ep, Dp)

    alpha_ref[...] = alpha_sum.astype(jnp.bfloat16)
    eout_ref[...] += e_acc


# ---------------------------------------------------------------------------
# Pass 2: 'con' aggregation back to vertices, tiled over V ("parallel")
# ---------------------------------------------------------------------------
def _hcha_pass2_kernel(alpha_ref, zef_ref, dv2_ref, vout_ref, *, apply_relu):
    # zefeat (eout * invDE / heads, bf16) is precomputed once per layer; pass 2 is a
    # single clean MXU matmul per V tile plus the DV2 scale.
    v = jnp.dot(alpha_ref[...], zef_ref[...], preferred_element_type=jnp.float32)
    v = v * dv2_ref[...]
    if apply_relu:
        v = jnp.maximum(v, 0.0)
    vout_ref[...] = v


# ---------------------------------------------------------------------------
# Layer wrapper: two pallas_calls + a tiny combine between them
# ---------------------------------------------------------------------------
def hcha_layer(vfeat, efeat, Hb, dv2, invde, params, *, tv, nc, vmem_limit, sm_bf16):
    heads = params["num_heads"]
    d_pad = params["d_pad"]
    din_p = params["din_p"]
    apply_relu = params["apply_relu"]
    Vp, Ep = Hb.shape
    assert vfeat.shape == (Vp, din_p) and efeat.shape == (Ep, din_p)
    assert Vp % (nc * tv) == 0
    nvpc = Vp // (nc * tv)

    # efeat only feeds the attention logits -> a bf16 copy is enough for pass 1.
    efeat_bf = efeat.astype(jnp.bfloat16)
    sm_dtype = jnp.bfloat16 if sm_bf16 else jnp.float32

    k1 = functools.partial(_hcha_pass1_kernel, num_heads=heads, d_pad=d_pad,
                           sm_dtype=sm_dtype)
    alpha_sum, eout_part = pl.pallas_call(
        k1,
        out_shape=(jax.ShapeDtypeStruct((Vp, Ep), jnp.bfloat16),
                   jax.ShapeDtypeStruct((nc, Ep, d_pad), jnp.float32)),
        grid=(nc, nvpc),
        in_specs=[
            pl.BlockSpec((tv, din_p), lambda c, i: (c * nvpc + i, 0)),     # vfeat tile
            pl.BlockSpec((tv, Ep), lambda c, i: (c * nvpc + i, 0)),        # H tile (bf16 0/1)
            pl.BlockSpec((tv, 1), lambda c, i: (c * nvpc + i, 0)),         # DV2 tile
            pl.BlockSpec((Ep, din_p), lambda c, i: (0, 0)),                # efeat (resident)
            pl.BlockSpec((din_p, heads * d_pad), lambda c, i: (0, 0)),     # wv (resident)
            pl.BlockSpec((din_p, _HEADS_PAD), lambda c, i: (0, 0)),        # u_v (resident)
            pl.BlockSpec((_HEADS_PAD, din_p), lambda c, i: (0, 0)),        # u_e (resident)
        ],
        out_specs=(
            pl.BlockSpec((tv, Ep), lambda c, i: (c * nvpc + i, 0)),        # alpha_sum tile
            pl.BlockSpec((None, Ep, d_pad), lambda c, i: (c, 0, 0)),       # per-core eout partial
        ),
        scratch_shapes=[pltpu.VMEM((_HEADS_PAD, Ep), jnp.float32)],        # hoisted e_e logits
        compiler_params=pltpu.CompilerParams(
            dimension_semantics=("parallel", "arbitrary"),                 # core split x V reduction
            vmem_limit_bytes=vmem_limit),
    )(vfeat, Hb, dv2, efeat_bf, params["wv"], params["u_v"], params["u_e"])

    # Combine the per-core partials (head mean -> next layer's efeat / model output),
    # and fold invDE plus the 'con'-side head mean into a resident bf16 zefeat.
    eout = jnp.sum(eout_part, axis=0) * jnp.float32(1.0 / heads)           # (Ep, Dp) f32
    zef = (eout * (invde * jnp.float32(1.0 / heads))).astype(jnp.bfloat16)

    k2 = functools.partial(_hcha_pass2_kernel, apply_relu=apply_relu)
    vout = pl.pallas_call(
        k2,
        out_shape=jax.ShapeDtypeStruct((Vp, d_pad), jnp.float32),
        grid=(Vp // tv,),
        in_specs=[
            pl.BlockSpec((tv, Ep), lambda i: (i, 0)),                      # alpha_sum tile
            pl.BlockSpec((Ep, d_pad), lambda i: (0, 0)),                   # zefeat (resident, bf16)
            pl.BlockSpec((tv, 1), lambda i: (i, 0)),                       # DV2 tile
        ],
        out_specs=pl.BlockSpec((tv, d_pad), lambda i: (i, 0)),
        compiler_params=pltpu.CompilerParams(
            dimension_semantics=("parallel",),
            vmem_limit_bytes=vmem_limit),
    )(alpha_sum, zef, dv2)

    return vout, eout


# ---------------------------------------------------------------------------
# Parameter init (deterministic, xavier-normal-like with relu gain), pre-padded
# ---------------------------------------------------------------------------
def _xavier(key, shape, gain):
    fan_in, fan_out = shape[0], shape[1]
    std = gain * (2.0 / (fan_in + fan_out)) ** 0.5
    return (std * jax.random.normal(key, shape)).astype(jnp.float32)


def init_hcha(key, input_vdim, hidden_dim, vertex_dim, num_layers=3, num_heads=4):
    gain = 2.0 ** 0.5  # nn.init.calculate_gain('relu')
    layers = []
    for i in range(num_layers):
        if num_layers == 1:
            in_d, out_d, heads, act = input_vdim, vertex_dim, 1, False
        elif i == 0:
            in_d, out_d, heads, act = input_vdim, hidden_dim, num_heads, True
        elif i == num_layers - 1:
            in_d, out_d, heads, act = hidden_dim, vertex_dim, 1, False
        else:
            in_d, out_d, heads, act = hidden_dim, hidden_dim, num_heads, True

        key, k1, k2, k3, k4 = jax.random.split(key, 5)
        wp = _xavier(k1, (in_d, heads * out_d), gain)          # p.weight.T
        wv = _xavier(k2, (in_d, heads * out_d), gain)          # lin_v.weight.T
        attn_v = (0.1 * jax.random.normal(k3, (heads, out_d))).astype(jnp.float32)
        attn_e = (0.1 * jax.random.normal(k4, (heads, out_d))).astype(jnp.float32)

        din_p = _round_up(in_d, 128)
        d_pad = _round_up(out_d, 128)

        # p() is only used for the attention logits: fold it with attn_v / attn_e.
        wp_r = wp.reshape(in_d, heads, out_d)
        u_v = jnp.einsum("ihd,hd->ih", wp_r, attn_v)           # (in_d, heads)
        u_e = jnp.einsum("ihd,hd->hi", wp_r, attn_e)           # (heads, in_d)

        # zero-pad to lane/sublane aligned shapes (exactness preserved)
        wv_p = jnp.zeros((din_p, heads, d_pad), jnp.float32)
        wv_p = wv_p.at[:in_d, :, :out_d].set(wv.reshape(in_d, heads, out_d))
        wv_p = wv_p.reshape(din_p, heads * d_pad)
        u_v_p = jnp.zeros((din_p, _HEADS_PAD), jnp.float32).at[:in_d, :heads].set(u_v)
        u_e_p = jnp.zeros((_HEADS_PAD, din_p), jnp.float32).at[:heads, :in_d].set(u_e)

        layers.append(dict(
            wv=wv_p.astype(jnp.bfloat16),
            u_v=u_v_p.astype(jnp.bfloat16),
            u_e=u_e_p.astype(jnp.bfloat16),
            num_heads=heads, out_dim=out_d, d_pad=d_pad, din_p=din_p,
            apply_relu=act))
    return layers


# ---------------------------------------------------------------------------
# Full model forward (pads once, runs the layers, slices padding off at the end)
# ---------------------------------------------------------------------------
def hcha_forward(layers, vfeat, efeat, H, dv2, invde):
    V, E = H.shape
    Ep = _round_up(E, 128)
    sm_bf16 = _bf16_softmax_ok()
    tv, nc, vmem_limit = _plan(V, Ep, layers, sm_bf16)
    Vp = _round_up(max(V, 1), nc * tv)

    vf = _pad2(vfeat.astype(jnp.float32), Vp, layers[0]["din_p"])
    ef = _pad2(efeat.astype(jnp.float32), Ep, layers[0]["din_p"])
    # incidence mask: padded + narrowed once (bf16 0/1), reused by every layer
    Hb = _pad2(H.astype(jnp.float32), Vp, Ep).astype(jnp.bfloat16)
    dv2p = _pad2(dv2.astype(jnp.float32), Vp, 1)
    invdep = _pad2(invde.astype(jnp.float32), Ep, 1)

    for lp in layers:
        vf, ef = hcha_layer(vf, ef, Hb, dv2p, invdep, lp, tv=tv, nc=nc,
                            vmem_limit=vmem_limit, sm_bf16=sm_bf16)

    d_out = layers[-1]["out_dim"]
    return vf[:V, :d_out], ef[:E, :d_out]


# ---------------------------------------------------------------------------
# Main
# ---------------------------------------------------------------------------
if __name__ == "__main__":
    key = jax.random.PRNGKey(0)

    V, E = 16, 8                 # num vertices, num hyperedges
    input_vdim = 12              # == input_edim (p is applied to both)
    hidden_dim = 32
    vertex_dim = 8
    num_layers, num_heads = 3, 4

    kH, kv, ke, kp = jax.random.split(key, 4)

    # incidence structure: random, but every vertex / hyperedge is covered
    H = (jax.random.uniform(kH, (V, E)) < 0.4).astype(jnp.float32)
    rows = jnp.arange(V)
    H = H.at[rows, rows % E].set(1.0)

    deg_v = jnp.sum(H, axis=1, keepdims=True)        # (V, 1)
    deg_e = jnp.sum(H, axis=0, keepdims=True).T      # (E, 1)
    DV2 = 1.0 / jnp.sqrt(deg_v)                      # (V, 1)
    invDE = 1.0 / deg_e                              # (E, 1)

    vfeat = jax.random.normal(kv, (V, input_vdim), jnp.float32)
    efeat = jax.random.normal(ke, (E, input_vdim), jnp.float32)

    layers = init_hcha(kp, input_vdim, hidden_dim, vertex_dim,
                       num_layers=num_layers, num_heads=num_heads)

    vout, eout = hcha_forward(layers, vfeat, efeat, H, DV2, invDE)
    jax.block_until_ready((vout, eout))

    assert vout.shape == (V, vertex_dim) and eout.shape == (E, vertex_dim)
    assert bool(jnp.all(jnp.isfinite(vout))) and bool(jnp.all(jnp.isfinite(eout)))
    print("KERNEL_OK")
</pallas_src>

<mosaic_0001>
module attributes {stable_mosaic.version = 11 : i64} {
  func.func @_hcha_pass1_kernel(%arg0: i32, %arg1: i32, %arg2: memref<256x128xf32, #tpu.memory_space<vmem>>, %arg3: memref<256x128xbf16, #tpu.memory_space<vmem>>, %arg4: memref<256x1xf32, #tpu.memory_space<vmem>>, %arg5: memref<128x128xbf16, #tpu.memory_space<vmem>>, %arg6: memref<128x512xbf16, #tpu.memory_space<vmem>>, %arg7: memref<128x8xbf16, #tpu.memory_space<vmem>>, %arg8: memref<8x128xbf16, #tpu.memory_space<vmem>>, %arg9: memref<256x128xbf16, #tpu.memory_space<vmem>>, %arg10: memref<1x128x128xf32, #tpu.memory_space<vmem>>, %arg11: memref<8x128xf32, #tpu.memory_space<vmem>>) attributes {dimension_semantics = [#tpu.dimension_semantics<parallel>, #tpu.dimension_semantics<arbitrary>], iteration_bounds = array<i64: 2, 1>, scalar_prefetch = 0 : i64, scratch_operands = 1 : i64, tpu.core_type = #tpu.core_type<tc>, window_params = [{transform_indices = @transform_0, window_bounds = array<i64: 256, 128>}, {transform_indices = @transform_1, window_bounds = array<i64: 256, 128>}, {transform_indices = @transform_2, window_bounds = array<i64: 256, 1>}, {pipeline_mode = #tpu.pipeline_mode<synchronous>, transform_indices = @transform_3, window_bounds = array<i64: 128, 128>}, {pipeline_mode = #tpu.pipeline_mode<synchronous>, transform_indices = @transform_4, window_bounds = array<i64: 128, 512>}, {pipeline_mode = #tpu.pipeline_mode<synchronous>, transform_indices = @transform_5, window_bounds = array<i64: 128, 8>}, {pipeline_mode = #tpu.pipeline_mode<synchronous>, transform_indices = @transform_6, window_bounds = array<i64: 8, 128>}, {transform_indices = @transform_7, window_bounds = array<i64: 256, 128>}, {transform_indices = @transform_8, window_bounds = array<i64: 1, 128, 128>}]} {
    %c0_i32 = arith.constant 0 : i32
    %0 = arith.cmpi eq, %arg1, %c0_i32 : i32
    %1 = arith.extui %0 : i1 to i32
    %c0_i32_0 = arith.constant 0 : i32
    %2 = arith.cmpi ne, %1, %c0_i32_0 : i32
    scf.if %2 {
      %cst_56 = arith.constant 0.000000e+00 : f32
      %143 = vector.broadcast %cst_56 : f32 to vector<128x128xf32>
      %c0_57 = arith.constant 0 : index
      %c0_58 = arith.constant 0 : index
      %c0_59 = arith.constant 0 : index
      %144 = vector.load %arg10[%c0_57, %c0_58, %c0_59] : memref<1x128x128xf32, #tpu.memory_space<vmem>>, vector<1x128x128xf32>
      %145 = vector.shape_cast %144 : vector<1x128x128xf32> to vector<128x128xf32>
      %146 = vector.shape_cast %143 : vector<128x128xf32> to vector<1x128x128xf32>
      tpu.vector_store %arg10[%c0_57, %c0_58, %c0_59], %146 {strides = array<i32>} : memref<1x128x128xf32, #tpu.memory_space<vmem>>, vector<1x128x128xf32>,
      %c0_60 = arith.constant 0 : index
      %c0_61 = arith.constant 0 : index
      %147 = vector.load %arg8[%c0_60, %c0_61] : memref<8x128xbf16, #tpu.memory_space<vmem>>, vector<8x128xbf16>
      %c0_62 = arith.constant 0 : index
      %c0_63 = arith.constant 0 : index
      %148 = vector.load %arg5[%c0_62, %c0_63] : memref<128x128xbf16, #tpu.memory_space<vmem>>, vector<128x128xbf16>
      %cst_64 = arith.constant dense<0.000000e+00> : vector<8x128xf32>
      %149 = tpu.matmul %147, %148, %cst_64 {dimension_numbers = #tpu.dot_dimension_numbers<[1], [1], [0], [0], [0, 0, 1, 0], [], []>} : vector<8x128xbf16>, vector<128x128xbf16>, vector<8x128xf32> -> vector<8x128xf32>
      %c0_65 = arith.constant 0 : index
      %c0_66 = arith.constant 0 : index
      %150 = vector.load %arg11[%c0_65, %c0_66] : memref<8x128xf32, #tpu.memory_space<vmem>>, vector<8x128xf32>
      tpu.vector_store %arg11[%c0_65, %c0_66], %149 {strides = array<i32>} : memref<8x128xf32, #tpu.memory_space<vmem>>, vector<8x128xf32>,
    } else {
    }
    %c0 = arith.constant 0 : index
    %c0_1 = arith.constant 0 : index
    %3 = vector.load %arg2[%c0, %c0_1] : memref<256x128xf32, #tpu.memory_space<vmem>>, vector<256x128xf32>
    %4 = arith.truncf %3 : vector<256x128xf32> to vector<256x128xbf16>
    %c0_2 = arith.constant 0 : index
    %c0_3 = arith.constant 0 : index
    %5 = vector.load %arg4[%c0_2, %c0_3] : memref<256x1xf32, #tpu.memory_space<vmem>>, vector<256x1xf32>
    %6 = arith.truncf %5 : vector<256x1xf32> to vector<256x1xbf16>
    %7 = vector.broadcast %6 : vector<256x1xbf16> to vector<256x128xbf16>
    %8 = arith.mulf %4, %7 : vector<256x128xbf16>
    %c0_4 = arith.constant 0 : index
    %c0_5 = arith.constant 0 : index
    %9 = vector.load %arg3[%c0_4, %c0_5] : memref<256x128xbf16, #tpu.memory_space<vmem>>, vector<256x128xbf16>
    %10 = arith.extf %9 : vector<256x128xbf16> to vector<256x128xf32>
    %c0_6 = arith.constant 0 : index
    %c0_7 = arith.constant 0 : index
    %11 = vector.load %arg7[%c0_6, %c0_7] : memref<128x8xbf16, #tpu.memory_space<vmem>>, vector<128x8xbf16>
    %cst = arith.constant dense<0.000000e+00> : vector<256x8xf32>
    %12 = tpu.matmul %4, %11, %cst {dimension_numbers = #tpu.dot_dimension_numbers<[1], [0], [0], [1], [0, 0, 1, 1], [], []>} : vector<256x128xbf16>, vector<128x8xbf16>, vector<256x8xf32> -> vector<256x8xf32>
    %cst_8 = arith.constant 0.000000e+00 : f32
    %13 = vector.broadcast %cst_8 : f32 to vector<256x128xf32>
    %cst_9 = arith.constant 0.000000e+00 : f32
    %14 = vector.broadcast %cst_9 : f32 to vector<128x128xf32>
    %c0_10 = arith.constant 0 : index
    %c0_11 = arith.constant 0 : index
    %15 = vector.load %arg11[%c0_10, %c0_11] : memref<8x128xf32, #tpu.memory_space<vmem>>, vector<1x128xf32>
    %16 = vector.extract_strided_slice %12 {offsets = [0, 0], sizes = [256, 1], strides = [1, 1]} : vector<256x8xf32> to vector<256x1xf32>
    %17 = vector.broadcast %16 : vector<256x1xf32> to vector<256x128xf32>
    %18 = vector.broadcast %15 : vector<1x128xf32> to vector<256x128xf32>
    %19 = arith.addf %17, %18 : vector<256x128xf32>
    %cst_12 = arith.constant 0.000000e+00 : f32
    %20 = vector.broadcast %cst_12 : f32 to vector<256x128xf32>
    %21 = arith.maximumf %19, %20 : vector<256x128xf32>
    %22 = arith.mulf %21, %10 : vector<256x128xf32>
    %cst_13 = arith.constant dense<0xFF800000> : vector<256xf32>
    %23 = vector.multi_reduction <maximumf>, %22, %cst_13 [1] : vector<256x128xf32> to vector<256xf32>
    %24 = vector.shape_cast %23 : vector<256xf32> to vector<256x1xf32>
    %25 = vector.broadcast %24 : vector<256x1xf32> to vector<256x128xf32>
    %26 = arith.subf %22, %25 : vector<256x128xf32>
    %27 = math.exp %26 : vector<256x128xf32>
    %28 = arith.mulf %27, %10 : vector<256x128xf32>
    %cst_14 = arith.constant dense<0.000000e+00> : vector<256xf32>
    %29 = vector.multi_reduction <add>, %28, %cst_14 [1] : vector<256x128xf32> to vector<256xf32>
    %30 = vector.shape_cast %29 : vector<256xf32> to vector<256x1xf32>
    %cst_15 = arith.constant 0.000000e+00 : f32
    %31 = vector.broadcast %cst_15 : f32 to vector<256x1xf32>
    %32 = arith.cmpf ogt, %30, %31 : vector<256x1xf32>
    %cst_16 = arith.constant 1.000000e+00 : f32
    %33 = vector.broadcast %cst_16 : f32 to vector<256x1xf32>
    %34 = arith.select %32, %30, %33 : vector<256x1xi1>, vector<256x1xf32>
    %35 = tpu.reciprocal %34 {approx = true} : vector<256x1xf32> -> vector<256x1xf32>
    %36 = vector.broadcast %35 : vector<256x1xf32> to vector<256x128xf32>
    %37 = arith.mulf %28, %36 : vector<256x128xf32>
    %38 = arith.truncf %37 : vector<256x128xf32> to vector<256x128xbf16>
    %39 = arith.addf %13, %37 : vector<256x128xf32>
    %c0_17 = arith.constant 0 : index
    %c0_18 = arith.constant 0 : index
    %40 = vector.load %arg6[%c0_17, %c0_18] : memref<128x512xbf16, #tpu.memory_space<vmem>>, vector<128x128xbf16>
    %cst_19 = arith.constant dense<0.000000e+00> : vector<256x128xf32>
    %41 = tpu.matmul %8, %40, %cst_19 {dimension_numbers = #tpu.dot_dimension_numbers<[1], [0], [0], [1], [0, 0, 1, 1], [], []>} : vector<256x128xbf16>, vector<128x128xbf16>, vector<256x128xf32> -> vector<256x128xf32>
    %42 = arith.truncf %41 : vector<256x128xf32> to vector<256x128xbf16>
    %cst_20 = arith.constant dense<0.000000e+00> : vector<128x128xf32>
    %43 = tpu.matmul %38, %42, %cst_20 {dimension_numbers = #tpu.dot_dimension_numbers<[0], [0], [1], [1], [0, 1, 1, 1], [], []>} : vector<256x128xbf16>, vector<256x128xbf16>, vector<128x128xf32> -> vector<128x128xf32>
    %44 = arith.addf %14, %43 : vector<128x128xf32>
    %c1 = arith.constant 1 : index
    %c0_21 = arith.constant 0 : index
    %45 = vector.load %arg11[%c1, %c0_21] : memref<8x128xf32, #tpu.memory_space<vmem>>, vector<1x128xf32>
    %46 = vector.extract_strided_slice %12 {offsets = [0, 1], sizes = [256, 1], strides = [1, 1]} : vector<256x8xf32> to vector<256x1xf32>
    %47 = vector.broadcast %46 : vector<256x1xf32> to vector<256x128xf32>
    %48 = vector.broadcast %45 : vector<1x128xf32> to vector<256x128xf32>
    %49 = arith.addf %47, %48 : vector<256x128xf32>
    %cst_22 = arith.constant 0.000000e+00 : f32
    %50 = vector.broadcast %cst_22 : f32 to vector<256x128xf32>
    %51 = arith.maximumf %49, %50 : vector<256x128xf32>
    %52 = arith.mulf %51, %10 : vector<256x128xf32>
    %cst_23 = arith.constant dense<0xFF800000> : vector<256xf32>
    %53 = vector.multi_reduction <maximumf>, %52, %cst_23 [1] : vector<256x128xf32> to vector<256xf32>
    %54 = vector.shape_cast %53 : vector<256xf32> to vector<256x1xf32>
    %55 = vector.broadcast %54 : vector<256x1xf32> to vector<256x128xf32>
    %56 = arith.subf %52, %55 : vector<256x128xf32>
    %57 = math.exp %56 : vector<256x128xf32>
    %58 = arith.mulf %57, %10 : vector<256x128xf32>
    %cst_24 = arith.constant dense<0.000000e+00> : vector<256xf32>
    %59 = vector.multi_reduction <add>, %58, %cst_24 [1] : vector<256x128xf32> to vector<256xf32>
    %60 = vector.shape_cast %59 : vector<256xf32> to vector<256x1xf32>
    %cst_25 = arith.constant 0.000000e+00 : f32
    %61 = vector.broadcast %cst_25 : f32 to vector<256x1xf32>
    %62 = arith.cmpf ogt, %60, %61 : vector<256x1xf32>
    %cst_26 = arith.constant 1.000000e+00 : f32
    %63 = vector.broadcast %cst_26 : f32 to vector<256x1xf32>
    %64 = arith.select %62, %60, %63 : vector<256x1xi1>, vector<256x1xf32>
    %65 = tpu.reciprocal %64 {approx = true} : vector<256x1xf32> -> vector<256x1xf32>
    %66 = vector.broadcast %65 : vector<256x1xf32> to vector<256x128xf32>
    %67 = arith.mulf %58, %66 : vector<256x128xf32>
    %68 = arith.truncf %67 : vector<256x128xf32> to vector<256x128xbf16>
    %69 = arith.addf %39, %67 : vector<256x128xf32>
    %c0_27 = arith.constant 0 : index
    %c128 = arith.constant 128 : index
    %70 = vector.load %arg6[%c0_27, %c128] : memref<128x512xbf16, #tpu.memory_space<vmem>>, vector<128x128xbf16>
    %cst_28 = arith.constant dense<0.000000e+00> : vector<256x128xf32>
    %71 = tpu.matmul %8, %70, %cst_28 {dimension_numbers = #tpu.dot_dimension_numbers<[1], [0], [0], [1], [0, 0, 1, 1], [], []>} : vector<256x128xbf16>, vector<128x128xbf16>, vector<256x128xf32> -> vector<256x128xf32>
    %72 = arith.truncf %71 : vector<256x128xf32> to vector<256x128xbf16>
    %cst_29 = arith.constant dense<0.000000e+00> : vector<128x128xf32>
    %73 = tpu.matmul %68, %72, %cst_29 {dimension_numbers = #tpu.dot_dimension_numbers<[0], [0], [1], [1], [0, 1, 1, 1], [], []>} : vector<256x128xbf16>, vector<256x128xbf16>, vector<128x128xf32> -> vector<128x128xf32>
    %74 = arith.addf %44, %73 : vector<128x128xf32>
    %c2 = arith.constant 2 : index
    %c0_30 = arith.constant 0 : index
    %75 = vector.load %arg11[%c2, %c0_30] : memref<8x128xf32, #tpu.memory_space<vmem>>, vector<1x128xf32>
    %76 = vector.extract_strided_slice %12 {offsets = [0, 2], sizes = [256, 1], strides = [1, 1]} : vector<256x8xf32> to vector<256x1xf32>
    %77 = vector.broadcast %76 : vector<256x1xf32> to vector<256x128xf32>
    %78 = vector.broadcast %75 : vector<1x128xf32> to vector<256x128xf32>
    %79 = arith.addf %77, %78 : vector<256x128xf32>
    %cst_31 = arith.constant 0.000000e+00 : f32
    %80 = vector.broadcast %cst_31 : f32 to vector<256x128xf32>
    %81 = arith.maximumf %79, %80 : vector<256x128xf32>
    %82 = arith.mulf %81, %10 : vector<256x128xf32>
    %cst_32 = arith.constant dense<0xFF800000> : vector<256xf32>
    %83 = vector.multi_reduction <maximumf>, %82, %cst_32 [1] : vector<256x128xf32> to vector<256xf32>
    %84 = vector.shape_cast %83 : vector<256xf32> to vector<256x1xf32>
    %85 = vector.broadcast %84 : vector<256x1xf32> to vector<256x128xf32>
    %86 = arith.subf %82, %85 : vector<256x128xf32>
    %87 = math.exp %86 : vector<256x128xf32>
    %88 = arith.mulf %87, %10 : vector<256x128xf32>
    %cst_33 = arith.constant dense<0.000000e+00> : vector<256xf32>
    %89 = vector.multi_reduction <add>, %88, %cst_33 [1] : vector<256x128xf32> to vector<256xf32>
    %90 = vector.shape_cast %89 : vector<256xf32> to vector<256x1xf32>
    %cst_34 = arith.constant 0.000000e+00 : f32
    %91 = vector.broadcast %cst_34 : f32 to vector<256x1xf32>
    %92 = arith.cmpf ogt, %90, %91 : vector<256x1xf32>
    %cst_35 = arith.constant 1.000000e+00 : f32
    %93 = vector.broadcast %cst_35 : f32 to vector<256x1xf32>
    %94 = arith.select %92, %90, %93 : vector<256x1xi1>, vector<256x1xf32>
    %95 = tpu.reciprocal %94 {approx = true} : vector<256x1xf32> -> vector<256x1xf32>
    %96 = vector.broadcast %95 : vector<256x1xf32> to vector<256x128xf32>
    %97 = arith.mulf %88, %96 : vector<256x128xf32>
    %98 = arith.truncf %97 : vector<256x128xf32> to vector<256x128xbf16>
    %99 = arith.addf %69, %97 : vector<256x128xf32>
    %c0_36 = arith.constant 0 : index
    %c256 = arith.constant 256 : index
    %100 = vector.load %arg6[%c0_36, %c256] : memref<128x512xbf16, #tpu.memory_space<vmem>>, vector<128x128xbf16>
    %cst_37 = arith.constant dense<0.000000e+00> : vector<256x128xf32>
    %101 = tpu.matmul %8, %100, %cst_37 {dimension_numbers = #tpu.dot_dimension_numbers<[1], [0], [0], [1], [0, 0, 1, 1], [], []>} : vector<256x128xbf16>, vector<128x128xbf16>, vector<256x128xf32> -> vector<256x128xf32>
    %102 = arith.truncf %101 : vector<256x128xf32> to vector<256x128xbf16>
    %cst_38 = arith.constant dense<0.000000e+00> : vector<128x128xf32>
    %103 = tpu.matmul %98, %102, %cst_38 {dimension_numbers = #tpu.dot_dimension_numbers<[0], [0], [1], [1], [0, 1, 1, 1], [], []>} : vector<256x128xbf16>, vector<256x128xbf16>, vector<128x128xf32> -> vector<128x128xf32>
    %104 = arith.addf %74, %103 : vector<128x128xf32>
    %c3 = arith.constant 3 : index
    %c0_39 = arith.constant 0 : index
    %105 = vector.load %arg11[%c3, %c0_39] : memref<8x128xf32, #tpu.memory_space<vmem>>, vector<1x128xf32>
    %106 = vector.extract_strided_slice %12 {offsets = [0, 3], sizes = [256, 1], strides = [1, 1]} : vector<256x8xf32> to vector<256x1xf32>
    %107 = vector.broadcast %106 : vector<256x1xf32> to vector<256x128xf32>
    %108 = vector.broadcast %105 : vector<1x128xf32> to vector<256x128xf32>
    %109 = arith.addf %107, %108 : vector<256x128xf32>
    %cst_40 = arith.constant 0.000000e+00 : f32
    %110 = vector.broadcast %cst_40 : f32 to vector<256x128xf32>
    %111 = arith.maximumf %109, %110 : vector<256x128xf32>
    %112 = arith.mulf %111, %10 : vector<256x128xf32>
    %cst_41 = arith.constant dense<0xFF800000> : vector<256xf32>
    %113 = vector.multi_reduction <maximumf>, %112, %cst_41 [1] : vector<256x128xf32> to vector<256xf32>
    %114 = vector.shape_cast %113 : vector<256xf32> to vector<256x1xf32>
    %115 = vector.broadcast %114 : vector<256x1xf32> to vector<256x128xf32>
    %116 = arith.subf %112, %115 : vector<256x128xf32>
    %117 = math.exp %116 : vector<256x128xf32>
    %118 = arith.mulf %117, %10 : vector<256x128xf32>
    %cst_42 = arith.constant dense<0.000000e+00> : vector<256xf32>
    %119 = vector.multi_reduction <add>, %118, %cst_42 [1] : vector<256x128xf32> to vector<256xf32>
    %120 = vector.shape_cast %119 : vector<256xf32> to vector<256x1xf32>
    %cst_43 = arith.constant 0.000000e+00 : f32
    %121 = vector.broadcast %cst_43 : f32 to vector<256x1xf32>
    %122 = arith.cmpf ogt, %120, %121 : vector<256x1xf32>
    %cst_44 = arith.constant 1.000000e+00 : f32
    %123 = vector.broadcast %cst_44 : f32 to vector<256x1xf32>
    %124 = arith.select %122, %120, %123 : vector<256x1xi1>, vector<256x1xf32>
    %125 = tpu.reciprocal %124 {approx = true} : vector<256x1xf32> -> vector<256x1xf32>
    %126 = vector.broadcast %125 : vector<256x1xf32> to vector<256x128xf32>
    %127 = arith.mulf %118, %126 : vector<256x128xf32>
    %128 = arith.truncf %127 : vector<256x128xf32> to vector<256x128xbf16>
    %129 = arith.addf %99, %127 : vector<256x128xf32>
    %c0_45 = arith.constant 0 : index
    %c384 = arith.constant 384 : index
    %130 = vector.load %arg6[%c0_45, %c384] : memref<128x512xbf16, #tpu.memory_space<vmem>>, vector<128x128xbf16>
    %cst_46 = arith.constant dense<0.000000e+00> : vector<256x128xf32>
    %131 = tpu.matmul %8, %130, %cst_46 {dimension_numbers = #tpu.dot_dimension_numbers<[1], [0], [0], [1], [0, 0, 1, 1], [], []>} : vector<256x128xbf16>, vector<128x128xbf16>, vector<256x128xf32> -> vector<256x128xf32>
    %132 = arith.truncf %131 : vector<256x128xf32> to vector<256x128xbf16>
    %cst_47 = arith.constant dense<0.000000e+00> : vector<128x128xf32>
    %133 = tpu.matmul %128, %132, %cst_47 {dimension_numbers = #tpu.dot_dimension_numbers<[0], [0], [1], [1], [0, 1, 1, 1], [], []>} : vector<256x128xbf16>, vector<256x128xbf16>, vector<128x128xf32> -> vector<128x128xf32>
    %134 = arith.addf %104, %133 : vector<128x128xf32>
    %135 = arith.truncf %129 : vector<256x128xf32> to vector<256x128xbf16>
    %c0_48 = arith.constant 0 : index
    %c0_49 = arith.constant 0 : index
    %136 = vector.load %arg9[%c0_48, %c0_49] : memref<256x128xbf16, #tpu.memory_space<vmem>>, vector<256x128xbf16>
    tpu.vector_store %arg9[%c0_48, %c0_49], %135 {strides = array<i32>} : memref<256x128xbf16, #tpu.memory_space<vmem>>, vector<256x128xbf16>,
    %c0_50 = arith.constant 0 : index
    %c0_51 = arith.constant 0 : index
    %c0_52 = arith.constant 0 : index
    %137 = vector.load %arg10[%c0_50, %c0_51, %c0_52] : memref<1x128x128xf32, #tpu.memory_space<vmem>>, vector<1x128x128xf32>
    %138 = vector.shape_cast %137 : vector<1x128x128xf32> to vector<128x128xf32>
    %139 = arith.addf %138, %134 : vector<128x128xf32>
    %c0_53 = arith.constant 0 : index
    %c0_54 = arith.constant 0 : index
    %c0_55 = arith.constant 0 : index
    %140 = vector.load %arg10[%c0_53, %c0_54, %c0_55] : memref<1x128x128xf32, #tpu.memory_space<vmem>>, vector<1x128x128xf32>
    %141 = vector.shape_cast %140 : vector<1x128x128xf32> to vector<128x128xf32>
    %142 = vector.shape_cast %139 : vector<128x128xf32> to vector<1x128x128xf32>
    tpu.vector_store %arg10[%c0_53, %c0_54, %c0_55], %142 {strides = array<i32>} : memref<1x128x128xf32, #tpu.memory_space<vmem>>, vector<1x128x128xf32>,
    return
  }
  func.func @transform_0(%arg0: i32, %arg1: i32) -> (i32, i32) {
    %c1_i32 = arith.constant 1 : i32
    %0 = arith.muli %arg0, %c1_i32 : i32
    %1 = arith.addi %0, %arg1 : i32
    %c0_i32 = arith.constant 0 : i32
    %c0_i32_0 = arith.constant 0 : i32
    return %1, %c0_i32 : i32, i32
  }
  func.func @transform_1(%arg0: i32, %arg1: i32) -> (i32, i32) {
    %c1_i32 = arith.constant 1 : i32
    %0 = arith.muli %arg0, %c1_i32 : i32
    %1 = arith.addi %0, %arg1 : i32
    %c0_i32 = arith.constant 0 : i32
    %c0_i32_0 = arith.constant 0 : i32
    return %1, %c0_i32 : i32, i32
  }
  func.func @transform_2(%arg0: i32, %arg1: i32) -> (i32, i32) {
    %c1_i32 = arith.constant 1 : i32
    %0 = arith.muli %arg0, %c1_i32 : i32
    %1 = arith.addi %0, %arg1 : i32
    %c0_i32 = arith.constant 0 : i32
    %c0_i32_0 = arith.constant 0 : i32
    return %1, %c0_i32 : i32, i32
  }
  func.func @transform_3(%arg0: i32, %arg1: i32) -> (i32, i32) {
    %c0_i32 = arith.constant 0 : i32
    %c0_i32_0 = arith.constant 0 : i32
    %c0_i32_1 = arith.constant 0 : i32
    return %c0_i32, %c0_i32_0 : i32, i32
  }
  func.func @transform_4(%arg0: i32, %arg1: i32) -> (i32, i32) {
    %c0_i32 = arith.constant 0 : i32
    %c0_i32_0 = arith.constant 0 : i32
    %c0_i32_1 = arith.constant 0 : i32
    return %c0_i32, %c0_i32_0 : i32, i32
  }
  func.func @transform_5(%arg0: i32, %arg1: i32) -> (i32, i32) {
    %c0_i32 = arith.constant 0 : i32
    %c0_i32_0 = arith.constant 0 : i32
    %c0_i32_1 = arith.constant 0 : i32
    return %c0_i32, %c0_i32_0 : i32, i32
  }
  func.func @transform_6(%arg0: i32, %arg1: i32) -> (i32, i32) {
    %c0_i32 = arith.constant 0 : i32
    %c0_i32_0 = arith.constant 0 : i32
    %c0_i32_1 = arith.constant 0 : i32
    return %c0_i32, %c0_i32_0 : i32, i32
  }
  func.func @transform_7(%arg0: i32, %arg1: i32) -> (i32, i32) {
    %c1_i32 = arith.constant 1 : i32
    %0 = arith.muli %arg0, %c1_i32 : i32
    %1 = arith.addi %0, %arg1 : i32
    %c0_i32 = arith.constant 0 : i32
    %c0_i32_0 = arith.constant 0 : i32
    return %1, %c0_i32 : i32, i32
  }
  func.func @transform_8(%arg0: i32, %arg1: i32) -> (i32, i32, i32) {
    %c0_i32 = arith.constant 0 : i32
    %c0_i32_0 = arith.constant 0 : i32
    %c0_i32_1 = arith.constant 0 : i32
    return %arg0, %c0_i32, %c0_i32_0 : i32, i32, i32
  }
}

</mosaic_0001>

<llo_original>
// kernel: tpu_custom_call.1
$region0: #{tpu_custom_call.1}
  #allocation0 [shape = 'u32[]', space=smem, size = 0x4, offset = 0x4, fixed_abs, tag = 'smem constant byte address 0x4 - core index']
  #allocation1 [shape = 'u32[144,128]{1,0:T(1,128)}', space=vmem, size = 0x12000, scoped, tag = 'internal scratch']
  #allocation2 [shape = 'f32[8,128]{1,0:T(8,128)}', space=vmem, size = 0x1000, scoped, tag = 'scratch operand']
  %s0 = inlined_call_operand.hbm [shape: f32[512,128], index: 0, kind: input, shape index: {}]
  %s1 = inlined_call_operand.hbm [shape: bf16[512,128], index: 1, kind: input, shape index: {}]
  %s2 = inlined_call_operand.hbm [shape: f32[512,1], index: 2, kind: input, shape index: {}]
  %s3 = inlined_call_operand.hbm [shape: bf16[128,128], index: 3, kind: input, shape index: {}]
  %s4 = inlined_call_operand.hbm [shape: bf16[128,512], index: 4, kind: input, shape index: {}]
  %s5 = inlined_call_operand.hbm [shape: bf16[128,8], index: 5, kind: input, shape index: {}]
  %s6 = inlined_call_operand.hbm [shape: bf16[8,128], index: 6, kind: input, shape index: {}]
  %s7 = inlined_call_operand.hbm [shape: bf16[512,128], index: 7, kind: output, shape index: {0}]
  %s8 = inlined_call_operand.hbm [shape: f32[2,128,128], index: 8, kind: output, shape index: {1}]
  %9 = xla_tuple %s7, %s8
  %s10 = sld [smem:[#allocation0]]
  $region101: #{tpu_custom_call.1} parent=0
    _
  %s12 = ssub.s32 1, %s10
  %s13 = scalar_select 0, %s12, %s10
  $region1: #{tpu_custom_call.1} parent=0
    #allocation3 [shape = 'u8[262144]{0}', space=vmem, size = 0x40000, scoped, tag = 'input window, operand 0']
    #allocation4 [shape = 's32[2]{0}', space=sflag, size = 0x8, scoped, tag = 'scoped memory for tpu_custom_call.1']
    #allocation5 [shape = 's32[2]{0}', space=sflag, size = 0x8, scoped, tag = 'scoped memory for tpu_custom_call.1']
    #allocation6 [shape = 'u8[131072]{0}', space=vmem, size = 0x20000, scoped, tag = 'input window, operand 1']
    #allocation7 [shape = 's32[2]{0}', space=sflag, size = 0x8, scoped, tag = 'scoped memory for tpu_custom_call.1']
    #allocation8 [shape = 'u8[262144]{0}', space=vmem, size = 0x40000, scoped, tag = 'input window, operand 2']
    #allocation9 [shape = 'u8[32768]{0}', space=vmem, size = 0x8000, scoped, tag = 'input window, operand 3, single buffered']
    #allocation10 [shape = 's32[1]{0}', space=sflag, size = 0x4, scoped, tag = 'scoped memory for tpu_custom_call.1']
    #allocation11 [shape = 'u8[131072]{0}', space=vmem, size = 0x20000, scoped, tag = 'input window, operand 4, single buffered']
    #allocation12 [shape = 'u8[32768]{0}', space=vmem, size = 0x8000, scoped, tag = 'input window, operand 5, single buffered']
    #allocation13 [shape = 's32[1]{0}', space=sflag, size = 0x4, scoped, tag = 'scoped memory for tpu_custom_call.1']
    #allocation14 [shape = 'u8[2048]{0}', space=vmem, size = 0x800, scoped, tag = 'input window, operand 6, single buffered']
    #allocation15 [shape = 'u8[131072]{0}', space=vmem, size = 0x20000, scoped, tag = 'output window, operand 0']
    #allocation16 [shape = 'u8[131072]{0}', space=vmem, size = 0x20000, scoped, tag = 'output window, operand 1']
    #allocation17 [shape = 's32[2]{0}', space=sflag, size = 0x8, scoped, tag = 'scoped memory for tpu_custom_call.1']
    %14 = vsyncpa [#allocation4], 0
    %s15 = scalar_lea.sflag [#allocation4], 1
    %16 = vsyncpa %s15, 0
    %17 = vsyncpa [#allocation7], 0
    %s18 = scalar_lea.sflag [#allocation7], 1
    %19 = vsyncpa %s18, 0
    %20 = vsyncpa [#allocation10], 0
    %21 = vsyncpa [#allocation13], 0
    %22 = vsyncpa [#allocation5], 0
    %s23 = scalar_lea.sflag [#allocation5], 1
    %24 = vsyncpa %s23, 0
    %25 = vsyncpa [#allocation17], 0
    %s26 = scalar_lea.sflag [#allocation17], 1
    %27 = vsyncpa %s26, 0
    loop: start=0, step=1, limit=4
    $region2: #{tpu_custom_call.1} parent=1 // loop_pre_header
      _
    $region3: #{tpu_custom_call.1} parent=1 // loop_header
      %s29 = sphi 0, %s33
      %p30 = scmp.ge.s32.totalorder %s29, 4
      %s36 = sphi 0, %s48
      %s37 = sphi 0, %s44
      %s38 = sphi 0, %s36
      %s39 = sphi 0, %s37
      %s40 = sphi 0, %s38
      %s41 = sphi 0, %s39
      %s53 = sphi 0, %s55
      %s56 = sphi 0, %s53
      %s57 = sphi 0, %s56
      %s73 = sphi 0, %s57
      %s81 = sphi 0, %s83
      %s84 = sphi 0, %s81
      %s85 = sphi 0, %s84
      %s101 = sphi 0, %s85
      %s109 = sphi 0, %s111
      %s112 = sphi 0, %s109
      %s113 = sphi 0, %s112
      %s129 = sphi 0, %s113
      %s133 = sphi 0, %s133
      %s135 = sphi 0, %s133
      %s136 = sphi 0, %s135
      %s150 = sphi 0, %s136
      %s154 = sphi 0, %s154
      %s156 = sphi 0, %s154
      %s157 = sphi 0, %s156
      %s171 = sphi 0, %s157
      %s175 = sphi 0, %s175
      %s177 = sphi 0, %s175
      %s178 = sphi 0, %s177
      %s192 = sphi 0, %s178
      %s196 = sphi 0, %s196
      %s198 = sphi 0, %s196
      %s199 = sphi 0, %s198
      %s213 = sphi 0, %s199
      %s221 = sphi 0, %s223
      %s224 = sphi 0, %s221
      %s225 = sphi 0, %s224
      %s241 = sphi 0, %s225
      %s247 = sphi 0, %s249
      %s250 = sphi 0, %s247
      %s251 = sphi 0, %s250
      %s267 = sphi 0, %s251
    $region4: #{tpu_custom_call.1} parent=1 // loop_header_branch
      %32 = sbr.rel (%p30) target = $region8
    $region5: #{tpu_custom_call.1} parent=1 // loop_body
      %s34 = ssub.s32 %s29, 1
      %s35 = ssub.s32 %s29, 2
      %s42 = sadd.s32 1, %s37
      %p43 = scmp.ge.s32.totalorder %s42, 1
      %s44 = scalar_select %p43, 0, %s42
      %s45 = sadd.s32 1, %s36
      %s46 = scalar_select %p43, %s45, %s36
      %p47 = scmp.ge.s32.totalorder %s46, 2
      %s48 = scalar_select %p47, 0, %s46
      %s49 = sadd.s32 %s36, %s37
      %s50 = sadd.s32 %s48, %s44
      %s51 = ssub.s32 %s49, %s50
      %p52 = scmp.eq.s32.totalorder %s51, 0
      %s54 = sadd.s32 %s53, 1
      %s55 = scalar_select %p52, %s53, %s54
      %p58 = pneg %p52
      %p59 = scmp.eq.s32.totalorder %s29, 1
      %p60 = por %p58, %p59
      %p61 = scmp.ne.s32.totalorder %s53, %s56
      %p62 = scmp.eq.s32.totalorder %s29, 0
      %p63 = por %p61, %p62
      %p64 = scmp.ne.s32.totalorder %s53, %s56
      %p65 = scmp.eq.s32.totalorder %s34, 1
      %p66 = por %p64, %p65
      %p67 = scmp.ne.s32.totalorder %s56, %s57
      %p68 = scmp.eq.s32.totalorder %s34, 0
      %p69 = por %p67, %p68
      %p70 = scmp.ne.s32.totalorder %s56, %s57
      %p71 = scmp.eq.s32.totalorder %s35, 1
      %p72 = por %p70, %p71
      %p74 = scmp.ne.s32.totalorder %s57, %s73
      %p75 = scmp.eq.s32.totalorder %s35, 0
      %p76 = por %p74, %p75
      %s77 = sadd.s32 %s36, %s37
      %s78 = sadd.s32 %s48, %s44
      %s79 = ssub.s32 %s77, %s78
      %p80 = scmp.eq.s32.totalorder %s79, 0
      %s82 = sadd.s32 %s81, 1
      %s83 = scalar_select %p80, %s81, %s82
      %p86 = pneg %p80
      %p87 = scmp.eq.s32.totalorder %s29, 1
      %p88 = por %p86, %p87
      %p89 = scmp.ne.s32.totalorder %s81, %s84
      %p90 = scmp.eq.s32.totalorder %s29, 0
      %p91 = por %p89, %p90
      %p92 = scmp.ne.s32.totalorder %s81, %s84
      %p93 = scmp.eq.s32.totalorder %s34, 1
      %p94 = por %p92, %p93
      %p95 = scmp.ne.s32.totalorder %s84, %s85
      %p96 = scmp.eq.s32.totalorder %s34, 0
      %p97 = por %p95, %p96
      %p98 = scmp.ne.s32.totalorder %s84, %s85
      %p99 = scmp.eq.s32.totalorder %s35, 1
      %p100 = por %p98, %p99
      %p102 = scmp.ne.s32.totalorder %s85, %s101
      %p103 = scmp.eq.s32.totalorder %s35, 0
      %p104 = por %p102, %p103
      %s105 = sadd.s32 %s36, %s37
      %s106 = sadd.s32 %s48, %s44
      %s107 = ssub.s32 %s105, %s106
      %p108 = scmp.eq.s32.totalorder %s107, 0
      %s110 = sadd.s32 %s109, 1
      %s111 = scalar_select %p108, %s109, %s110
      %p114 = pneg %p108
      %p115 = scmp.eq.s32.totalorder %s29, 1
      %p116 = por %p114, %p115
      %p117 = scmp.ne.s32.totalorder %s109, %s112
      %p118 = scmp.eq.s32.totalorder %s29, 0
      %p119 = por %p117, %p118
      %p120 = scmp.ne.s32.totalorder %s109, %s112
      %p121 = scmp.eq.s32.totalorder %s34, 1
      %p122 = por %p120, %p121
      %p123 = scmp.ne.s32.totalorder %s112, %s113
      %p124 = scmp.eq.s32.totalorder %s34, 0
      %p125 = por %p123, %p124
      %p126 = scmp.ne.s32.totalorder %s112, %s113
      %p127 = scmp.eq.s32.totalorder %s35, 1
      %p128 = por %p126, %p127
      %p130 = scmp.ne.s32.totalorder %s113, %s129
      %p131 = scmp.eq.s32.totalorder %s35, 0
      %p132 = por %p130, %p131
      %s134 = sadd.s32 %s133, 1
      %p137 = scmp.eq.s32.totalorder %s29, 1
      %p138 = scmp.ne.s32.totalorder %s133, %s135
      %p139 = scmp.eq.s32.totalorder %s29, 0
      %p140 = por %p138, %p139
      %p141 = scmp.ne.s32.totalorder %s133, %s135
      %p142 = scmp.eq.s32.totalorder %s34, 1
      %p143 = por %p141, %p142
      %p144 = scmp.ne.s32.totalorder %s135, %s136
      %p145 = scmp.eq.s32.totalorder %s34, 0
      %p146 = por %p144, %p145
      %p147 = scmp.ne.s32.totalorder %s135, %s136
      %p148 = scmp.eq.s32.totalorder %s35, 1
      %p149 = por %p147, %p148
      %p151 = scmp.ne.s32.totalorder %s136, %s150
      %p152 = scmp.eq.s32.totalorder %s35, 0
      %p153 = por %p151, %p152
      %s155 = sadd.s32 %s154, 1
      %p158 = scmp.eq.s32.totalorder %s29, 1
      %p159 = scmp.ne.s32.totalorder %s154, %s156
      %p160 = scmp.eq.s32.totalorder %s29, 0
      %p161 = por %p159, %p160
      %p162 = scmp.ne.s32.totalorder %s154, %s156
      %p163 = scmp.eq.s32.totalorder %s34, 1
      %p164 = por %p162, %p163
      %p165 = scmp.ne.s32.totalorder %s156, %s157
      %p166 = scmp.eq.s32.totalorder %s34, 0
      %p167 = por %p165, %p166
      %p168 = scmp.ne.s32.totalorder %s156, %s157
      %p169 = scmp.eq.s32.totalorder %s35, 1
      %p170 = por %p168, %p169
      %p172 = scmp.ne.s32.totalorder %s157, %s171
      %p173 = scmp.eq.s32.totalorder %s35, 0
      %p174 = por %p172, %p173
      %s176 = sadd.s32 %s175, 1
      %p179 = scmp.eq.s32.totalorder %s29, 1
      %p180 = scmp.ne.s32.totalorder %s175, %s177
      %p181 = scmp.eq.s32.totalorder %s29, 0
      %p182 = por %p180, %p181
      %p183 = scmp.ne.s32.totalorder %s175, %s177
      %p184 = scmp.eq.s32.totalorder %s34, 1
      %p185 = por %p183, %p184
      %p186 = scmp.ne.s32.totalorder %s177, %s178
      %p187 = scmp.eq.s32.totalorder %s34, 0
      %p188 = por %p186, %p187
      %p189 = scmp.ne.s32.totalorder %s177, %s178
      %p190 = scmp.eq.s32.totalorder %s35, 1
      %p191 = por %p189, %p190
      %p193 = scmp.ne.s32.totalorder %s178, %s192
      %p194 = scmp.eq.s32.totalorder %s35, 0
      %p195 = por %p193, %p194
      %s197 = sadd.s32 %s196, 1
      %p200 = scmp.eq.s32.totalorder %s29, 1
      %p201 = scmp.ne.s32.totalorder %s196, %s198
      %p202 = scmp.eq.s32.totalorder %s29, 0
      %p203 = por %p201, %p202
      %p204 = scmp.ne.s32.totalorder %s196, %s198
      %p205 = scmp.eq.s32.totalorder %s34, 1
      %p206 = por %p204, %p205
      %p207 = scmp.ne.s32.totalorder %s198, %s199
      %p208 = scmp.eq.s32.totalorder %s34, 0
      %p209 = por %p207, %p208
      %p210 = scmp.ne.s32.totalorder %s198, %s199
      %p211 = scmp.eq.s32.totalorder %s35, 1
      %p212 = por %p210, %p211
      %p214 = scmp.ne.s32.totalorder %s199, %s213
      %p215 = scmp.eq.s32.totalorder %s35, 0
      %p216 = por %p214, %p215
      %s217 = sadd.s32 %s36, %s37
      %s218 = sadd.s32 %s48, %s44
      %s219 = ssub.s32 %s217, %s218
      %p220 = scmp.eq.s32.totalorder %s219, 0
      %s222 = sadd.s32 %s221, 1
      %s223 = scalar_select %p220, %s221, %s222
      %p226 = pneg %p220
      %p227 = scmp.eq.s32.totalorder %s29, 1
      %p228 = por %p226, %p227
      %p229 = scmp.ne.s32.totalorder %s221, %s224
      %p230 = scmp.eq.s32.totalorder %s29, 0
      %p231 = por %p229, %p230
      %p232 = scmp.ne.s32.totalorder %s221, %s224
      %p233 = scmp.eq.s32.totalorder %s34, 1
      %p234 = por %p232, %p233
      %p235 = scmp.ne.s32.totalorder %s224, %s225
      %p236 = scmp.eq.s32.totalorder %s34, 0
      %p237 = por %p235, %p236
      %p238 = scmp.ne.s32.totalorder %s224, %s225
      %p239 = scmp.eq.s32.totalorder %s35, 1
      %p240 = por %p238, %p239
      %p242 = scmp.ne.s32.totalorder %s225, %s241
      %p243 = scmp.eq.s32.totalorder %s35, 0
      %p244 = por %p242, %p243
      %s245 = ssub.s32 %s36, %s48
      %p246 = scmp.eq.s32.totalorder %s245, 0
      %s248 = sadd.s32 %s247, 1
      %s249 = scalar_select %p246, %s247, %s248
      %p252 = pneg %p246
      %p253 = scmp.eq.s32.totalorder %s29, 1
      %p254 = por %p252, %p253
      %p255 = scmp.ne.s32.totalorder %s247, %s250
      %p256 = scmp.eq.s32.totalorder %s29, 0
      %p257 = por %p255, %p256
      %p258 = scmp.ne.s32.totalorder %s247, %s250
      %p259 = scmp.eq.s32.totalorder %s34, 1
      %p260 = por %p258, %p259
      %p261 = scmp.ne.s32.totalorder %s250, %s251
      %p262 = scmp.eq.s32.totalorder %s34, 0
      %p263 = por %p261, %p262
      %p264 = scmp.ne.s32.totalorder %s250, %s251
      %p265 = scmp.eq.s32.totalorder %s35, 1
      %p266 = por %p264, %p265
      %p268 = scmp.ne.s32.totalorder %s251, %s267
      %p269 = scmp.eq.s32.totalorder %s35, 0
      %p270 = por %p268, %p269
      %p271 = scmp.le.s32.totalorder 1, %s29
      %p272 = scmp.lt.s32.totalorder %s29, 3
      %p273 = pnand %p271, %p272
      %p274 = pneg %p273
      // Predicated region
      $region9: #{tpu_custom_call.1} parent=5 // pred_check
        _
      $region10: #{tpu_custom_call.1} parent=5 // pred_check_branch
        %276 = sbr.rel (%p273) target = $region12
      $region11: #{tpu_custom_call.1} parent=5 // pred_region
        %s277 = ssub.s32 %s29, 1
        // Predicated region
        $region13: #{tpu_custom_call.1} parent=11 // pred_check
          %p278 = pneg %p146
        $region14: #{tpu_custom_call.1} parent=11 // pred_check_branch
          %280 = sbr.rel (%p278) target = $region16
        $region15: #{tpu_custom_call.1} parent=11 // pred_region
          %s282 = ssub.s32 1024, 1024
          %283 = vsyncadd [#allocation10], %s282
          %s284 = sshll.u32 [#allocation9], 4
          %s285 = int_to_ptr.vmem [resolvable:$true] %s284
          %290 = dma.hbm_to_vmem [thread:$0]  %s3, 1024, %s285, [#allocation10], 64, 64, 4
        $region16: #{tpu_custom_call.1} parent=11 // pred_fallthru
          _
        // Predicated region
        $region17: #{tpu_custom_call.1} parent=11 // pred_check
          %p291 = pneg %p167
        $region18: #{tpu_custom_call.1} parent=11 // pred_check_branch
          %293 = sbr.rel (%p291) target = $region20
        $region19: #{tpu_custom_call.1} parent=11 // pred_region
          %s295 = ssub.s32 4096, 4096
          %296 = vsyncadd [#allocation10], %s295
          %s297 = sshll.u32 [#allocation11], 4
          %s298 = int_to_ptr.vmem [resolvable:$true] %s297
          %303 = dma.hbm_to_vmem [thread:$0]  %s4, 4096, %s298, [#allocation10], 256, 256, 16
        $region20: #{tpu_custom_call.1} parent=11 // pred_fallthru
          _
        // Predicated region
        $region21: #{tpu_custom_call.1} parent=11 // pred_check
          %p304 = pneg %p188
        $region22: #{tpu_custom_call.1} parent=11 // pred_check_branch
          %306 = sbr.rel (%p304) target = $region24
        $region23: #{tpu_custom_call.1} parent=11 // pred_region
          %s308 = ssub.s32 1024, 1024
          %309 = vsyncadd [#allocation13], %s308
          %s310 = sshll.u32 [#allocation12], 4
          %s311 = int_to_ptr.vmem [resolvable:$true] %s310
          %316 = dma.hbm_to_vmem [thread:$0]  %s5, 1024, %s311, [#allocation13], 64, 64, 4
        $region24: #{tpu_custom_call.1} parent=11 // pred_fallthru
          _
        // Predicated region
        $region25: #{tpu_custom_call.1} parent=11 // pred_check
          %p317 = pneg %p209
        $region26: #{tpu_custom_call.1} parent=11 // pred_check_branch
          %319 = sbr.rel (%p317) target = $region28
        $region27: #{tpu_custom_call.1} parent=11 // pred_region
          %s321 = ssub.s32 64, 64
          %322 = vsyncadd [#allocation13], %s321
          %s324 = sshll.u32 [#allocation14], 4
          %s325 = int_to_ptr.vmem [resolvable:$true] %s324
          %327 = dma.hbm_to_vmem [thread:$0]  %s6, 64, %s325, [#allocation13]
        $region28: #{tpu_custom_call.1} parent=11 // pred_fallthru
          _
      $region12: #{tpu_custom_call.1} parent=5 // pred_fallthru
        _
      %p328 = scmp.lt.s32.totalorder %s29, 2
      // Predicated region
      $region29: #{tpu_custom_call.1} parent=5 // pred_check
        %p329 = pneg %p328
      $region30: #{tpu_custom_call.1} parent=5 // pred_check_branch
        %331 = sbr.rel (%p329) target = $region32
      $region31: #{tpu_custom_call.1} parent=5 // pred_region
        // Predicated region
        $region33: #{tpu_custom_call.1} parent=31 // pred_check
          %p332 = pneg %p63
        $region34: #{tpu_custom_call.1} parent=31 // pred_check_branch
          %334 = sbr.rel (%p332) target = $region36
        $region35: #{tpu_custom_call.1} parent=31 // pred_region
          %s335 = sand.u32 %s53, 1
          %s336 = scalar_lea.sflag [#allocation4], %s335
          %s337 = sand.u32 %s53, 1
          %s338 = smul.addr %s337, 256
          %s339 = scalar_lea.vmem [#allocation3], %s338
          %s340 = sadd.s32 %s36, %s37
          %s341 = smul.u32 32, %s340
          %s343 = ssub.s32 4096, 4096
          %344 = vsyncadd %s336, %s343
          %s345 = smul.addr %s341, 128
          %s346 = scalar_lea.hbm %s0, %s345
          %s347 = sshll.u32 %s339, 4
          %s348 = int_to_ptr.vmem [resolvable:$true] %s347
          %353 = dma.hbm_to_vmem [thread:$0]  %s346, 4096, %s348, %s336, 128, 128, 8
        $region36: #{tpu_custom_call.1} parent=31 // pred_fallthru
          _
        // Predicated region
        $region37: #{tpu_custom_call.1} parent=31 // pred_check
          %p354 = pneg %p91
        $region38: #{tpu_custom_call.1} parent=31 // pred_check_branch
          %356 = sbr.rel (%p354) target = $region40
        $region39: #{tpu_custom_call.1} parent=31 // pred_region
          %s357 = sand.u32 %s29, 1
          %s358 = scalar_lea.sflag [#allocation7], %s357
          %s359 = sand.u32 %s81, 1
          %s360 = smul.addr %s359, 128
          %s361 = scalar_lea.vmem [#allocation6], %s360
          %s362 = sadd.s32 %s36, %s37
          %s363 = smul.u32 32, %s362
          %s365 = ssub.s32 2048, 2048
          %366 = vsyncadd %s358, %s365
          %s367 = smul.addr %s363, 64
          %s368 = scalar_lea.hbm %s1, %s367
          %s369 = sshll.u32 %s361, 4
          %s370 = int_to_ptr.vmem [resolvable:$true] %s369
          %375 = dma.hbm_to_vmem [thread:$0]  %s368, 2048, %s370, %s358, 64, 64, 4
        $region40: #{tpu_custom_call.1} parent=31 // pred_fallthru
          _
        // Predicated region
        $region41: #{tpu_custom_call.1} parent=31 // pred_check
          %p376 = pneg %p119
        $region42: #{tpu_custom_call.1} parent=31 // pred_check_branch
          %378 = sbr.rel (%p376) target = $region44
        $region43: #{tpu_custom_call.1} parent=31 // pred_region
          %s379 = sand.u32 %s29, 1
          %s380 = scalar_lea.sflag [#allocation7], %s379
          %s381 = sand.u32 %s109, 1
          %s382 = smul.addr %s381, 256
          %s383 = scalar_lea.vmem [#allocation8], %s382
          %s384 = sadd.s32 %s36, %s37
          %s385 = smul.u32 32, %s384
          %s387 = ssub.s32 4096, 4096
          %388 = vsyncadd %s380, %s387
          %s389 = smul.addr %s385, 128
          %s390 = scalar_lea.hbm %s2, %s389
          %s391 = sshll.u32 %s383, 4
          %s392 = int_to_ptr.vmem [resolvable:$true] %s391
          %397 = dma.hbm_to_vmem [thread:$0]  %s390, 4096, %s392, %s380, 128, 128, 8
        $region44: #{tpu_custom_call.1} parent=31 // pred_fallthru
          _
      $region32: #{tpu_custom_call.1} parent=5 // pred_fallthru
        _
      %p398 = scmp.le.s32.totalorder 1, %s29
      %p399 = scmp.lt.s32.totalorder %s29, 3
      %p400 = pnand %p398, %p399
      %p401 = pneg %p400
      // Predicated region
      $region45: #{tpu_custom_call.1} parent=5 // pred_check
        _
      $region46: #{tpu_custom_call.1} parent=5 // pred_check_branch
        %403 = sbr.rel (%p400) target = $region48
      $region47: #{tpu_custom_call.1} parent=5 // pred_region
        %s404 = ssub.s32 %s29, 1
        %s405 = sand.u32 %s56, 1
        %s406 = scalar_lea.sflag [#allocation4], %s405
        %s407 = sand.u32 %s56, 1
        %s408 = smul.addr %s407, 256
        %s409 = scalar_lea.vmem [#allocation3], %s408
        // Predicated region
        $region49: #{tpu_custom_call.1} parent=47 // pred_check
          %p410 = pneg %p69
        $region50: #{tpu_custom_call.1} parent=47 // pred_check_branch
          %412 = sbr.rel (%p410) target = $region52
        $region51: #{tpu_custom_call.1} parent=47 // pred_region
          %413 = dma.done %s406, 4096
        $region52: #{tpu_custom_call.1} parent=47 // pred_fallthru
          _
        %s414 = sand.u32 %s34, 1
        %s415 = scalar_lea.sflag [#allocation7], %s414
        %s416 = sand.u32 %s84, 1
        %s417 = smul.addr %s416, 128
        %s418 = scalar_lea.vmem [#allocation6], %s417
        // Predicated region
        $region53: #{tpu_custom_call.1} parent=47 // pred_check
          %p419 = pneg %p97
        $region54: #{tpu_custom_call.1} parent=47 // pred_check_branch
          %421 = sbr.rel (%p419) target = $region56
        $region55: #{tpu_custom_call.1} parent=47 // pred_region
          %422 = dma.done %s415, 2048
        $region56: #{tpu_custom_call.1} parent=47 // pred_fallthru
          _
        %s423 = sand.u32 %s34, 1
        %s424 = scalar_lea.sflag [#allocation7], %s423
        %s425 = sand.u32 %s112, 1
        %s426 = smul.addr %s425, 256
        %s427 = scalar_lea.vmem [#allocation8], %s426
        // Predicated region
        $region57: #{tpu_custom_call.1} parent=47 // pred_check
          %p428 = pneg %p125
        $region58: #{tpu_custom_call.1} parent=47 // pred_check_branch
          %430 = sbr.rel (%p428) target = $region60
        $region59: #{tpu_custom_call.1} parent=47 // pred_region
          %431 = dma.done %s424, 4096
        $region60: #{tpu_custom_call.1} parent=47 // pred_fallthru
          _
        // Predicated region
        $region61: #{tpu_custom_call.1} parent=47 // pred_check
          %p432 = pneg %p146
        $region62: #{tpu_custom_call.1} parent=47 // pred_check_branch
          %434 = sbr.rel (%p432) target = $region64
        $region63: #{tpu_custom_call.1} parent=47 // pred_region
          %435 = dma.done [#allocation10], 1024
        $region64: #{tpu_custom_call.1} parent=47 // pred_fallthru
          _
        // Predicated region
        $region65: #{tpu_custom_call.1} parent=47 // pred_check
          %p436 = pneg %p167
        $region66: #{tpu_custom_call.1} parent=47 // pred_check_branch
          %438 = sbr.rel (%p436) target = $region68
        $region67: #{tpu_custom_call.1} parent=47 // pred_region
          %439 = dma.done [#allocation10], 4096
        $region68: #{tpu_custom_call.1} parent=47 // pred_fallthru
          _
        // Predicated region
        $region69: #{tpu_custom_call.1} parent=47 // pred_check
          %p440 = pneg %p188
        $region70: #{tpu_custom_call.1} parent=47 // pred_check_branch
          %442 = sbr.rel (%p440) target = $region72
        $region71: #{tpu_custom_call.1} parent=47 // pred_region
          %443 = dma.done [#allocation13], 1024
        $region72: #{tpu_custom_call.1} parent=47 // pred_fallthru
          _
        // Predicated region
        $region73: #{tpu_custom_call.1} parent=47 // pred_check
          %p444 = pneg %p209
        $region74: #{tpu_custom_call.1} parent=47 // pred_check_branch
          %446 = sbr.rel (%p444) target = $region76
        $region75: #{tpu_custom_call.1} parent=47 // pred_region
          %447 = dma.done [#allocation13], 64
        $region76: #{tpu_custom_call.1} parent=47 // pred_fallthru
          _
        %s448 = sand.u32 %s56, 1
        %s449 = scalar_lea.sflag [#allocation4], %s448
        %s450 = sand.u32 %s56, 1
        %s451 = smul.addr %s450, 256
        %s452 = scalar_lea.vmem [#allocation3], %s451
        %p453 = pneg %p69
        %p454 = pneg %p66
        %s455 = sand.u32 %s34, 1
        %s456 = scalar_lea.sflag [#allocation7], %s455
        %s457 = sand.u32 %s84, 1
        %s458 = smul.addr %s457, 128
        %s459 = scalar_lea.vmem [#allocation6], %s458
        %p460 = pneg %p97
        %p461 = pneg %p94
        %s462 = sand.u32 %s34, 1
        %s463 = scalar_lea.sflag [#allocation7], %s462
        %s464 = sand.u32 %s112, 1
        %s465 = smul.addr %s464, 256
        %s466 = scalar_lea.vmem [#allocation8], %s465
        %p467 = pneg %p125
        %p468 = pneg %p122
        %p469 = pneg %p146
        %p470 = pneg %p143
        %p471 = pneg %p167
        %p472 = pneg %p164
        %p473 = pneg %p188
        %p474 = pneg %p185
        %p475 = pneg %p209
        %p476 = pneg %p206
        %p477 = pneg %p237
        %p478 = pneg %p234
        %s479 = sand.u32 %s224, 1
        %s480 = scalar_lea.sflag [#allocation5], %s479
        %s481 = sand.u32 %s224, 1
        %s482 = smul.addr %s481, 128
        %s483 = scalar_lea.vmem [#allocation15], %s482
        %p484 = pneg %p263
        %p485 = pneg %p260
        %s486 = sand.u32 %s250, 1
        %s487 = scalar_lea.sflag [#allocation17], %s486
        %s488 = sand.u32 %s250, 1
        %s489 = smul.addr %s488, 128
        %s490 = scalar_lea.vmem [#allocation16], %s489
        %s491 = sadd.s32 %s38, %s39
        %s492 = smul.u32 32, %s491
        %s493 = sadd.s32 %s38, %s39
        %s494 = smul.u32 32, %s493
        %s495 = sadd.s32 %s38, %s39
        %s496 = smul.u32 32, %s495
        %s497 = sadd.s32 %s38, %s39
        %s498 = smul.u32 32, %s497
        %p500 = scmp.eq.s32.totalorder %s39, 0
        // Predicated region
        $region77: #{tpu_custom_call.1} parent=47 // pred_check
          %p501 = pneg %p500
        $region78: #{tpu_custom_call.1} parent=47 // pred_check_branch
          %503 = sbr.rel (%p501) target = $region80
        $region79: #{tpu_custom_call.1} parent=47 // pred_region
          %504 = vst [vmem:[%s490] sm:$0xff] 0.0
          %505 = vst [vmem:[%s490 + $0x8] sm:$0xff] 0.0
          %506 = vst [vmem:[%s490 + $0x10] sm:$0xff] 0.0
          %507 = vst [vmem:[%s490 + $0x18] sm:$0xff] 0.0
          %508 = vst [vmem:[%s490 + $0x20] sm:$0xff] 0.0
          %509 = vst [vmem:[%s490 + $0x28] sm:$0xff] 0.0
          %510 = vst [vmem:[%s490 + $0x30] sm:$0xff] 0.0
          %511 = vst [vmem:[%s490 + $0x38] sm:$0xff] 0.0
          %512 = vst [vmem:[%s490 + $0x40] sm:$0xff] 0.0
          %513 = vst [vmem:[%s490 + $0x48] sm:$0xff] 0.0
          %514 = vst [vmem:[%s490 + $0x50] sm:$0xff] 0.0
          %515 = vst [vmem:[%s490 + $0x58] sm:$0xff] 0.0
          %516 = vst [vmem:[%s490 + $0x60] sm:$0xff] 0.0
          %517 = vst [vmem:[%s490 + $0x68] sm:$0xff] 0.0
          %518 = vst [vmem:[%s490 + $0x70] sm:$0xff] 0.0
          %519 = vst [vmem:[%s490 + $0x78] sm:$0xff] 0.0
          %v520 = vld [vmem:[#allocation14] sm:$0xf]
          %v521 = vld [vmem:[#allocation9] sm:$0xf]
          %v522 = vld [vmem:[#allocation9 + $0x4] sm:$0xf]
          %v523 = vld [vmem:[#allocation9 + $0x8] sm:$0xf]
          %v524 = vld [vmem:[#allocation9 + $0xc] sm:$0xf]
          %v525 = vld [vmem:[#allocation9 + $0x10] sm:$0xf]
          %v526 = vld [vmem:[#allocation9 + $0x14] sm:$0xf]
          %v527 = vld [vmem:[#allocation9 + $0x18] sm:$0xf]
          %v528 = vld [vmem:[#allocation9 + $0x1c] sm:$0xf]
          %v529 = vld [vmem:[#allocation9 + $0x20] sm:$0xf]
          %v530 = vld [vmem:[#allocation9 + $0x24] sm:$0xf]
          %v531 = vld [vmem:[#allocation9 + $0x28] sm:$0xf]
          %v532 = vld [vmem:[#allocation9 + $0x2c] sm:$0xf]
          %v533 = vld [vmem:[#allocation9 + $0x30] sm:$0xf]
          %v534 = vld [vmem:[#allocation9 + $0x34] sm:$0xf]
          %v535 = vld [vmem:[#allocation9 + $0x38] sm:$0xf]
          %v536 = vld [vmem:[#allocation9 + $0x3c] sm:$0xf]
          %v553 = vunpack.c.l.b16 %v521
          %v554 = vunpack.c.l.b16 %v522
          %v555 = vunpack.c.l.b16 %v523
          %v556 = vunpack.c.l.b16 %v524
          %v557 = vunpack.c.l.b16 %v525
          %v558 = vunpack.c.l.b16 %v526
          %v559 = vunpack.c.l.b16 %v527
          %v560 = vunpack.c.l.b16 %v528
          %v561 = vunpack.c.l.b16 %v529
          %v562 = vunpack.c.l.b16 %v530
          %v563 = vunpack.c.l.b16 %v531
          %v564 = vunpack.c.l.b16 %v532
          %v565 = vunpack.c.l.b16 %v533
          %v566 = vunpack.c.l.b16 %v534
          %v567 = vunpack.c.l.b16 %v535
          %v568 = vunpack.c.l.b16 %v536
          %v569 = vpack.c.b16 %v554, %v553
          %v570 = vpack.c.b16 %v556, %v555
          %v571 = vpack.c.b16 %v558, %v557
          %v572 = vpack.c.b16 %v560, %v559
          %v573 = vpack.c.b16 %v562, %v561
          %v574 = vpack.c.b16 %v564, %v563
          %v575 = vpack.c.b16 %v566, %v565
          %v576 = vpack.c.b16 %v568, %v567
          %585 = vmatprep.subr.bf16.mxu0 0
          %586 = vmatpush1.bf16.xpose.msra.mxu0 %v569
          %587 = vmatprep.subr.bf16.mxu0 0
          %588 = vmatpush1.bf16.xpose.msra.mxu0 %v570
          %589 = vmatprep.subr.bf16.mxu0 0
          %590 = vmatpush1.bf16.xpose.msra.mxu0 %v571
          %591 = vmatprep.subr.bf16.mxu0 0
          %592 = vmatpush1.bf16.xpose.msra.mxu0 %v572
          %593 = vmatprep.subr.bf16.mxu0 0
          %594 = vmatpush1.bf16.xpose.msra.mxu0 %v573
          %595 = vmatprep.subr.bf16.mxu0 0
          %596 = vmatpush1.bf16.xpose.msra.mxu0 %v574
          %597 = vmatprep.subr.bf16.mxu0 0
          %598 = vmatpush1.bf16.xpose.msra.mxu0 %v575
          %599 = vmatprep.subr.bf16.mxu0 0
          %600 = vmatpush1.bf16.xpose.msra.mxu0 %v576
          %601 = vmatprep.subr.bf16.mxu0 0
          %602 = vmatpush1.bf16.xpose.msra.mxu0 0
          %603 = vmatprep.subr.bf16.mxu0 0
          %604 = vmatpush1.bf16.xpose.msra.mxu0 0
          %605 = vmatprep.subr.bf16.mxu0 0
          %606 = vmatpush1.bf16.xpose.msra.mxu0 0
          %607 = vmatprep.subr.bf16.mxu0 0
          %608 = vmatpush1.bf16.xpose.msra.mxu0 0
          %609 = vmatprep.subr.bf16.mxu0 0
          %610 = vmatpush1.bf16.xpose.msra.mxu0 0
          %611 = vmatprep.subr.bf16.mxu0 0
          %612 = vmatpush1.bf16.xpose.msra.mxu0 0
          %613 = vmatprep.subr.bf16.mxu0 0
          %614 = vmatpush1.bf16.xpose.msra.mxu0 0
          %615 = vmatprep.subr.bf16.mxu0 0
          %616 = vmatpush1.bf16.xpose.msra.mxu0 0
          %617 = vmatprep.mubr.bf16.mxu0 0
          %618 = vmatmul.mubr.bf16.gmra.mrb[0].mxu0 %v520
          %v619 = vpop.f32.mrb[0].mxu0
          %v620 = vadd.f32 0.0, %v619
          %v621 = vpop.f32.mrb[0].mxu0
          %v622 = vpop.f32.mrb[0].mxu0
          %v623 = vpop.f32.mrb[0].mxu0
          %624 = vdwg.mxu0
          %625 = vst [vmem:[#allocation2] sm:$0xff] %v620
        $region80: #{tpu_custom_call.1} parent=47 // pred_fallthru
          _
        %v626 = vld [vmem:[%s409] sm:$0xff]
        %v627 = vld [vmem:[%s409 + $0x8] sm:$0xff]
        %v628 = vld [vmem:[%s409 + $0x10] sm:$0xff]
        %v629 = vld [vmem:[%s409 + $0x18] sm:$0xff]
        %v630 = vld [vmem:[%s409 + $0x20] sm:$0xff]
        %v631 = vld [vmem:[%s409 + $0x28] sm:$0xff]
        %v632 = vld [vmem:[%s409 + $0x30] sm:$0xff]
        %v633 = vld [vmem:[%s409 + $0x38] sm:$0xff]
        %v634 = vld [vmem:[%s409 + $0x40] sm:$0xff]
        %v635 = vld [vmem:[%s409 + $0x48] sm:$0xff]
        %v636 = vld [vmem:[%s409 + $0x50] sm:$0xff]
        %v637 = vld [vmem:[%s409 + $0x58] sm:$0xff]
        %v638 = vld [vmem:[%s409 + $0x60] sm:$0xff]
        %v639 = vld [vmem:[%s409 + $0x68] sm:$0xff]
        %v640 = vld [vmem:[%s409 + $0x70] sm:$0xff]
        %v641 = vld [vmem:[%s409 + $0x78] sm:$0xff]
        %v642 = vld [vmem:[%s409 + $0x80] sm:$0xff]
        %v643 = vld [vmem:[%s409 + $0x88] sm:$0xff]
        %v644 = vld [vmem:[%s409 + $0x90] sm:$0xff]
        %v645 = vld [vmem:[%s409 + $0x98] sm:$0xff]
        %v646 = vld [vmem:[%s409 + $0xa0] sm:$0xff]
        %v647 = vld [vmem:[%s409 + $0xa8] sm:$0xff]
        %v648 = vld [vmem:[%s409 + $0xb0] sm:$0xff]
        %v649 = vld [vmem:[%s409 + $0xb8] sm:$0xff]
        %v650 = vld [vmem:[%s409 + $0xc0] sm:$0xff]
        %v651 = vld [vmem:[%s409 + $0xc8] sm:$0xff]
        %v652 = vld [vmem:[%s409 + $0xd0] sm:$0xff]
        %v653 = vld [vmem:[%s409 + $0xd8] sm:$0xff]
        %v654 = vld [vmem:[%s409 + $0xe0] sm:$0xff]
        %v655 = vld [vmem:[%s409 + $0xe8] sm:$0xff]
        %v656 = vld [vmem:[%s409 + $0xf0] sm:$0xff]
        %v657 = vld [vmem:[%s409 + $0xf8] sm:$0xff]
        %v658 = vpack.c.bf16 %v627, %v626
        %v659 = vpack.c.bf16 %v629, %v628
        %v660 = vpack.c.bf16 %v631, %v630
        %v661 = vpack.c.bf16 %v633, %v632
        %v662 = vpack.c.bf16 %v635, %v634
        %v663 = vpack.c.bf16 %v637, %v636
        %v664 = vpack.c.bf16 %v639, %v638
        %v665 = vpack.c.bf16 %v641, %v640
        %v666 = vpack.c.bf16 %v643, %v642
        %v667 = vpack.c.bf16 %v645, %v644
        %v668 = vpack.c.bf16 %v647, %v646
        %v669 = vpack.c.bf16 %v649, %v648
        %v670 = vpack.c.bf16 %v651, %v650
        %v671 = vpack.c.bf16 %v653, %v652
        %v672 = vpack.c.bf16 %v655, %v654
        %v673 = vpack.c.bf16 %v657, %v656
        %v674 = vld [vmem:[%s427] sm:$0xff]
        %v675 = vld [vmem:[%s427 + $0x8] sm:$0xff]
        %v676 = vld [vmem:[%s427 + $0x10] sm:$0xff]
        %v677 = vld [vmem:[%s427 + $0x18] sm:$0xff]
        %v678 = vld [vmem:[%s427 + $0x20] sm:$0xff]
        %v679 = vld [vmem:[%s427 + $0x28] sm:$0xff]
        %v680 = vld [vmem:[%s427 + $0x30] sm:$0xff]
        %v681 = vld [vmem:[%s427 + $0x38] sm:$0xff]
        %v682 = vld [vmem:[%s427 + $0x40] sm:$0xff]
        %v683 = vld [vmem:[%s427 + $0x48] sm:$0xff]
        %v684 = vld [vmem:[%s427 + $0x50] sm:$0xff]
        %v685 = vld [vmem:[%s427 + $0x58] sm:$0xff]
        %v686 = vld [vmem:[%s427 + $0x60] sm:$0xff]
        %v687 = vld [vmem:[%s427 + $0x68] sm:$0xff]
        %v688 = vld [vmem:[%s427 + $0x70] sm:$0xff]
        %v689 = vld [vmem:[%s427 + $0x78] sm:$0xff]
        %v690 = vld [vmem:[%s427 + $0x80] sm:$0xff]
        %v691 = vld [vmem:[%s427 + $0x88] sm:$0xff]
        %v692 = vld [vmem:[%s427 + $0x90] sm:$0xff]
        %v693 = vld [vmem:[%s427 + $0x98] sm:$0xff]
        %v694 = vld [vmem:[%s427 + $0xa0] sm:$0xff]
        %v695 = vld [vmem:[%s427 + $0xa8] sm:$0xff]
        %v696 = vld [vmem:[%s427 + $0xb0] sm:$0xff]
        %v697 = vld [vmem:[%s427 + $0xb8] sm:$0xff]
        %v698 = vld [vmem:[%s427 + $0xc0] sm:$0xff]
        %v699 = vld [vmem:[%s427 + $0xc8] sm:$0xff]
        %v700 = vld [vmem:[%s427 + $0xd0] sm:$0xff]
        %v701 = vld [vmem:[%s427 + $0xd8] sm:$0xff]
        %v702 = vld [vmem:[%s427 + $0xe0] sm:$0xff]
        %v703 = vld [vmem:[%s427 + $0xe8] sm:$0xff]
        %v704 = vld [vmem:[%s427 + $0xf0] sm:$0xff]
        %v705 = vld [vmem:[%s427 + $0xf8] sm:$0xff]
        %v706 = vpack.c.bf16 %v675, %v674
        %v707 = vpack.c.bf16 %v677, %v676
        %v708 = vpack.c.bf16 %v679, %v678
        %v709 = vpack.c.bf16 %v681, %v680
        %v710 = vpack.c.bf16 %v683, %v682
        %v711 = vpack.c.bf16 %v685, %v684
        %v712 = vpack.c.bf16 %v687, %v686
        %v713 = vpack.c.bf16 %v689, %v688
        %v714 = vpack.c.bf16 %v691, %v690
        %v715 = vpack.c.bf16 %v693, %v692
        %v716 = vpack.c.bf16 %v695, %v694
        %v717 = vpack.c.bf16 %v697, %v696
        %v718 = vpack.c.bf16 %v699, %v698
        %v719 = vpack.c.bf16 %v701, %v700
        %v720 = vpack.c.bf16 %v703, %v702
        %v721 = vpack.c.bf16 %v705, %v704
        %723 = vset.pattern.permute.xlu0 0
        %724 = vperm.xlu0 %723, %v706
        %v725 = vpop.permute.xlu0 %724
        %728 = vset.pattern.permute.xlu0 0
        %729 = vperm.xlu0 %728, %v707
        %v730 = vpop.permute.xlu0 %729
        %733 = vset.pattern.permute.xlu0 0
        %734 = vperm.xlu0 %733, %v708
        %v735 = vpop.permute.xlu0 %734
        %738 = vset.pattern.permute.xlu0 0
        %739 = vperm.xlu0 %738, %v709
        %v740 = vpop.permute.xlu0 %739
        %743 = vset.pattern.permute.xlu0 0
        %744 = vperm.xlu0 %743, %v710
        %v745 = vpop.permute.xlu0 %744
        %748 = vset.pattern.permute.xlu0 0
        %749 = vperm.xlu0 %748, %v711
        %v750 = vpop.permute.xlu0 %749
        %753 = vset.pattern.permute.xlu0 0
        %754 = vperm.xlu0 %753, %v712
        %v755 = vpop.permute.xlu0 %754
        %758 = vset.pattern.permute.xlu0 0
        %759 = vperm.xlu0 %758, %v713
        %v760 = vpop.permute.xlu0 %759
        %763 = vset.pattern.permute.xlu0 0
        %764 = vperm.xlu0 %763, %v714
        %v765 = vpop.permute.xlu0 %764
        %768 = vset.pattern.permute.xlu0 0
        %769 = vperm.xlu0 %768, %v715
        %v770 = vpop.permute.xlu0 %769
        %773 = vset.pattern.permute.xlu0 0
        %774 = vperm.xlu0 %773, %v716
        %v775 = vpop.permute.xlu0 %774
        %778 = vset.pattern.permute.xlu0 0
        %779 = vperm.xlu0 %778, %v717
        %v780 = vpop.permute.xlu0 %779
        %783 = vset.pattern.permute.xlu0 0
        %784 = vperm.xlu0 %783, %v718
        %v785 = vpop.permute.xlu0 %784
        %788 = vset.pattern.permute.xlu0 0
        %789 = vperm.xlu0 %788, %v719
        %v790 = vpop.permute.xlu0 %789
        %793 = vset.pattern.permute.xlu0 0
        %794 = vperm.xlu0 %793, %v720
        %v795 = vpop.permute.xlu0 %794
        %798 = vset.pattern.permute.xlu0 0
        %799 = vperm.xlu0 %798, %v721
        %v800 = vpop.permute.xlu0 %799
        %v802 = vmul.bf16 %v658, %v725
        %v803 = vmul.bf16 %v659, %v730
        %v804 = vmul.bf16 %v660, %v735
        %v805 = vmul.bf16 %v661, %v740
        %v806 = vmul.bf16 %v662, %v745
        %v807 = vmul.bf16 %v663, %v750
        %v808 = vmul.bf16 %v664, %v755
        %v809 = vmul.bf16 %v665, %v760
        %v810 = vmul.bf16 %v666, %v765
        %v811 = vmul.bf16 %v667, %v770
        %v812 = vmul.bf16 %v668, %v775
        %v813 = vmul.bf16 %v669, %v780
        %v814 = vmul.bf16 %v670, %v785
        %v815 = vmul.bf16 %v671, %v790
        %v816 = vmul.bf16 %v672, %v795
        %v817 = vmul.bf16 %v673, %v800
        %v818 = vld [vmem:[%s418] sm:$0xf]
        %v819 = vld [vmem:[%s418 + $0x4] sm:$0xf]
        %v820 = vld [vmem:[%s418 + $0x8] sm:$0xf]
        %v821 = vld [vmem:[%s418 + $0xc] sm:$0xf]
        %v822 = vld [vmem:[%s418 + $0x10] sm:$0xf]
        %v823 = vld [vmem:[%s418 + $0x14] sm:$0xf]
        %v824 = vld [vmem:[%s418 + $0x18] sm:$0xf]
        %v825 = vld [vmem:[%s418 + $0x1c] sm:$0xf]
        %v826 = vld [vmem:[%s418 + $0x20] sm:$0xf]
        %v827 = vld [vmem:[%s418 + $0x24] sm:$0xf]
        %v828 = vld [vmem:[%s418 + $0x28] sm:$0xf]
        %v829 = vld [vmem:[%s418 + $0x2c] sm:$0xf]
        %v830 = vld [vmem:[%s418 + $0x30] sm:$0xf]
        %v831 = vld [vmem:[%s418 + $0x34] sm:$0xf]
        %v832 = vld [vmem:[%s418 + $0x38] sm:$0xf]
        %v833 = vld [vmem:[%s418 + $0x3c] sm:$0xf]
        %v834 = vld [vmem:[%s418 + $0x40] sm:$0xf]
        %v835 = vld [vmem:[%s418 + $0x44] sm:$0xf]
        %v836 = vld [vmem:[%s418 + $0x48] sm:$0xf]
        %v837 = vld [vmem:[%s418 + $0x4c] sm:$0xf]
        %v838 = vld [vmem:[%s418 + $0x50] sm:$0xf]
        %v839 = vld [vmem:[%s418 + $0x54] sm:$0xf]
        %v840 = vld [vmem:[%s418 + $0x58] sm:$0xf]
        %v841 = vld [vmem:[%s418 + $0x5c] sm:$0xf]
        %v842 = vld [vmem:[%s418 + $0x60] sm:$0xf]
        %v843 = vld [vmem:[%s418 + $0x64] sm:$0xf]
        %v844 = vld [vmem:[%s418 + $0x68] sm:$0xf]
        %v845 = vld [vmem:[%s418 + $0x6c] sm:$0xf]
        %v846 = vld [vmem:[%s418 + $0x70] sm:$0xf]
        %v847 = vld [vmem:[%s418 + $0x74] sm:$0xf]
        %v848 = vld [vmem:[%s418 + $0x78] sm:$0xf]
        %v849 = vld [vmem:[%s418 + $0x7c] sm:$0xf]
        %v850 = vunpack.c.l.bf16 %v818
        %v851 = vunpack.c.l.bf16 %v819
        %v852 = vunpack.c.l.bf16 %v820
        %v853 = vunpack.c.l.bf16 %v821
        %v854 = vunpack.c.l.bf16 %v822
        %v855 = vunpack.c.l.bf16 %v823
        %v856 = vunpack.c.l.bf16 %v824
        %v857 = vunpack.c.l.bf16 %v825
        %v858 = vunpack.c.l.bf16 %v826
        %v859 = vunpack.c.l.bf16 %v827
        %v860 = vunpack.c.l.bf16 %v828
        %v861 = vunpack.c.l.bf16 %v829
        %v862 = vunpack.c.l.bf16 %v830
        %v863 = vunpack.c.l.bf16 %v831
        %v864 = vunpack.c.l.bf16 %v832
        %v865 = vunpack.c.l.bf16 %v833
        %v866 = vunpack.c.l.bf16 %v834
        %v867 = vunpack.c.l.bf16 %v835
        %v868 = vunpack.c.l.bf16 %v836
        %v869 = vunpack.c.l.bf16 %v837
        %v870 = vunpack.c.l.bf16 %v838
        %v871 = vunpack.c.l.bf16 %v839
        %v872 = vunpack.c.l.bf16 %v840
        %v873 = vunpack.c.l.bf16 %v841
        %v874 = vunpack.c.l.bf16 %v842
        %v875 = vunpack.c.l.bf16 %v843
        %v876 = vunpack.c.l.bf16 %v844
        %v877 = vunpack.c.l.bf16 %v845
        %v878 = vunpack.c.l.bf16 %v846
        %v879 = vunpack.c.l.bf16 %v847
        %v880 = vunpack.c.l.bf16 %v848
        %v881 = vunpack.c.l.bf16 %v849
        %v882 = vld [vmem:[#allocation12] sm:$0xf]
        %v883 = vld [vmem:[#allocation12 + $0x4] sm:$0xf]
        %v884 = vld [vmem:[#allocation12 + $0x8] sm:$0xf]
        %v885 = vld [vmem:[#allocation12 + $0xc] sm:$0xf]
        %v886 = vld [vmem:[#allocation12 + $0x10] sm:$0xf]
        %v887 = vld [vmem:[#allocation12 + $0x14] sm:$0xf]
        %v888 = vld [vmem:[#allocation12 + $0x18] sm:$0xf]
        %v889 = vld [vmem:[#allocation12 + $0x1c] sm:$0xf]
        %v890 = vld [vmem:[#allocation12 + $0x20] sm:$0xf]
        %v891 = vld [vmem:[#allocation12 + $0x24] sm:$0xf]
        %v892 = vld [vmem:[#allocation12 + $0x28] sm:$0xf]
        %v893 = vld [vmem:[#allocation12 + $0x2c] sm:$0xf]
        %v894 = vld [vmem:[#allocation12 + $0x30] sm:$0xf]
        %v895 = vld [vmem:[#allocation12 + $0x34] sm:$0xf]
        %v896 = vld [vmem:[#allocation12 + $0x38] sm:$0xf]
        %v897 = vld [vmem:[#allocation12 + $0x3c] sm:$0xf]
        %v914 = vunpack.c.l.b16 %v882
        %v915 = vunpack.c.l.b16 %v883
        %v916 = vunpack.c.l.b16 %v884
        %v917 = vunpack.c.l.b16 %v885
        %v918 = vunpack.c.l.b16 %v886
        %v919 = vunpack.c.l.b16 %v887
        %v920 = vunpack.c.l.b16 %v888
        %v921 = vunpack.c.l.b16 %v889
        %v922 = vunpack.c.l.b16 %v890
        %v923 = vunpack.c.l.b16 %v891
        %v924 = vunpack.c.l.b16 %v892
        %v925 = vunpack.c.l.b16 %v893
        %v926 = vunpack.c.l.b16 %v894
        %v927 = vunpack.c.l.b16 %v895
        %v928 = vunpack.c.l.b16 %v896
        %v929 = vunpack.c.l.b16 %v897
        %v930 = vpack.c.b16 %v915, %v914
        %v931 = vpack.c.b16 %v917, %v916
        %v932 = vpack.c.b16 %v919, %v918
        %v933 = vpack.c.b16 %v921, %v920
        %v934 = vpack.c.b16 %v923, %v922
        %v935 = vpack.c.b16 %v925, %v924
        %v936 = vpack.c.b16 %v927, %v926
        %v937 = vpack.c.b16 %v929, %v928
        %946 = vmatprep.subr.bf16.mxu0 0
        %947 = vmatpush1.bf16.msra.mxu0 %v930
        %948 = vmatprep.subr.bf16.mxu0 0
        %949 = vmatpush1.bf16.msra.mxu0 %v931
        %950 = vmatprep.subr.bf16.mxu0 0
        %951 = vmatpush1.bf16.msra.mxu0 %v932
        %952 = vmatprep.subr.bf16.mxu0 0
        %953 = vmatpush1.bf16.msra.mxu0 %v933
        %954 = vmatprep.subr.bf16.mxu0 0
        %955 = vmatpush1.bf16.msra.mxu0 %v934
        %956 = vmatprep.subr.bf16.mxu0 0
        %957 = vmatpush1.bf16.msra.mxu0 %v935
        %958 = vmatprep.subr.bf16.mxu0 0
        %959 = vmatpush1.bf16.msra.mxu0 %v936
        %960 = vmatprep.subr.bf16.mxu0 0
        %961 = vmatpush1.bf16.msra.mxu0 %v937
        %962 = vmatprep.subr.bf16.mxu0 0
        %963 = vmatpush1.bf16.msra.mxu0 0
        %964 = vmatprep.subr.bf16.mxu0 0
        %965 = vmatpush1.bf16.msra.mxu0 0
        %966 = vmatprep.subr.bf16.mxu0 0
        %967 = vmatpush1.bf16.msra.mxu0 0
        %968 = vmatprep.subr.bf16.mxu0 0
        %969 = vmatpush1.bf16.msra.mxu0 0
        %970 = vmatprep.subr.bf16.mxu0 0
        %971 = vmatpush1.bf16.msra.mxu0 0
        %972 = vmatprep.subr.bf16.mxu0 0
        %973 = vmatpush1.bf16.msra.mxu0 0
        %974 = vmatprep.subr.bf16.mxu0 0
        %975 = vmatpush1.bf16.msra.mxu0 0
        %976 = vmatprep.subr.bf16.mxu0 0
        %977 = vmatpush1.bf16.msra.mxu0 0
        %978 = vmatprep.mubr.bf16.mxu0 0
        %979 = vmatmul.mubr.bf16.gmra.mrb[0].mxu0 %v658
        %v980 = vpop.f32.mrb[0].mxu0
        %v981 = vadd.f32 0.0, %v980
        %v982 = vpop.f32.mrb[0].mxu0
        %v983 = vpop.f32.mrb[0].mxu0
        %v984 = vadd.f32 0.0, %v983
        %v985 = vpop.f32.mrb[0].mxu0
        %986 = vmatprep.mubr.bf16.mxu0 0
        %987 = vmatmul.mubr.bf16.gmra.mrb[0].mxu0 %v659
        %v988 = vpop.f32.mrb[0].mxu0
        %v989 = vadd.f32 0.0, %v988
        %v990 = vpop.f32.mrb[0].mxu0
        %v991 = vpop.f32.mrb[0].mxu0
        %v992 = vadd.f32 0.0, %v991
        %v993 = vpop.f32.mrb[0].mxu0
        %994 = vmatprep.mubr.bf16.mxu0 0
        %995 = vmatmul.mubr.bf16.gmra.mrb[0].mxu0 %v660
        %v996 = vpop.f32.mrb[0].mxu0
        %v997 = vadd.f32 0.0, %v996
        %v998 = vpop.f32.mrb[0].mxu0
        %v999 = vpop.f32.mrb[0].mxu0
        %v1000 = vadd.f32 0.0, %v999
        %v1001 = vpop.f32.mrb[0].mxu0
        %1002 = vmatprep.mubr.bf16.mxu0 0
        %1003 = vmatmul.mubr.bf16.gmra.mrb[0].mxu0 %v661
        %v1004 = vpop.f32.mrb[0].mxu0
        %v1005 = vadd.f32 0.0, %v1004
        %v1006 = vpop.f32.mrb[0].mxu0
        %v1007 = vpop.f32.mrb[0].mxu0
        %v1008 = vadd.f32 0.0, %v1007
        %v1009 = vpop.f32.mrb[0].mxu0
        %1010 = vmatprep.mubr.bf16.mxu0 0
        %1011 = vmatmul.mubr.bf16.gmra.mrb[0].mxu0 %v662
        %v1012 = vpop.f32.mrb[0].mxu0
        %v1013 = vadd.f32 0.0, %v1012
        %v1014 = vpop.f32.mrb[0].mxu0
        %v1015 = vpop.f32.mrb[0].mxu0
        %v1016 = vadd.f32 0.0, %v1015
        %v1017 = vpop.f32.mrb[0].mxu0
        %1018 = vmatprep.mubr.bf16.mxu0 0
        %1019 = vmatmul.mubr.bf16.gmra.mrb[0].mxu0 %v663
        %v1020 = vpop.f32.mrb[0].mxu0
        %v1021 = vadd.f32 0.0, %v1020
        %v1022 = vpop.f32.mrb[0].mxu0
        %v1023 = vpop.f32.mrb[0].mxu0
        %v1024 = vadd.f32 0.0, %v1023
        %v1025 = vpop.f32.mrb[0].mxu0
        %1026 = vmatprep.mubr.bf16.mxu0 0
        %1027 = vmatmul.mubr.bf16.gmra.mrb[0].mxu0 %v664
        %v1028 = vpop.f32.mrb[0].mxu0
        %v1029 = vadd.f32 0.0, %v1028
        %v1030 = vpop.f32.mrb[0].mxu0
        %v1031 = vpop.f32.mrb[0].mxu0
        %v1032 = vadd.f32 0.0, %v1031
        %v1033 = vpop.f32.mrb[0].mxu0
        %1034 = vmatprep.mubr.bf16.mxu0 0
        %1035 = vmatmul.mubr.bf16.gmra.mrb[0].mxu0 %v665
        %v1036 = vpop.f32.mrb[0].mxu0
        %v1037 = vadd.f32 0.0, %v1036
        %v1038 = vpop.f32.mrb[0].mxu0
        %v1039 = vpop.f32.mrb[0].mxu0
        %v1040 = vadd.f32 0.0, %v1039
        %v1041 = vpop.f32.mrb[0].mxu0
        %1042 = vmatprep.mubr.bf16.mxu0 0
        %1043 = vmatmul.mubr.bf16.gmra.mrb[0].mxu0 %v666
        %v1044 = vpop.f32.mrb[0].mxu0
        %v1045 = vadd.f32 0.0, %v1044
        %v1046 = vpop.f32.mrb[0].mxu0
        %v1047 = vpop.f32.mrb[0].mxu0
        %v1048 = vadd.f32 0.0, %v1047
        %v1049 = vpop.f32.mrb[0].mxu0
        %1050 = vmatprep.mubr.bf16.mxu0 0
        %1051 = vmatmul.mubr.bf16.gmra.mrb[0].mxu0 %v667
        %v1052 = vpop.f32.mrb[0].mxu0
        %v1053 = vadd.f32 0.0, %v1052
        %v1054 = vpop.f32.mrb[0].mxu0
        %v1055 = vpop.f32.mrb[0].mxu0
        %v1056 = vadd.f32 0.0, %v1055
        %v1057 = vpop.f32.mrb[0].mxu0
        %1058 = vmatprep.mubr.bf16.mxu0 0
        %1059 = vmatmul.mubr.bf16.gmra.mrb[0].mxu0 %v668
        %v1060 = vpop.f32.mrb[0].mxu0
        %v1061 = vadd.f32 0.0, %v1060
        %v1062 = vpop.f32.mrb[0].mxu0
        %v1063 = vpop.f32.mrb[0].mxu0
        %v1064 = vadd.f32 0.0, %v1063
        %v1065 = vpop.f32.mrb[0].mxu0
        %1066 = vmatprep.mubr.bf16.mxu0 0
        %1067 = vmatmul.mubr.bf16.gmra.mrb[0].mxu0 %v669
        %v1068 = vpop.f32.mrb[0].mxu0
        %v1069 = vadd.f32 0.0, %v1068
        %v1070 = vpop.f32.mrb[0].mxu0
        %v1071 = vpop.f32.mrb[0].mxu0
        %v1072 = vadd.f32 0.0, %v1071
        %v1073 = vpop.f32.mrb[0].mxu0
        %1074 = vmatprep.mubr.bf16.mxu0 0
        %1075 = vmatmul.mubr.bf16.gmra.mrb[0].mxu0 %v670
        %v1076 = vpop.f32.mrb[0].mxu0
        %v1077 = vadd.f32 0.0, %v1076
        %v1078 = vpop.f32.mrb[0].mxu0
        %v1079 = vpop.f32.mrb[0].mxu0
        %v1080 = vadd.f32 0.0, %v1079
        %v1081 = vpop.f32.mrb[0].mxu0
        %1082 = vmatprep.mubr.bf16.mxu0 0
        %1083 = vmatmul.mubr.bf16.gmra.mrb[0].mxu0 %v671
        %v1084 = vpop.f32.mrb[0].mxu0
        %v1085 = vadd.f32 0.0, %v1084
        %v1086 = vpop.f32.mrb[0].mxu0
        %v1087 = vpop.f32.mrb[0].mxu0
        %v1088 = vadd.f32 0.0, %v1087
        %v1089 = vpop.f32.mrb[0].mxu0
        %1090 = vmatprep.mubr.bf16.mxu0 0
        %1091 = vmatmul.mubr.bf16.gmra.mrb[0].mxu0 %v672
        %v1092 = vpop.f32.mrb[0].mxu0
        %v1093 = vadd.f32 0.0, %v1092
        %v1094 = vpop.f32.mrb[0].mxu0
        %v1095 = vpop.f32.mrb[0].mxu0
        %v1096 = vadd.f32 0.0, %v1095
        %v1097 = vpop.f32.mrb[0].mxu0
        %1098 = vmatprep.mubr.bf16.mxu0 0
        %1099 = vmatmul.mubr.bf16.gmra.mrb[0].mxu0 %v673
        %v1100 = vpop.f32.mrb[0].mxu0
        %v1101 = vadd.f32 0.0, %v1100
        %v1102 = vpop.f32.mrb[0].mxu0
        %v1103 = vpop.f32.mrb[0].mxu0
        %v1104 = vadd.f32 0.0, %v1103
        %v1105 = vpop.f32.mrb[0].mxu0
        %1106 = vdwg.mxu0
        %v1107 = vld [vmem:[#allocation2] sm:$0x1]
        %1109 = vset.pattern.permute.xlu0 0
        %1110 = vperm.xlu0 %1109, %v981
        %v1111 = vpop.permute.xlu0 %1110
        %1114 = vset.pattern.permute.xlu0 0
        %1115 = vperm.xlu0 %1114, %v984
        %v1116 = vpop.permute.xlu0 %1115
        %1119 = vset.pattern.permute.xlu0 0
        %1120 = vperm.xlu0 %1119, %v989
        %v1121 = vpop.permute.xlu0 %1120
        %1124 = vset.pattern.permute.xlu0 0
        %1125 = vperm.xlu0 %1124, %v992
        %v1126 = vpop.permute.xlu0 %1125
        %1129 = vset.pattern.permute.xlu0 0
        %1130 = vperm.xlu0 %1129, %v997
        %v1131 = vpop.permute.xlu0 %1130
        %1134 = vset.pattern.permute.xlu0 0
        %1135 = vperm.xlu0 %1134, %v1000
        %v1136 = vpop.permute.xlu0 %1135
        %1139 = vset.pattern.permute.xlu0 0
        %1140 = vperm.xlu0 %1139, %v1005
        %v1141 = vpop.permute.xlu0 %1140
        %1144 = vset.pattern.permute.xlu0 0
        %1145 = vperm.xlu0 %1144, %v1008
        %v1146 = vpop.permute.xlu0 %1145
        %1149 = vset.pattern.permute.xlu0 0
        %1150 = vperm.xlu0 %1149, %v1013
        %v1151 = vpop.permute.xlu0 %1150
        %1154 = vset.pattern.permute.xlu0 0
        %1155 = vperm.xlu0 %1154, %v1016
        %v1156 = vpop.permute.xlu0 %1155
        %1159 = vset.pattern.permute.xlu0 0
        %1160 = vperm.xlu0 %1159, %v1021
        %v1161 = vpop.permute.xlu0 %1160
        %1164 = vset.pattern.permute.xlu0 0
        %1165 = vperm.xlu0 %1164, %v1024
        %v1166 = vpop.permute.xlu0 %1165
        %1169 = vset.pattern.permute.xlu0 0
        %1170 = vperm.xlu0 %1169, %v1029
        %v1171 = vpop.permute.xlu0 %1170
        %1174 = vset.pattern.permute.xlu0 0
        %1175 = vperm.xlu0 %1174, %v1032
        %v1176 = vpop.permute.xlu0 %1175
        %1179 = vset.pattern.permute.xlu0 0
        %1180 = vperm.xlu0 %1179, %v1037
        %v1181 = vpop.permute.xlu0 %1180
        %1184 = vset.pattern.permute.xlu0 0
        %1185 = vperm.xlu0 %1184, %v1040
        %v1186 = vpop.permute.xlu0 %1185
        %1189 = vset.pattern.permute.xlu0 0
        %1190 = vperm.xlu0 %1189, %v1045
        %v1191 = vpop.permute.xlu0 %1190
        %1194 = vset.pattern.permute.xlu0 0
        %1195 = vperm.xlu0 %1194, %v1048
        %v1196 = vpop.permute.xlu0 %1195
        %1199 = vset.pattern.permute.xlu0 0
        %1200 = vperm.xlu0 %1199, %v1053
        %v1201 = vpop.permute.xlu0 %1200
        %1204 = vset.pattern.permute.xlu0 0
        %1205 = vperm.xlu0 %1204, %v1056
        %v1206 = vpop.permute.xlu0 %1205
        %1209 = vset.pattern.permute.xlu0 0
        %1210 = vperm.xlu0 %1209, %v1061
        %v1211 = vpop.permute.xlu0 %1210
        %1214 = vset.pattern.permute.xlu0 0
        %1215 = vperm.xlu0 %1214, %v1064
        %v1216 = vpop.permute.xlu0 %1215
        %1219 = vset.pattern.permute.xlu0 0
        %1220 = vperm.xlu0 %1219, %v1069
        %v1221 = vpop.permute.xlu0 %1220
        %1224 = vset.pattern.permute.xlu0 0
        %1225 = vperm.xlu0 %1224, %v1072
        %v1226 = vpop.permute.xlu0 %1225
        %1229 = vset.pattern.permute.xlu0 0
        %1230 = vperm.xlu0 %1229, %v1077
        %v1231 = vpop.permute.xlu0 %1230
        %1234 = vset.pattern.permute.xlu0 0
        %1235 = vperm.xlu0 %1234, %v1080
        %v1236 = vpop.permute.xlu0 %1235
        %1239 = vset.pattern.permute.xlu0 0
        %1240 = vperm.xlu0 %1239, %v1085
        %v1241 = vpop.permute.xlu0 %1240
        %1244 = vset.pattern.permute.xlu0 0
        %1245 = vperm.xlu0 %1244, %v1088
        %v1246 = vpop.permute.xlu0 %1245
        %1249 = vset.pattern.permute.xlu0 0
        %1250 = vperm.xlu0 %1249, %v1093
        %v1251 = vpop.permute.xlu0 %1250
        %1254 = vset.pattern.permute.xlu0 0
        %1255 = vperm.xlu0 %1254, %v1096
        %v1256 = vpop.permute.xlu0 %1255
        %1259 = vset.pattern.permute.xlu0 0
        %1260 = vperm.xlu0 %1259, %v1101
        %v1261 = vpop.permute.xlu0 %1260
        %1264 = vset.pattern.permute.xlu0 0
        %1265 = vperm.xlu0 %1264, %v1104
        %v1266 = vpop.permute.xlu0 %1265
        %v1268 = vlaneseq
        %v1269 = vshrl.u32 %v1268, 7
        %v1270 = vsub.s32 0, %v1269
        %v1271 = vrot.slane %v1107, %v1270
        %v1272 = vadd.f32 %v1111, %v1271
        %v1273 = vadd.f32 %v1116, %v1271
        %v1274 = vadd.f32 %v1121, %v1271
        %v1275 = vadd.f32 %v1126, %v1271
        %v1276 = vadd.f32 %v1131, %v1271
        %v1277 = vadd.f32 %v1136, %v1271
        %v1278 = vadd.f32 %v1141, %v1271
        %v1279 = vadd.f32 %v1146, %v1271
        %v1280 = vadd.f32 %v1151, %v1271
        %v1281 = vadd.f32 %v1156, %v1271
        %v1282 = vadd.f32 %v1161, %v1271
        %v1283 = vadd.f32 %v1166, %v1271
        %v1284 = vadd.f32 %v1171, %v1271
        %v1285 = vadd.f32 %v1176, %v1271
        %v1286 = vadd.f32 %v1181, %v1271
        %v1287 = vadd.f32 %v1186, %v1271
        %v1288 = vadd.f32 %v1191, %v1271
        %v1289 = vadd.f32 %v1196, %v1271
        %v1290 = vadd.f32 %v1201, %v1271
        %v1291 = vadd.f32 %v1206, %v1271
        %v1292 = vadd.f32 %v1211, %v1271
        %v1293 = vadd.f32 %v1216, %v1271
        %v1294 = vadd.f32 %v1221, %v1271
        %v1295 = vadd.f32 %v1226, %v1271
        %v1296 = vadd.f32 %v1231, %v1271
        %v1297 = vadd.f32 %v1236, %v1271
        %v1298 = vadd.f32 %v1241, %v1271
        %v1299 = vadd.f32 %v1246, %v1271
        %v1300 = vadd.f32 %v1251, %v1271
        %v1301 = vadd.f32 %v1256, %v1271
        %v1302 = vadd.f32 %v1261, %v1271
        %v1303 = vadd.f32 %v1266, %v1271
        %v1304 = vmax.f32 %v1272, 0.0
        %v1305 = vmax.f32 %v1273, 0.0
        %v1306 = vmax.f32 %v1274, 0.0
        %v1307 = vmax.f32 %v1275, 0.0
        %v1308 = vmax.f32 %v1276, 0.0
        %v1309 = vmax.f32 %v1277, 0.0
        %v1310 = vmax.f32 %v1278, 0.0
        %v1311 = vmax.f32 %v1279, 0.0
        %v1312 = vmax.f32 %v1280, 0.0
        %v1313 = vmax.f32 %v1281, 0.0
        %v1314 = vmax.f32 %v1282, 0.0
        %v1315 = vmax.f32 %v1283, 0.0
        %v1316 = vmax.f32 %v1284, 0.0
        %v1317 = vmax.f32 %v1285, 0.0
        %v1318 = vmax.f32 %v1286, 0.0
        %v1319 = vmax.f32 %v1287, 0.0
        %v1320 = vmax.f32 %v1288, 0.0
        %v1321 = vmax.f32 %v1289, 0.0
        %v1322 = vmax.f32 %v1290, 0.0
        %v1323 = vmax.f32 %v1291, 0.0
        %v1324 = vmax.f32 %v1292, 0.0
        %v1325 = vmax.f32 %v1293, 0.0
        %v1326 = vmax.f32 %v1294, 0.0
        %v1327 = vmax.f32 %v1295, 0.0
        %v1328 = vmax.f32 %v1296, 0.0
        %v1329 = vmax.f32 %v1297, 0.0
        %v1330 = vmax.f32 %v1298, 0.0
        %v1331 = vmax.f32 %v1299, 0.0
        %v1332 = vmax.f32 %v1300, 0.0
        %v1333 = vmax.f32 %v1301, 0.0
        %v1334 = vmax.f32 %v1302, 0.0
        %v1335 = vmax.f32 %v1303, 0.0
        %v1336 = vmul.f32 %v1304, %v850
        %v1337 = vmul.f32 %v1305, %v851
        %v1338 = vmul.f32 %v1306, %v852
        %v1339 = vmul.f32 %v1307, %v853
        %v1340 = vmul.f32 %v1308, %v854
        %v1341 = vmul.f32 %v1309, %v855
        %v1342 = vmul.f32 %v1310, %v856
        %v1343 = vmul.f32 %v1311, %v857
        %v1344 = vmul.f32 %v1312, %v858
        %v1345 = vmul.f32 %v1313, %v859
        %v1346 = vmul.f32 %v1314, %v860
        %v1347 = vmul.f32 %v1315, %v861
        %v1348 = vmul.f32 %v1316, %v862
        %v1349 = vmul.f32 %v1317, %v863
        %v1350 = vmul.f32 %v1318, %v864
        %v1351 = vmul.f32 %v1319, %v865
        %v1352 = vmul.f32 %v1320, %v866
        %v1353 = vmul.f32 %v1321, %v867
        %v1354 = vmul.f32 %v1322, %v868
        %v1355 = vmul.f32 %v1323, %v869
        %v1356 = vmul.f32 %v1324, %v870
        %v1357 = vmul.f32 %v1325, %v871
        %v1358 = vmul.f32 %v1326, %v872
        %v1359 = vmul.f32 %v1327, %v873
        %v1360 = vmul.f32 %v1328, %v874
        %v1361 = vmul.f32 %v1329, %v875
        %v1362 = vmul.f32 %v1330, %v876
        %v1363 = vmul.f32 %v1331, %v877
        %v1364 = vmul.f32 %v1332, %v878
        %v1365 = vmul.f32 %v1333, %v879
        %v1366 = vmul.f32 %v1334, %v880
        %v1367 = vmul.f32 %v1335, %v881
        %1368 = vmax.xlane.f32.xlu0 %v1336
        %v1369 = vpop.xlane.xlu0 %1368
        %1370 = vmax.xlane.f32.xlu0 %v1337
        %v1371 = vpop.xlane.xlu0 %1370
        %1372 = vmax.xlane.f32.xlu0 %v1338
        %v1373 = vpop.xlane.xlu0 %1372
        %1374 = vmax.xlane.f32.xlu0 %v1339
        %v1375 = vpop.xlane.xlu0 %1374
        %1376 = vmax.xlane.f32.xlu0 %v1340
        %v1377 = vpop.xlane.xlu0 %1376
        %1378 = vmax.xlane.f32.xlu0 %v1341
        %v1379 = vpop.xlane.xlu0 %1378
        %1380 = vmax.xlane.f32.xlu0 %v1342
        %v1381 = vpop.xlane.xlu0 %1380
        %1382 = vmax.xlane.f32.xlu0 %v1343
        %v1383 = vpop.xlane.xlu0 %1382
        %1384 = vmax.xlane.f32.xlu0 %v1344
        %v1385 = vpop.xlane.xlu0 %1384
        %1386 = vmax.xlane.f32.xlu0 %v1345
        %v1387 = vpop.xlane.xlu0 %1386
        %1388 = vmax.xlane.f32.xlu0 %v1346
        %v1389 = vpop.xlane.xlu0 %1388
        %1390 = vmax.xlane.f32.xlu0 %v1347
        %v1391 = vpop.xlane.xlu0 %1390
        %1392 = vmax.xlane.f32.xlu0 %v1348
        %v1393 = vpop.xlane.xlu0 %1392
        %1394 = vmax.xlane.f32.xlu0 %v1349
        %v1395 = vpop.xlane.xlu0 %1394
        %1396 = vmax.xlane.f32.xlu0 %v1350
        %v1397 = vpop.xlane.xlu0 %1396
        %1398 = vmax.xlane.f32.xlu0 %v1351
        %v1399 = vpop.xlane.xlu0 %1398
        %1400 = vmax.xlane.f32.xlu0 %v1352
        %v1401 = vpop.xlane.xlu0 %1400
        %1402 = vmax.xlane.f32.xlu0 %v1353
        %v1403 = vpop.xlane.xlu0 %1402
        %1404 = vmax.xlane.f32.xlu0 %v1354
        %v1405 = vpop.xlane.xlu0 %1404
        %1406 = vmax.xlane.f32.xlu0 %v1355
        %v1407 = vpop.xlane.xlu0 %1406
        %1408 = vmax.xlane.f32.xlu0 %v1356
        %v1409 = vpop.xlane.xlu0 %1408
        %1410 = vmax.xlane.f32.xlu0 %v1357
        %v1411 = vpop.xlane.xlu0 %1410
        %1412 = vmax.xlane.f32.xlu0 %v1358
        %v1413 = vpop.xlane.xlu0 %1412
        %1414 = vmax.xlane.f32.xlu0 %v1359
        %v1415 = vpop.xlane.xlu0 %1414
        %1416 = vmax.xlane.f32.xlu0 %v1360
        %v1417 = vpop.xlane.xlu0 %1416
        %1418 = vmax.xlane.f32.xlu0 %v1361
        %v1419 = vpop.xlane.xlu0 %1418
        %1420 = vmax.xlane.f32.xlu0 %v1362
        %v1421 = vpop.xlane.xlu0 %1420
        %1422 = vmax.xlane.f32.xlu0 %v1363
        %v1423 = vpop.xlane.xlu0 %1422
        %1424 = vmax.xlane.f32.xlu0 %v1364
        %v1425 = vpop.xlane.xlu0 %1424
        %1426 = vmax.xlane.f32.xlu0 %v1365
        %v1427 = vpop.xlane.xlu0 %1426
        %1428 = vmax.xlane.f32.xlu0 %v1366
        %v1429 = vpop.xlane.xlu0 %1428
        %1430 = vmax.xlane.f32.xlu0 %v1367
        %v1431 = vpop.xlane.xlu0 %1430
        %v1432 = vsub.f32 %v1336, %v1369
        %v1433 = vsub.f32 %v1337, %v1371
        %v1434 = vsub.f32 %v1338, %v1373
        %v1435 = vsub.f32 %v1339, %v1375
        %v1436 = vsub.f32 %v1340, %v1377
        %v1437 = vsub.f32 %v1341, %v1379
        %v1438 = vsub.f32 %v1342, %v1381
        %v1439 = vsub.f32 %v1343, %v1383
        %v1440 = vsub.f32 %v1344, %v1385
        %v1441 = vsub.f32 %v1345, %v1387
        %v1442 = vsub.f32 %v1346, %v1389
        %v1443 = vsub.f32 %v1347, %v1391
        %v1444 = vsub.f32 %v1348, %v1393
        %v1445 = vsub.f32 %v1349, %v1395
        %v1446 = vsub.f32 %v1350, %v1397
        %v1447 = vsub.f32 %v1351, %v1399
        %v1448 = vsub.f32 %v1352, %v1401
        %v1449 = vsub.f32 %v1353, %v1403
        %v1450 = vsub.f32 %v1354, %v1405
        %v1451 = vsub.f32 %v1355, %v1407
        %v1452 = vsub.f32 %v1356, %v1409
        %v1453 = vsub.f32 %v1357, %v1411
        %v1454 = vsub.f32 %v1358, %v1413
        %v1455 = vsub.f32 %v1359, %v1415
        %v1456 = vsub.f32 %v1360, %v1417
        %v1457 = vsub.f32 %v1361, %v1419
        %v1458 = vsub.f32 %v1362, %v1421
        %v1459 = vsub.f32 %v1363, %v1423
        %v1460 = vsub.f32 %v1364, %v1425
        %v1461 = vsub.f32 %v1365, %v1427
        %v1462 = vsub.f32 %v1366, %v1429
        %v1463 = vsub.f32 %v1367, %v1431
        %v1464 = vmul.f32 %v1432, 1.442695
        %v1465 = vpow.pop %v1464
        %v1466 = vmul.f32 %v1433, 1.442695
        %v1467 = vpow.pop %v1466
        %v1468 = vmul.f32 %v1434, 1.442695
        %v1469 = vpow.pop %v1468
        %v1470 = vmul.f32 %v1435, 1.442695
        %v1471 = vpow.pop %v1470
        %v1472 = vmul.f32 %v1436, 1.442695
        %v1473 = vpow.pop %v1472
        %v1474 = vmul.f32 %v1437, 1.442695
        %v1475 = vpow.pop %v1474
        %v1476 = vmul.f32 %v1438, 1.442695
        %v1477 = vpow.pop %v1476
        %v1478 = vmul.f32 %v1439, 1.442695
        %v1479 = vpow.pop %v1478
        %v1480 = vmul.f32 %v1440, 1.442695
        %v1481 = vpow.pop %v1480
        %v1482 = vmul.f32 %v1441, 1.442695
        %v1483 = vpow.pop %v1482
        %v1484 = vmul.f32 %v1442, 1.442695
        %v1485 = vpow.pop %v1484
        %v1486 = vmul.f32 %v1443, 1.442695
        %v1487 = vpow.pop %v1486
        %v1488 = vmul.f32 %v1444, 1.442695
        %v1489 = vpow.pop %v1488
        %v1490 = vmul.f32 %v1445, 1.442695
        %v1491 = vpow.pop %v1490
        %v1492 = vmul.f32 %v1446, 1.442695
        %v1493 = vpow.pop %v1492
        %v1494 = vmul.f32 %v1447, 1.442695
        %v1495 = vpow.pop %v1494
        %v1496 = vmul.f32 %v1448, 1.442695
        %v1497 = vpow.pop %v1496
        %v1498 = vmul.f32 %v1449, 1.442695
        %v1499 = vpow.pop %v1498
        %v1500 = vmul.f32 %v1450, 1.442695
        %v1501 = vpow.pop %v1500
        %v1502 = vmul.f32 %v1451, 1.442695
        %v1503 = vpow.pop %v1502
        %v1504 = vmul.f32 %v1452, 1.442695
        %v1505 = vpow.pop %v1504
        %v1506 = vmul.f32 %v1453, 1.442695
        %v1507 = vpow.pop %v1506
        %v1508 = vmul.f32 %v1454, 1.442695
        %v1509 = vpow.pop %v1508
        %v1510 = vmul.f32 %v1455, 1.442695
        %v1511 = vpow.pop %v1510
        %v1512 = vmul.f32 %v1456, 1.442695
        %v1513 = vpow.pop %v1512
        %v1514 = vmul.f32 %v1457, 1.442695
        %v1515 = vpow.pop %v1514
        %v1516 = vmul.f32 %v1458, 1.442695
        %v1517 = vpow.pop %v1516
        %v1518 = vmul.f32 %v1459, 1.442695
        %v1519 = vpow.pop %v1518
        %v1520 = vmul.f32 %v1460, 1.442695
        %v1521 = vpow.pop %v1520
        %v1522 = vmul.f32 %v1461, 1.442695
        %v1523 = vpow.pop %v1522
        %v1524 = vmul.f32 %v1462, 1.442695
        %v1525 = vpow.pop %v1524
        %v1526 = vmul.f32 %v1463, 1.442695
        %v1527 = vpow.pop %v1526
        %v1528 = vmul.f32 %v1465, %v850
        %v1529 = vmul.f32 %v1467, %v851
        %v1530 = vmul.f32 %v1469, %v852
        %v1531 = vmul.f32 %v1471, %v853
        %v1532 = vmul.f32 %v1473, %v854
        %v1533 = vmul.f32 %v1475, %v855
        %v1534 = vmul.f32 %v1477, %v856
        %v1535 = vmul.f32 %v1479, %v857
        %v1536 = vmul.f32 %v1481, %v858
        %v1537 = vmul.f32 %v1483, %v859
        %v1538 = vmul.f32 %v1485, %v860
        %v1539 = vmul.f32 %v1487, %v861
        %v1540 = vmul.f32 %v1489, %v862
        %v1541 = vmul.f32 %v1491, %v863
        %v1542 = vmul.f32 %v1493, %v864
        %v1543 = vmul.f32 %v1495, %v865
        %v1544 = vmul.f32 %v1497, %v866
        %v1545 = vmul.f32 %v1499, %v867
        %v1546 = vmul.f32 %v1501, %v868
        %v1547 = vmul.f32 %v1503, %v869
        %v1548 = vmul.f32 %v1505, %v870
        %v1549 = vmul.f32 %v1507, %v871
        %v1550 = vmul.f32 %v1509, %v872
        %v1551 = vmul.f32 %v1511, %v873
        %v1552 = vmul.f32 %v1513, %v874
        %v1553 = vmul.f32 %v1515, %v875
        %v1554 = vmul.f32 %v1517, %v876
        %v1555 = vmul.f32 %v1519, %v877
        %v1556 = vmul.f32 %v1521, %v878
        %v1557 = vmul.f32 %v1523, %v879
        %v1558 = vmul.f32 %v1525, %v880
        %v1559 = vmul.f32 %v1527, %v881
        %1560 = vadd.xlane.f32.xlu0 %v1528
        %v1561 = vpop.xlane.xlu0 %1560
        %1562 = vadd.xlane.f32.xlu0 %v1529
        %v1563 = vpop.xlane.xlu0 %1562
        %1564 = vadd.xlane.f32.xlu0 %v1530
        %v1565 = vpop.xlane.xlu0 %1564
        %1566 = vadd.xlane.f32.xlu0 %v1531
        %v1567 = vpop.xlane.xlu0 %1566
        %1568 = vadd.xlane.f32.xlu0 %v1532
        %v1569 = vpop.xlane.xlu0 %1568
        %1570 = vadd.xlane.f32.xlu0 %v1533
        %v1571 = vpop.xlane.xlu0 %1570
        %1572 = vadd.xlane.f32.xlu0 %v1534
        %v1573 = vpop.xlane.xlu0 %1572
        %1574 = vadd.xlane.f32.xlu0 %v1535
        %v1575 = vpop.xlane.xlu0 %1574
        %1576 = vadd.xlane.f32.xlu0 %v1536
        %v1577 = vpop.xlane.xlu0 %1576
        %1578 = vadd.xlane.f32.xlu0 %v1537
        %v1579 = vpop.xlane.xlu0 %1578
        %1580 = vadd.xlane.f32.xlu0 %v1538
        %v1581 = vpop.xlane.xlu0 %1580
        %1582 = vadd.xlane.f32.xlu0 %v1539
        %v1583 = vpop.xlane.xlu0 %1582
        %1584 = vadd.xlane.f32.xlu0 %v1540
        %v1585 = vpop.xlane.xlu0 %1584
        %1586 = vadd.xlane.f32.xlu0 %v1541
        %v1587 = vpop.xlane.xlu0 %1586
        %1588 = vadd.xlane.f32.xlu0 %v1542
        %v1589 = vpop.xlane.xlu0 %1588
        %1590 = vadd.xlane.f32.xlu0 %v1543
        %v1591 = vpop.xlane.xlu0 %1590
        %1592 = vadd.xlane.f32.xlu0 %v1544
        %v1593 = vpop.xlane.xlu0 %1592
        %1594 = vadd.xlane.f32.xlu0 %v1545
        %v1595 = vpop.xlane.xlu0 %1594
        %1596 = vadd.xlane.f32.xlu0 %v1546
        %v1597 = vpop.xlane.xlu0 %1596
        %1598 = vadd.xlane.f32.xlu0 %v1547
        %v1599 = vpop.xlane.xlu0 %1598
        %1600 = vadd.xlane.f32.xlu0 %v1548
        %v1601 = vpop.xlane.xlu0 %1600
        %1602 = vadd.xlane.f32.xlu0 %v1549
        %v1603 = vpop.xlane.xlu0 %1602
        %1604 = vadd.xlane.f32.xlu0 %v1550
        %v1605 = vpop.xlane.xlu0 %1604
        %1606 = vadd.xlane.f32.xlu0 %v1551
        %v1607 = vpop.xlane.xlu0 %1606
        %1608 = vadd.xlane.f32.xlu0 %v1552
        %v1609 = vpop.xlane.xlu0 %1608
        %1610 = vadd.xlane.f32.xlu0 %v1553
        %v1611 = vpop.xlane.xlu0 %1610
        %1612 = vadd.xlane.f32.xlu0 %v1554
        %v1613 = vpop.xlane.xlu0 %1612
        %1614 = vadd.xlane.f32.xlu0 %v1555
        %v1615 = vpop.xlane.xlu0 %1614
        %1616 = vadd.xlane.f32.xlu0 %v1556
        %v1617 = vpop.xlane.xlu0 %1616
        %1618 = vadd.xlane.f32.xlu0 %v1557
        %v1619 = vpop.xlane.xlu0 %1618
        %1620 = vadd.xlane.f32.xlu0 %v1558
        %v1621 = vpop.xlane.xlu0 %1620
        %1622 = vadd.xlane.f32.xlu0 %v1559
        %v1623 = vpop.xlane.xlu0 %1622
        %vm1624 = vcmp.gt.f32.partialorder %v1561, 0.0
        %vm1625 = vcmp.gt.f32.partialorder %v1563, 0.0
        %vm1626 = vcmp.gt.f32.partialorder %v1565, 0.0
        %vm1627 = vcmp.gt.f32.partialorder %v1567, 0.0
        %vm1628 = vcmp.gt.f32.partialorder %v1569, 0.0
        %vm1629 = vcmp.gt.f32.partialorder %v1571, 0.0
        %vm1630 = vcmp.gt.f32.partialorder %v1573, 0.0
        %vm1631 = vcmp.gt.f32.partialorder %v1575, 0.0
        %vm1632 = vcmp.gt.f32.partialorder %v1577, 0.0
        %vm1633 = vcmp.gt.f32.partialorder %v1579, 0.0
        %vm1634 = vcmp.gt.f32.partialorder %v1581, 0.0
        %vm1635 = vcmp.gt.f32.partialorder %v1583, 0.0
        %vm1636 = vcmp.gt.f32.partialorder %v1585, 0.0
        %vm1637 = vcmp.gt.f32.partialorder %v1587, 0.0
        %vm1638 = vcmp.gt.f32.partialorder %v1589, 0.0
        %vm1639 = vcmp.gt.f32.partialorder %v1591, 0.0
        %vm1640 = vcmp.gt.f32.partialorder %v1593, 0.0
        %vm1641 = vcmp.gt.f32.partialorder %v1595, 0.0
        %vm1642 = vcmp.gt.f32.partialorder %v1597, 0.0
        %vm1643 = vcmp.gt.f32.partialorder %v1599, 0.0
        %vm1644 = vcmp.gt.f32.partialorder %v1601, 0.0
        %vm1645 = vcmp.gt.f32.partialorder %v1603, 0.0
        %vm1646 = vcmp.gt.f32.partialorder %v1605, 0.0
        %vm1647 = vcmp.gt.f32.partialorder %v1607, 0.0
        %vm1648 = vcmp.gt.f32.partialorder %v1609, 0.0
        %vm1649 = vcmp.gt.f32.partialorder %v1611, 0.0
        %vm1650 = vcmp.gt.f32.partialorder %v1613, 0.0
        %vm1651 = vcmp.gt.f32.partialorder %v1615, 0.0
        %vm1652 = vcmp.gt.f32.partialorder %v1617, 0.0
        %vm1653 = vcmp.gt.f32.partialorder %v1619, 0.0
        %vm1654 = vcmp.gt.f32.partialorder %v1621, 0.0
        %vm1655 = vcmp.gt.f32.partialorder %v1623, 0.0
        %v1656 = vsel %vm1624, %v1561, 1.0
        %v1657 = vsel %vm1625, %v1563, 1.0
        %v1658 = vsel %vm1626, %v1565, 1.0
        %v1659 = vsel %vm1627, %v1567, 1.0
        %v1660 = vsel %vm1628, %v1569, 1.0
        %v1661 = vsel %vm1629, %v1571, 1.0
        %v1662 = vsel %vm1630, %v1573, 1.0
        %v1663 = vsel %vm1631, %v1575, 1.0
        %v1664 = vsel %vm1632, %v1577, 1.0
        %v1665 = vsel %vm1633, %v1579, 1.0
        %v1666 = vsel %vm1634, %v1581, 1.0
        %v1667 = vsel %vm1635, %v1583, 1.0
        %v1668 = vsel %vm1636, %v1585, 1.0
        %v1669 = vsel %vm1637, %v1587, 1.0
        %v1670 = vsel %vm1638, %v1589, 1.0
        %v1671 = vsel %vm1639, %v1591, 1.0
        %v1672 = vsel %vm1640, %v1593, 1.0
        %v1673 = vsel %vm1641, %v1595, 1.0
        %v1674 = vsel %vm1642, %v1597, 1.0
        %v1675 = vsel %vm1643, %v1599, 1.0
        %v1676 = vsel %vm1644, %v1601, 1.0
        %v1677 = vsel %vm1645, %v1603, 1.0
        %v1678 = vsel %vm1646, %v1605, 1.0
        %v1679 = vsel %vm1647, %v1607, 1.0
        %v1680 = vsel %vm1648, %v1609, 1.0
        %v1681 = vsel %vm1649, %v1611, 1.0
        %v1682 = vsel %vm1650, %v1613, 1.0
        %v1683 = vsel %vm1651, %v1615, 1.0
        %v1684 = vsel %vm1652, %v1617, 1.0
        %v1685 = vsel %vm1653, %v1619, 1.0
        %v1686 = vsel %vm1654, %v1621, 1.0
        %v1687 = vsel %vm1655, %v1623, 1.0
        %v1688 = vrcp.pop %v1656
        %v1689 = vrcp.pop %v1657
        %v1690 = vrcp.pop %v1658
        %v1691 = vrcp.pop %v1659
        %v1692 = vrcp.pop %v1660
        %v1693 = vrcp.pop %v1661
        %v1694 = vrcp.pop %v1662
        %v1695 = vrcp.pop %v1663
        %v1696 = vrcp.pop %v1664
        %v1697 = vrcp.pop %v1665
        %v1698 = vrcp.pop %v1666
        %v1699 = vrcp.pop %v1667
        %v1700 = vrcp.pop %v1668
        %v1701 = vrcp.pop %v1669
        %v1702 = vrcp.pop %v1670
        %v1703 = vrcp.pop %v1671
        %v1704 = vrcp.pop %v1672
        %v1705 = vrcp.pop %v1673
        %v1706 = vrcp.pop %v1674
        %v1707 = vrcp.pop %v1675
        %v1708 = vrcp.pop %v1676
        %v1709 = vrcp.pop %v1677
        %v1710 = vrcp.pop %v1678
        %v1711 = vrcp.pop %v1679
        %v1712 = vrcp.pop %v1680
        %v1713 = vrcp.pop %v1681
        %v1714 = vrcp.pop %v1682
        %v1715 = vrcp.pop %v1683
        %v1716 = vrcp.pop %v1684
        %v1717 = vrcp.pop %v1685
        %v1718 = vrcp.pop %v1686
        %v1719 = vrcp.pop %v1687
        %v1720 = vmul.f32 %v1528, %v1688
        %v1721 = vmul.f32 %v1529, %v1689
        %v1722 = vmul.f32 %v1530, %v1690
        %v1723 = vmul.f32 %v1531, %v1691
        %v1724 = vmul.f32 %v1532, %v1692
        %v1725 = vmul.f32 %v1533, %v1693
        %v1726 = vmul.f32 %v1534, %v1694
        %v1727 = vmul.f32 %v1535, %v1695
        %v1728 = vmul.f32 %v1536, %v1696
        %v1729 = vmul.f32 %v1537, %v1697
        %v1730 = vmul.f32 %v1538, %v1698
        %v1731 = vmul.f32 %v1539, %v1699
        %v1732 = vmul.f32 %v1540, %v1700
        %v1733 = vmul.f32 %v1541, %v1701
        %v1734 = vmul.f32 %v1542, %v1702
        %v1735 = vmul.f32 %v1543, %v1703
        %v1736 = vmul.f32 %v1544, %v1704
        %v1737 = vmul.f32 %v1545, %v1705
        %v1738 = vmul.f32 %v1546, %v1706
        %v1739 = vmul.f32 %v1547, %v1707
        %v1740 = vmul.f32 %v1548, %v1708
        %v1741 = vmul.f32 %v1549, %v1709
        %v1742 = vmul.f32 %v1550, %v1710
        %v1743 = vmul.f32 %v1551, %v1711
        %v1744 = vmul.f32 %v1552, %v1712
        %v1745 = vmul.f32 %v1553, %v1713
        %v1746 = vmul.f32 %v1554, %v1714
        %v1747 = vmul.f32 %v1555, %v1715
        %v1748 = vmul.f32 %v1556, %v1716
        %v1749 = vmul.f32 %v1557, %v1717
        %v1750 = vmul.f32 %v1558, %v1718
        %v1751 = vmul.f32 %v1559, %v1719
        %v1752 = vpack.c.bf16 %v1721, %v1720
        %v1753 = vpack.c.bf16 %v1723, %v1722
        %v1754 = vpack.c.bf16 %v1725, %v1724
        %v1755 = vpack.c.bf16 %v1727, %v1726
        %v1756 = vpack.c.bf16 %v1729, %v1728
        %v1757 = vpack.c.bf16 %v1731, %v1730
        %v1758 = vpack.c.bf16 %v1733, %v1732
        %v1759 = vpack.c.bf16 %v1735, %v1734
        %v1760 = vpack.c.bf16 %v1737, %v1736
        %v1761 = vpack.c.bf16 %v1739, %v1738
        %v1762 = vpack.c.bf16 %v1741, %v1740
        %v1763 = vpack.c.bf16 %v1743, %v1742
        %v1764 = vpack.c.bf16 %v1745, %v1744
        %v1765 = vpack.c.bf16 %v1747, %v1746
        %v1766 = vpack.c.bf16 %v1749, %v1748
        %v1767 = vpack.c.bf16 %v1751, %v1750
        %v1768 = vadd.f32 %v1720, 0.0
        %v1769 = vadd.f32 %v1721, 0.0
        %v1770 = vadd.f32 %v1722, 0.0
        %v1771 = vadd.f32 %v1723, 0.0
        %v1772 = vadd.f32 %v1724, 0.0
        %v1773 = vadd.f32 %v1725, 0.0
        %v1774 = vadd.f32 %v1726, 0.0
        %v1775 = vadd.f32 %v1727, 0.0
        %v1776 = vadd.f32 %v1728, 0.0
        %v1777 = vadd.f32 %v1729, 0.0
        %v1778 = vadd.f32 %v1730, 0.0
        %v1779 = vadd.f32 %v1731, 0.0
        %v1780 = vadd.f32 %v1732, 0.0
        %v1781 = vadd.f32 %v1733, 0.0
        %v1782 = vadd.f32 %v1734, 0.0
        %v1783 = vadd.f32 %v1735, 0.0
        %v1784 = vadd.f32 %v1736, 0.0
        %v1785 = vadd.f32 %v1737, 0.0
        %v1786 = vadd.f32 %v1738, 0.0
        %v1787 = vadd.f32 %v1739, 0.0
        %v1788 = vadd.f32 %v1740, 0.0
        %v1789 = vadd.f32 %v1741, 0.0
        %v1790 = vadd.f32 %v1742, 0.0
        %v1791 = vadd.f32 %v1743, 0.0
        %v1792 = vadd.f32 %v1744, 0.0
        %v1793 = vadd.f32 %v1745, 0.0
        %v1794 = vadd.f32 %v1746, 0.0
        %v1795 = vadd.f32 %v1747, 0.0
        %v1796 = vadd.f32 %v1748, 0.0
        %v1797 = vadd.f32 %v1749, 0.0
        %v1798 = vadd.f32 %v1750, 0.0
        %v1799 = vadd.f32 %v1751, 0.0
        %v1800 = vld [vmem:[#allocation11] sm:$0xf]
        %v1801 = vld [vmem:[#allocation11 + $0x10] sm:$0xf]
        %v1802 = vld [vmem:[#allocation11 + $0x20] sm:$0xf]
        %v1803 = vld [vmem:[#allocation11 + $0x30] sm:$0xf]
        %v1804 = vld [vmem:[#allocation11 + $0x40] sm:$0xf]
        %v1805 = vld [vmem:[#allocation11 + $0x50] sm:$0xf]
        %v1806 = vld [vmem:[#allocation11 + $0x60] sm:$0xf]
        %v1807 = vld [vmem:[#allocation11 + $0x70] sm:$0xf]
        %v1808 = vld [vmem:[#allocation11 + $0x80] sm:$0xf]
        %v1809 = vld [vmem:[#allocation11 + $0x90] sm:$0xf]
        %v1810 = vld [vmem:[#allocation11 + $0xa0] sm:$0xf]
        %v1811 = vld [vmem:[#allocation11 + $0xb0] sm:$0xf]
        %v1812 = vld [vmem:[#allocation11 + $0xc0] sm:$0xf]
        %v1813 = vld [vmem:[#allocation11 + $0xd0] sm:$0xf]
        %v1814 = vld [vmem:[#allocation11 + $0xe0] sm:$0xf]
        %v1815 = vld [vmem:[#allocation11 + $0xf0] sm:$0xf]
        %v1832 = vunpack.c.l.b16 %v1800
        %v1833 = vunpack.c.l.b16 %v1801
        %v1834 = vunpack.c.l.b16 %v1802
        %v1835 = vunpack.c.l.b16 %v1803
        %v1836 = vunpack.c.l.b16 %v1804
        %v1837 = vunpack.c.l.b16 %v1805
        %v1838 = vunpack.c.l.b16 %v1806
        %v1839 = vunpack.c.l.b16 %v1807
        %v1840 = vunpack.c.l.b16 %v1808
        %v1841 = vunpack.c.l.b16 %v1809
        %v1842 = vunpack.c.l.b16 %v1810
        %v1843 = vunpack.c.l.b16 %v1811
        %v1844 = vunpack.c.l.b16 %v1812
        %v1845 = vunpack.c.l.b16 %v1813
        %v1846 = vunpack.c.l.b16 %v1814
        %v1847 = vunpack.c.l.b16 %v1815
        %v1848 = vpack.c.b16 %v1833, %v1832
        %v1849 = vpack.c.b16 %v1835, %v1834
        %v1850 = vpack.c.b16 %v1837, %v1836
        %v1851 = vpack.c.b16 %v1839, %v1838
        %v1852 = vpack.c.b16 %v1841, %v1840
        %v1853 = vpack.c.b16 %v1843, %v1842
        %v1854 = vpack.c.b16 %v1845, %v1844
        %v1855 = vpack.c.b16 %v1847, %v1846
        %1864 = vmatprep.subr.bf16.mxu0 0
        %1865 = vmatpush1.bf16.msra.mxu0 %v1848
        %1866 = vmatprep.subr.bf16.mxu0 0
        %1867 = vmatpush1.bf16.msra.mxu0 %v1849
        %1868 = vmatprep.subr.bf16.mxu0 0
        %1869 = vmatpush1.bf16.msra.mxu0 %v1850
        %1870 = vmatprep.subr.bf16.mxu0 0
        %1871 = vmatpush1.bf16.msra.mxu0 %v1851
        %1872 = vmatprep.subr.bf16.mxu0 0
        %1873 = vmatpush1.bf16.msra.mxu0 %v1852
        %1874 = vmatprep.subr.bf16.mxu0 0
        %1875 = vmatpush1.bf16.msra.mxu0 %v1853
        %1876 = vmatprep.subr.bf16.mxu0 0
        %1877 = vmatpush1.bf16.msra.mxu0 %v1854
        %1878 = vmatprep.subr.bf16.mxu0 0
        %1879 = vmatpush1.bf16.msra.mxu0 %v1855
        %1880 = vmatprep.subr.bf16.mxu0 0
        %1881 = vmatpush1.bf16.msra.mxu0 0
        %1882 = vmatprep.subr.bf16.mxu0 0
        %1883 = vmatpush1.bf16.msra.mxu0 0
        %1884 = vmatprep.subr.bf16.mxu0 0
        %1885 = vmatpush1.bf16.msra.mxu0 0
        %1886 = vmatprep.subr.bf16.mxu0 0
        %1887 = vmatpush1.bf16.msra.mxu0 0
        %1888 = vmatprep.subr.bf16.mxu0 0
        %1889 = vmatpush1.bf16.msra.mxu0 0
        %1890 = vmatprep.subr.bf16.mxu0 0
        %1891 = vmatpush1.bf16.msra.mxu0 0
        %1892 = vmatprep.subr.bf16.mxu0 0
        %1893 = vmatpush1.bf16.msra.mxu0 0
        %1894 = vmatprep.subr.bf16.mxu0 0
        %1895 = vmatpush1.bf16.msra.mxu0 0
        %1896 = vmatprep.mubr.bf16.mxu0 0
        %1897 = vmatmul.mubr.bf16.gmra.mrb[0].mxu0 %v802
        %v1898 = vpop.f32.mrb[0].mxu0
        %v1899 = vadd.f32 0.0, %v1898
        %v1900 = vpop.f32.mrb[0].mxu0
        %v1901 = vpop.f32.mrb[0].mxu0
        %v1902 = vadd.f32 0.0, %v1901
        %v1903 = vpop.f32.mrb[0].mxu0
        %1904 = vmatprep.mubr.bf16.mxu0 0
        %1905 = vmatmul.mubr.bf16.gmra.mrb[0].mxu0 %v803
        %v1906 = vpop.f32.mrb[0].mxu0
        %v1907 = vadd.f32 0.0, %v1906
        %v1908 = vpop.f32.mrb[0].mxu0
        %v1909 = vpop.f32.mrb[0].mxu0
        %v1910 = vadd.f32 0.0, %v1909
        %v1911 = vpop.f32.mrb[0].mxu0
        %1912 = vmatprep.mubr.bf16.mxu0 0
        %1913 = vmatmul.mubr.bf16.gmra.mrb[0].mxu0 %v804
        %v1914 = vpop.f32.mrb[0].mxu0
        %v1915 = vadd.f32 0.0, %v1914
        %v1916 = vpop.f32.mrb[0].mxu0
        %v1917 = vpop.f32.mrb[0].mxu0
        %v1918 = vadd.f32 0.0, %v1917
        %v1919 = vpop.f32.mrb[0].mxu0
        %1920 = vmatprep.mubr.bf16.mxu0 0
        %1921 = vmatmul.mubr.bf16.gmra.mrb[0].mxu0 %v805
        %v1922 = vpop.f32.mrb[0].mxu0
        %v1923 = vadd.f32 0.0, %v1922
        %v1924 = vpop.f32.mrb[0].mxu0
        %v1925 = vpop.f32.mrb[0].mxu0
        %v1926 = vadd.f32 0.0, %v1925
        %v1927 = vpop.f32.mrb[0].mxu0
        %1928 = vmatprep.mubr.bf16.mxu0 0
        %1929 = vmatmul.mubr.bf16.gmra.mrb[0].mxu0 %v806
        %v1930 = vpop.f32.mrb[0].mxu0
        %v1931 = vadd.f32 0.0, %v1930
        %v1932 = vpop.f32.mrb[0].mxu0
        %v1933 = vpop.f32.mrb[0].mxu0
        %v1934 = vadd.f32 0.0, %v1933
        %v1935 = vpop.f32.mrb[0].mxu0
        %1936 = vmatprep.mubr.bf16.mxu0 0
        %1937 = vmatmul.mubr.bf16.gmra.mrb[0].mxu0 %v807
        %v1938 = vpop.f32.mrb[0].mxu0
        %v1939 = vadd.f32 0.0, %v1938
        %v1940 = vpop.f32.mrb[0].mxu0
        %v1941 = vpop.f32.mrb[0].mxu0
        %v1942 = vadd.f32 0.0, %v1941
        %v1943 = vpop.f32.mrb[0].mxu0
        %1944 = vmatprep.mubr.bf16.mxu0 0
        %1945 = vmatmul.mubr.bf16.gmra.mrb[0].mxu0 %v808
        %v1946 = vpop.f32.mrb[0].mxu0
        %v1947 = vadd.f32 0.0, %v1946
        %v1948 = vpop.f32.mrb[0].mxu0
        %v1949 = vpop.f32.mrb[0].mxu0
        %v1950 = vadd.f32 0.0, %v1949
        %v1951 = vpop.f32.mrb[0].mxu0
        %1952 = vmatprep.mubr.bf16.mxu0 0
        %1953 = vmatmul.mubr.bf16.gmra.mrb[0].mxu0 %v809
        %v1954 = vpop.f32.mrb[0].mxu0
        %v1955 = vadd.f32 0.0, %v1954
        %v1956 = vpop.f32.mrb[0].mxu0
        %v1957 = vpop.f32.mrb[0].mxu0
        %v1958 = vadd.f32 0.0, %v1957
        %v1959 = vpop.f32.mrb[0].mxu0
        %1960 = vmatprep.mubr.bf16.mxu0 0
        %1961 = vmatmul.mubr.bf16.gmra.mrb[0].mxu0 %v810
        %v1962 = vpop.f32.mrb[0].mxu0
        %v1963 = vadd.f32 0.0, %v1962
        %v1964 = vpop.f32.mrb[0].mxu0
        %v1965 = vpop.f32.mrb[0].mxu0
        %v1966 = vadd.f32 0.0, %v1965
        %v1967 = vpop.f32.mrb[0].mxu0
        %1968 = vmatprep.mubr.bf16.mxu0 0
        %1969 = vmatmul.mubr.bf16.gmra.mrb[0].mxu0 %v811
        %v1970 = vpop.f32.mrb[0].mxu0
        %v1971 = vadd.f32 0.0, %v1970
        %v1972 = vpop.f32.mrb[0].mxu0
        %v1973 = vpop.f32.mrb[0].mxu0
        %v1974 = vadd.f32 0.0, %v1973
        %v1975 = vpop.f32.mrb[0].mxu0
        %1976 = vmatprep.mubr.bf16.mxu0 0
        %1977 = vmatmul.mubr.bf16.gmra.mrb[0].mxu0 %v812
        %v1978 = vpop.f32.mrb[0].mxu0
        %v1979 = vadd.f32 0.0, %v1978
        %v1980 = vpop.f32.mrb[0].mxu0
        %v1981 = vpop.f32.mrb[0].mxu0
        %v1982 = vadd.f32 0.0, %v1981
        %v1983 = vpop.f32.mrb[0].mxu0
        %1984 = vmatprep.mubr.bf16.mxu0 0
        %1985 = vmatmul.mubr.bf16.gmra.mrb[0].mxu0 %v813
        %v1986 = vpop.f32.mrb[0].mxu0
        %v1987 = vadd.f32 0.0, %v1986
        %v1988 = vpop.f32.mrb[0].mxu0
        %v1989 = vpop.f32.mrb[0].mxu0
        %v1990 = vadd.f32 0.0, %v1989
        %v1991 = vpop.f32.mrb[0].mxu0
        %1992 = vmatprep.mubr.bf16.mxu0 0
        %1993 = vmatmul.mubr.bf16.gmra.mrb[0].mxu0 %v814
        %v1994 = vpop.f32.mrb[0].mxu0
        %v1995 = vadd.f32 0.0, %v1994
        %v1996 = vpop.f32.mrb[0].mxu0
        %v1997 = vpop.f32.mrb[0].mxu0
        %v1998 = vadd.f32 0.0, %v1997
        %v1999 = vpop.f32.mrb[0].mxu0
        %2000 = vmatprep.mubr.bf16.mxu0 0
        %2001 = vmatmul.mubr.bf16.gmra.mrb[0].mxu0 %v815
        %v2002 = vpop.f32.mrb[0].mxu0
        %v2003 = vadd.f32 0.0, %v2002
        %v2004 = vpop.f32.mrb[0].mxu0
        %v2005 = vpop.f32.mrb[0].mxu0
        %v2006 = vadd.f32 0.0, %v2005
        %v2007 = vpop.f32.mrb[0].mxu0
        %2008 = vmatprep.mubr.bf16.mxu0 0
        %2009 = vmatmul.mubr.bf16.gmra.mrb[0].mxu0 %v816
        %v2010 = vpop.f32.mrb[0].mxu0
        %v2011 = vadd.f32 0.0, %v2010
        %v2012 = vpop.f32.mrb[0].mxu0
        %v2013 = vpop.f32.mrb[0].mxu0
        %v2014 = vadd.f32 0.0, %v2013
        %v2015 = vpop.f32.mrb[0].mxu0
        %2016 = vmatprep.mubr.bf16.mxu0 0
        %2017 = vmatmul.mubr.bf16.gmra.mrb[0].mxu0 %v817
        %v2018 = vpop.f32.mrb[0].mxu0
        %v2019 = vadd.f32 0.0, %v2018
        %v2020 = vpop.f32.mrb[0].mxu0
        %v2021 = vpop.f32.mrb[0].mxu0
        %v2022 = vadd.f32 0.0, %v2021
        %v2023 = vpop.f32.mrb[0].mxu0
        %2024 = vdwg.mxu0
        %v2025 = vpack.c.bf16 %v1902, %v1899
        %v2026 = vpack.c.bf16 %v1910, %v1907
        %v2027 = vpack.c.bf16 %v1918, %v1915
        %v2028 = vpack.c.bf16 %v1926, %v1923
        %v2029 = vpack.c.bf16 %v1934, %v1931
        %v2030 = vpack.c.bf16 %v1942, %v1939
        %v2031 = vpack.c.bf16 %v1950, %v1947
        %v2032 = vpack.c.bf16 %v1958, %v1955
        %v2033 = vpack.c.bf16 %v1966, %v1963
        %v2034 = vpack.c.bf16 %v1974, %v1971
        %v2035 = vpack.c.bf16 %v1982, %v1979
        %v2036 = vpack.c.bf16 %v1990, %v1987
        %v2037 = vpack.c.bf16 %v1998, %v1995
        %v2038 = vpack.c.bf16 %v2006, %v2003
        %v2039 = vpack.c.bf16 %v2014, %v2011
        %v2040 = vpack.c.bf16 %v2022, %v2019
        %v2041 = vld [vmem:[#allocation2 + $0x1] sm:$0x1]
        %2042 = vset.pattern.permute.xlu0 1
        %2043 = vperm.xlu0 %2042, %v981
        %v2044 = vpop.permute.xlu0 %2043
        %2046 = vset.pattern.permute.xlu0 1
        %2047 = vperm.xlu0 %2046, %v984
        %v2048 = vpop.permute.xlu0 %2047
        %2050 = vset.pattern.permute.xlu0 1
        %2051 = vperm.xlu0 %2050, %v989
        %v2052 = vpop.permute.xlu0 %2051
        %2054 = vset.pattern.permute.xlu0 1
        %2055 = vperm.xlu0 %2054, %v992
        %v2056 = vpop.permute.xlu0 %2055
        %2058 = vset.pattern.permute.xlu0 1
        %2059 = vperm.xlu0 %2058, %v997
        %v2060 = vpop.permute.xlu0 %2059
        %2062 = vset.pattern.permute.xlu0 1
        %2063 = vperm.xlu0 %2062, %v1000
        %v2064 = vpop.permute.xlu0 %2063
        %2066 = vset.pattern.permute.xlu0 1
        %2067 = vperm.xlu0 %2066, %v1005
        %v2068 = vpop.permute.xlu0 %2067
        %2070 = vset.pattern.permute.xlu0 1
        %2071 = vperm.xlu0 %2070, %v1008
        %v2072 = vpop.permute.xlu0 %2071
        %2074 = vset.pattern.permute.xlu0 1
        %2075 = vperm.xlu0 %2074, %v1013
        %v2076 = vpop.permute.xlu0 %2075
        %2078 = vset.pattern.permute.xlu0 1
        %2079 = vperm.xlu0 %2078, %v1016
        %v2080 = vpop.permute.xlu0 %2079
        %2082 = vset.pattern.permute.xlu0 1
        %2083 = vperm.xlu0 %2082, %v1021
        %v2084 = vpop.permute.xlu0 %2083
        %2086 = vset.pattern.permute.xlu0 1
        %2087 = vperm.xlu0 %2086, %v1024
        %v2088 = vpop.permute.xlu0 %2087
        %2090 = vset.pattern.permute.xlu0 1
        %2091 = vperm.xlu0 %2090, %v1029
        %v2092 = vpop.permute.xlu0 %2091
        %2094 = vset.pattern.permute.xlu0 1
        %2095 = vperm.xlu0 %2094, %v1032
        %v2096 = vpop.permute.xlu0 %2095
        %2098 = vset.pattern.permute.xlu0 1
        %2099 = vperm.xlu0 %2098, %v1037
        %v2100 = vpop.permute.xlu0 %2099
        %2102 = vset.pattern.permute.xlu0 1
        %2103 = vperm.xlu0 %2102, %v1040
        %v2104 = vpop.permute.xlu0 %2103
        %2106 = vset.pattern.permute.xlu0 1
        %2107 = vperm.xlu0 %2106, %v1045
        %v2108 = vpop.permute.xlu0 %2107
        %2110 = vset.pattern.permute.xlu0 1
        %2111 = vperm.xlu0 %2110, %v1048
        %v2112 = vpop.permute.xlu0 %2111
        %2114 = vset.pattern.permute.xlu0 1
        %2115 = vperm.xlu0 %2114, %v1053
        %v2116 = vpop.permute.xlu0 %2115
        %2118 = vset.pattern.permute.xlu0 1
        %2119 = vperm.xlu0 %2118, %v1056
        %v2120 = vpop.permute.xlu0 %2119
        %2122 = vset.pattern.permute.xlu0 1
        %2123 = vperm.xlu0 %2122, %v1061
        %v2124 = vpop.permute.xlu0 %2123
        %2126 = vset.pattern.permute.xlu0 1
        %2127 = vperm.xlu0 %2126, %v1064
        %v2128 = vpop.permute.xlu0 %2127
        %2130 = vset.pattern.permute.xlu0 1
        %2131 = vperm.xlu0 %2130, %v1069
        %v2132 = vpop.permute.xlu0 %2131
        %2134 = vset.pattern.permute.xlu0 1
        %2135 = vperm.xlu0 %2134, %v1072
        %v2136 = vpop.permute.xlu0 %2135
        %2138 = vset.pattern.permute.xlu0 1
        %2139 = vperm.xlu0 %2138, %v1077
        %v2140 = vpop.permute.xlu0 %2139
        %2142 = vset.pattern.permute.xlu0 1
        %2143 = vperm.xlu0 %2142, %v1080
        %v2144 = vpop.permute.xlu0 %2143
        %2146 = vset.pattern.permute.xlu0 1
        %2147 = vperm.xlu0 %2146, %v1085
        %v2148 = vpop.permute.xlu0 %2147
        %2150 = vset.pattern.permute.xlu0 1
        %2151 = vperm.xlu0 %2150, %v1088
        %v2152 = vpop.permute.xlu0 %2151
        %2154 = vset.pattern.permute.xlu0 1
        %2155 = vperm.xlu0 %2154, %v1093
        %v2156 = vpop.permute.xlu0 %2155
        %2158 = vset.pattern.permute.xlu0 1
        %2159 = vperm.xlu0 %2158, %v1096
        %v2160 = vpop.permute.xlu0 %2159
        %2162 = vset.pattern.permute.xlu0 1
        %2163 = vperm.xlu0 %2162, %v1101
        %v2164 = vpop.permute.xlu0 %2163
        %2166 = vset.pattern.permute.xlu0 1
        %2167 = vperm.xlu0 %2166, %v1104
        %v2168 = vpop.permute.xlu0 %2167
        %v2170 = vlaneseq
        %v2171 = vshrl.u32 %v2170, 7
        %v2172 = vsub.s32 0, %v2171
        %v2173 = vrot.slane %v2041, %v2172
        %v2174 = vadd.f32 %v2044, %v2173
        %v2175 = vadd.f32 %v2048, %v2173
        %v2176 = vadd.f32 %v2052, %v2173
        %v2177 = vadd.f32 %v2056, %v2173
        %v2178 = vadd.f32 %v2060, %v2173
        %v2179 = vadd.f32 %v2064, %v2173
        %v2180 = vadd.f32 %v2068, %v2173
        %v2181 = vadd.f32 %v2072, %v2173
        %v2182 = vadd.f32 %v2076, %v2173
        %v2183 = vadd.f32 %v2080, %v2173
        %v2184 = vadd.f32 %v2084, %v2173
        %v2185 = vadd.f32 %v2088, %v2173
        %v2186 = vadd.f32 %v2092, %v2173
        %v2187 = vadd.f32 %v2096, %v2173
        %v2188 = vadd.f32 %v2100, %v2173
        %v2189 = vadd.f32 %v2104, %v2173
        %v2190 = vadd.f32 %v2108, %v2173
        %v2191 = vadd.f32 %v2112, %v2173
        %v2192 = vadd.f32 %v2116, %v2173
        %v2193 = vadd.f32 %v2120, %v2173
        %v2194 = vadd.f32 %v2124, %v2173
        %v2195 = vadd.f32 %v2128, %v2173
        %v2196 = vadd.f32 %v2132, %v2173
        %v2197 = vadd.f32 %v2136, %v2173
        %v2198 = vadd.f32 %v2140, %v2173
        %v2199 = vadd.f32 %v2144, %v2173
        %v2200 = vadd.f32 %v2148, %v2173
        %v2201 = vadd.f32 %v2152, %v2173
        %v2202 = vadd.f32 %v2156, %v2173
        %v2203 = vadd.f32 %v2160, %v2173
        %v2204 = vadd.f32 %v2164, %v2173
        %v2205 = vadd.f32 %v2168, %v2173
        %v2206 = vmax.f32 %v2174, 0.0
        %v2207 = vmax.f32 %v2175, 0.0
        %v2208 = vmax.f32 %v2176, 0.0
        %v2209 = vmax.f32 %v2177, 0.0
        %v2210 = vmax.f32 %v2178, 0.0
        %v2211 = vmax.f32 %v2179, 0.0
        %v2212 = vmax.f32 %v2180, 0.0
        %v2213 = vmax.f32 %v2181, 0.0
        %v2214 = vmax.f32 %v2182, 0.0
        %v2215 = vmax.f32 %v2183, 0.0
        %v2216 = vmax.f32 %v2184, 0.0
        %v2217 = vmax.f32 %v2185, 0.0
        %v2218 = vmax.f32 %v2186, 0.0
        %v2219 = vmax.f32 %v2187, 0.0
        %v2220 = vmax.f32 %v2188, 0.0
        %v2221 = vmax.f32 %v2189, 0.0
        %v2222 = vmax.f32 %v2190, 0.0
        %v2223 = vmax.f32 %v2191, 0.0
        %v2224 = vmax.f32 %v2192, 0.0
        %v2225 = vmax.f32 %v2193, 0.0
        %v2226 = vmax.f32 %v2194, 0.0
        %v2227 = vmax.f32 %v2195, 0.0
        %v2228 = vmax.f32 %v2196, 0.0
        %v2229 = vmax.f32 %v2197, 0.0
        %v2230 = vmax.f32 %v2198, 0.0
        %v2231 = vmax.f32 %v2199, 0.0
        %v2232 = vmax.f32 %v2200, 0.0
        %v2233 = vmax.f32 %v2201, 0.0
        %v2234 = vmax.f32 %v2202, 0.0
        %v2235 = vmax.f32 %v2203, 0.0
        %v2236 = vmax.f32 %v2204, 0.0
        %v2237 = vmax.f32 %v2205, 0.0
        %v2238 = vmul.f32 %v2206, %v850
        %v2239 = vmul.f32 %v2207, %v851
        %v2240 = vmul.f32 %v2208, %v852
        %v2241 = vmul.f32 %v2209, %v853
        %v2242 = vmul.f32 %v2210, %v854
        %v2243 = vmul.f32 %v2211, %v855
        %v2244 = vmul.f32 %v2212, %v856
        %v2245 = vmul.f32 %v2213, %v857
        %v2246 = vmul.f32 %v2214, %v858
        %v2247 = vmul.f32 %v2215, %v859
        %v2248 = vmul.f32 %v2216, %v860
        %v2249 = vmul.f32 %v2217, %v861
        %v2250 = vmul.f32 %v2218, %v862
        %v2251 = vmul.f32 %v2219, %v863
        %v2252 = vmul.f32 %v2220, %v864
        %v2253 = vmul.f32 %v2221, %v865
        %v2254 = vmul.f32 %v2222, %v866
        %v2255 = vmul.f32 %v2223, %v867
        %v2256 = vmul.f32 %v2224, %v868
        %v2257 = vmul.f32 %v2225, %v869
        %v2258 = vmul.f32 %v2226, %v870
        %v2259 = vmul.f32 %v2227, %v871
        %v2260 = vmul.f32 %v2228, %v872
        %v2261 = vmul.f32 %v2229, %v873
        %v2262 = vmul.f32 %v2230, %v874
        %v2263 = vmul.f32 %v2231, %v875
        %v2264 = vmul.f32 %v2232, %v876
        %v2265 = vmul.f32 %v2233, %v877
        %v2266 = vmul.f32 %v2234, %v878
        %v2267 = vmul.f32 %v2235, %v879
        %v2268 = vmul.f32 %v2236, %v880
        %v2269 = vmul.f32 %v2237, %v881
        %2270 = vmax.xlane.f32.xlu0 %v2238
        %v2271 = vpop.xlane.xlu0 %2270
        %2272 = vmax.xlane.f32.xlu0 %v2239
        %v2273 = vpop.xlane.xlu0 %2272
        %2274 = vmax.xlane.f32.xlu0 %v2240
        %v2275 = vpop.xlane.xlu0 %2274
        %2276 = vmax.xlane.f32.xlu0 %v2241
        %v2277 = vpop.xlane.xlu0 %2276
        %2278 = vmax.xlane.f32.xlu0 %v2242
        %v2279 = vpop.xlane.xlu0 %2278
        %2280 = vmax.xlane.f32.xlu0 %v2243
        %v2281 = vpop.xlane.xlu0 %2280
        %2282 = vmax.xlane.f32.xlu0 %v2244
        %v2283 = vpop.xlane.xlu0 %2282
        %2284 = vmax.xlane.f32.xlu0 %v2245
        %v2285 = vpop.xlane.xlu0 %2284
        %2286 = vmax.xlane.f32.xlu0 %v2246
        %v2287 = vpop.xlane.xlu0 %2286
        %2288 = vmax.xlane.f32.xlu0 %v2247
        %v2289 = vpop.xlane.xlu0 %2288
        %2290 = vmax.xlane.f32.xlu0 %v2248
        %v2291 = vpop.xlane.xlu0 %2290
        %2292 = vmax.xlane.f32.xlu0 %v2249
        %v2293 = vpop.xlane.xlu0 %2292
        %2294 = vmax.xlane.f32.xlu0 %v2250
        %v2295 = vpop.xlane.xlu0 %2294
        %2296 = vmax.xlane.f32.xlu0 %v2251
        %v2297 = vpop.xlane.xlu0 %2296
        %2298 = vmax.xlane.f32.xlu0 %v2252
        %v2299 = vpop.xlane.xlu0 %2298
        %2300 = vmax.xlane.f32.xlu0 %v2253
        %v2301 = vpop.xlane.xlu0 %2300
        %2302 = vmax.xlane.f32.xlu0 %v2254
        %v2303 = vpop.xlane.xlu0 %2302
        %2304 = vmax.xlane.f32.xlu0 %v2255
        %v2305 = vpop.xlane.xlu0 %2304
        %2306 = vmax.xlane.f32.xlu0 %v2256
        %v2307 = vpop.xlane.xlu0 %2306
        %2308 = vmax.xlane.f32.xlu0 %v2257
        %v2309 = vpop.xlane.xlu0 %2308
        %2310 = vmax.xlane.f32.xlu0 %v2258
        %v2311 = vpop.xlane.xlu0 %2310
        %2312 = vmax.xlane.f32.xlu0 %v2259
        %v2313 = vpop.xlane.xlu0 %2312
        %2314 = vmax.xlane.f32.xlu0 %v2260
        %v2315 = vpop.xlane.xlu0 %2314
        %2316 = vmax.xlane.f32.xlu0 %v2261
        %v2317 = vpop.xlane.xlu0 %2316
        %2318 = vmax.xlane.f32.xlu0 %v2262
        %v2319 = vpop.xlane.xlu0 %2318
        %2320 = vmax.xlane.f32.xlu0 %v2263
        %v2321 = vpop.xlane.xlu0 %2320
        %2322 = vmax.xlane.f32.xlu0 %v2264
        %v2323 = vpop.xlane.xlu0 %2322
        %2324 = vmax.xlane.f32.xlu0 %v2265
        %v2325 = vpop.xlane.xlu0 %2324
        %2326 = vmax.xlane.f32.xlu0 %v2266
        %v2327 = vpop.xlane.xlu0 %2326
        %2328 = vmax.xlane.f32.xlu0 %v2267
        %v2329 = vpop.xlane.xlu0 %2328
        %2330 = vmax.xlane.f32.xlu0 %v2268
        %v2331 = vpop.xlane.xlu0 %2330
        %2332 = vmax.xlane.f32.xlu0 %v2269
        %v2333 = vpop.xlane.xlu0 %2332
        %v2334 = vsub.f32 %v2238, %v2271
        %v2335 = vsub.f32 %v2239, %v2273
        %v2336 = vsub.f32 %v2240, %v2275
        %v2337 = vsub.f32 %v2241, %v2277
        %v2338 = vsub.f32 %v2242, %v2279
        %v2339 = vsub.f32 %v2243, %v2281
        %v2340 = vsub.f32 %v2244, %v2283
        %v2341 = vsub.f32 %v2245, %v2285
        %v2342 = vsub.f32 %v2246, %v2287
        %v2343 = vsub.f32 %v2247, %v2289
        %v2344 = vsub.f32 %v2248, %v2291
        %v2345 = vsub.f32 %v2249, %v2293
        %v2346 = vsub.f32 %v2250, %v2295
        %v2347 = vsub.f32 %v2251, %v2297
        %v2348 = vsub.f32 %v2252, %v2299
        %v2349 = vsub.f32 %v2253, %v2301
        %v2350 = vsub.f32 %v2254, %v2303
        %v2351 = vsub.f32 %v2255, %v2305
        %v2352 = vsub.f32 %v2256, %v2307
        %v2353 = vsub.f32 %v2257, %v2309
        %v2354 = vsub.f32 %v2258, %v2311
        %v2355 = vsub.f32 %v2259, %v2313
        %v2356 = vsub.f32 %v2260, %v2315
        %v2357 = vsub.f32 %v2261, %v2317
        %v2358 = vsub.f32 %v2262, %v2319
        %v2359 = vsub.f32 %v2263, %v2321
        %v2360 = vsub.f32 %v2264, %v2323
        %v2361 = vsub.f32 %v2265, %v2325
        %v2362 = vsub.f32 %v2266, %v2327
        %v2363 = vsub.f32 %v2267, %v2329
        %v2364 = vsub.f32 %v2268, %v2331
        %v2365 = vsub.f32 %v2269, %v2333
        %v2366 = vmul.f32 %v2334, 1.442695
        %v2367 = vpow.pop %v2366
        %v2368 = vmul.f32 %v2335, 1.442695
        %v2369 = vpow.pop %v2368
        %v2370 = vmul.f32 %v2336, 1.442695
        %v2371 = vpow.pop %v2370
        %v2372 = vmul.f32 %v2337, 1.442695
        %v2373 = vpow.pop %v2372
        %v2374 = vmul.f32 %v2338, 1.442695
        %v2375 = vpow.pop %v2374
        %v2376 = vmul.f32 %v2339, 1.442695
        %v2377 = vpow.pop %v2376
        %v2378 = vmul.f32 %v2340, 1.442695
        %v2379 = vpow.pop %v2378
        %v2380 = vmul.f32 %v2341, 1.442695
        %v2381 = vpow.pop %v2380
        %v2382 = vmul.f32 %v2342, 1.442695
        %v2383 = vpow.pop %v2382
        %v2384 = vmul.f32 %v2343, 1.442695
        %v2385 = vpow.pop %v2384
        %v2386 = vmul.f32 %v2344, 1.442695
        %v2387 = vpow.pop %v2386
        %v2388 = vmul.f32 %v2345, 1.442695
        %v2389 = vpow.pop %v2388
        %v2390 = vmul.f32 %v2346, 1.442695
        %v2391 = vpow.pop %v2390
        %v2392 = vmul.f32 %v2347, 1.442695
        %v2393 = vpow.pop %v2392
        %v2394 = vmul.f32 %v2348, 1.442695
        %v2395 = vpow.pop %v2394
        %v2396 = vmul.f32 %v2349, 1.442695
        %v2397 = vpow.pop %v2396
        %v2398 = vmul.f32 %v2350, 1.442695
        %v2399 = vpow.pop %v2398
        %v2400 = vmul.f32 %v2351, 1.442695
        %v2401 = vpow.pop %v2400
        %v2402 = vmul.f32 %v2352, 1.442695
        %v2403 = vpow.pop %v2402
        %v2404 = vmul.f32 %v2353, 1.442695
        %v2405 = vpow.pop %v2404
        %v2406 = vmul.f32 %v2354, 1.442695
        %v2407 = vpow.pop %v2406
        %v2408 = vmul.f32 %v2355, 1.442695
        %v2409 = vpow.pop %v2408
        %v2410 = vmul.f32 %v2356, 1.442695
        %v2411 = vpow.pop %v2410
        %v2412 = vmul.f32 %v2357, 1.442695
        %v2413 = vpow.pop %v2412
        %v2414 = vmul.f32 %v2358, 1.442695
        %v2415 = vpow.pop %v2414
        %v2416 = vmul.f32 %v2359, 1.442695
        %v2417 = vpow.pop %v2416
        %v2418 = vmul.f32 %v2360, 1.442695
        %v2419 = vpow.pop %v2418
        %v2420 = vmul.f32 %v2361, 1.442695
        %v2421 = vpow.pop %v2420
        %v2422 = vmul.f32 %v2362, 1.442695
        %v2423 = vpow.pop %v2422
        %v2424 = vmul.f32 %v2363, 1.442695
        %v2425 = vpow.pop %v2424
        %v2426 = vmul.f32 %v2364, 1.442695
        %v2427 = vpow.pop %v2426
        %v2428 = vmul.f32 %v2365, 1.442695
        %v2429 = vpow.pop %v2428
        %v2430 = vmul.f32 %v2367, %v850
        %v2431 = vmul.f32 %v2369, %v851
        %v2432 = vmul.f32 %v2371, %v852
        %v2433 = vmul.f32 %v2373, %v853
        %v2434 = vmul.f32 %v2375, %v854
        %v2435 = vmul.f32 %v2377, %v855
        %v2436 = vmul.f32 %v2379, %v856
        %v2437 = vmul.f32 %v2381, %v857
        %v2438 = vmul.f32 %v2383, %v858
        %v2439 = vmul.f32 %v2385, %v859
        %v2440 = vmul.f32 %v2387, %v860
        %v2441 = vmul.f32 %v2389, %v861
        %v2442 = vmul.f32 %v2391, %v862
        %v2443 = vmul.f32 %v2393, %v863
        %v2444 = vmul.f32 %v2395, %v864
        %v2445 = vmul.f32 %v2397, %v865
        %v2446 = vmul.f32 %v2399, %v866
        %v2447 = vmul.f32 %v2401, %v867
        %v2448 = vmul.f32 %v2403, %v868
        %v2449 = vmul.f32 %v2405, %v869
        %v2450 = vmul.f32 %v2407, %v870
        %v2451 = vmul.f32 %v2409, %v871
        %v2452 = vmul.f32 %v2411, %v872
        %v2453 = vmul.f32 %v2413, %v873
        %v2454 = vmul.f32 %v2415, %v874
        %v2455 = vmul.f32 %v2417, %v875
        %v2456 = vmul.f32 %v2419, %v876
        %v2457 = vmul.f32 %v2421, %v877
        %v2458 = vmul.f32 %v2423, %v878
        %v2459 = vmul.f32 %v2425, %v879
        %v2460 = vmul.f32 %v2427, %v880
        %v2461 = vmul.f32 %v2429, %v881
        %2462 = vadd.xlane.f32.xlu0 %v2430
        %v2463 = vpop.xlane.xlu0 %2462
        %2464 = vadd.xlane.f32.xlu0 %v2431
        %v2465 = vpop.xlane.xlu0 %2464
        %2466 = vadd.xlane.f32.xlu0 %v2432
        %v2467 = vpop.xlane.xlu0 %2466
        %2468 = vadd.xlane.f32.xlu0 %v2433
        %v2469 = vpop.xlane.xlu0 %2468
        %2470 = vadd.xlane.f32.xlu0 %v2434
        %v2471 = vpop.xlane.xlu0 %2470
        %2472 = vadd.xlane.f32.xlu0 %v2435
        %v2473 = vpop.xlane.xlu0 %2472
        %2474 = vadd.xlane.f32.xlu0 %v2436
        %v2475 = vpop.xlane.xlu0 %2474
        %2476 = vadd.xlane.f32.xlu0 %v2437
        %v2477 = vpop.xlane.xlu0 %2476
        %2478 = vadd.xlane.f32.xlu0 %v2438
        %v2479 = vpop.xlane.xlu0 %2478
        %2480 = vadd.xlane.f32.xlu0 %v2439
        %v2481 = vpop.xlane.xlu0 %2480
        %2482 = vadd.xlane.f32.xlu0 %v2440
        %v2483 = vpop.xlane.xlu0 %2482
        %2484 = vadd.xlane.f32.xlu0 %v2441
        %v2485 = vpop.xlane.xlu0 %2484
        %2486 = vadd.xlane.f32.xlu0 %v2442
        %v2487 = vpop.xlane.xlu0 %2486
        %2488 = vadd.xlane.f32.xlu0 %v2443
        %v2489 = vpop.xlane.xlu0 %2488
        %2490 = vadd.xlane.f32.xlu0 %v2444
        %v2491 = vpop.xlane.xlu0 %2490
        %2492 = vadd.xlane.f32.xlu0 %v2445
        %v2493 = vpop.xlane.xlu0 %2492
        %2494 = vadd.xlane.f32.xlu0 %v2446
        %v2495 = vpop.xlane.xlu0 %2494
        %2496 = vadd.xlane.f32.xlu0 %v2447
        %v2497 = vpop.xlane.xlu0 %2496
        %2498 = vadd.xlane.f32.xlu0 %v2448
        %v2499 = vpop.xlane.xlu0 %2498
        %2500 = vadd.xlane.f32.xlu0 %v2449
        %v2501 = vpop.xlane.xlu0 %2500
        %2502 = vadd.xlane.f32.xlu0 %v2450
        %v2503 = vpop.xlane.xlu0 %2502
        %2504 = vadd.xlane.f32.xlu0 %v2451
        %v2505 = vpop.xlane.xlu0 %2504
        %2506 = vadd.xlane.f32.xlu0 %v2452
        %v2507 = vpop.xlane.xlu0 %2506
        %2508 = vadd.xlane.f32.xlu0 %v2453
        %v2509 = vpop.xlane.xlu0 %2508
        %2510 = vadd.xlane.f32.xlu0 %v2454
        %v2511 = vpop.xlane.xlu0 %2510
        %2512 = vadd.xlane.f32.xlu0 %v2455
        %v2513 = vpop.xlane.xlu0 %2512
        %2514 = vadd.xlane.f32.xlu0 %v2456
        %v2515 = vpop.xlane.xlu0 %2514
        %2516 = vadd.xlane.f32.xlu0 %v2457
        %v2517 = vpop.xlane.xlu0 %2516
        %2518 = vadd.xlane.f32.xlu0 %v2458
        %v2519 = vpop.xlane.xlu0 %2518
        %2520 = vadd.xlane.f32.xlu0 %v2459
        %v2521 = vpop.xlane.xlu0 %2520
        %2522 = vadd.xlane.f32.xlu0 %v2460
        %v2523 = vpop.xlane.xlu0 %2522
        %2524 = vadd.xlane.f32.xlu0 %v2461
        %v2525 = vpop.xlane.xlu0 %2524
        %vm2526 = vcmp.gt.f32.partialorder %v2463, 0.0
        %vm2527 = vcmp.gt.f32.partialorder %v2465, 0.0
        %vm2528 = vcmp.gt.f32.partialorder %v2467, 0.0
        %vm2529 = vcmp.gt.f32.partialorder %v2469, 0.0
        %vm2530 = vcmp.gt.f32.partialorder %v2471, 0.0
        %vm2531 = vcmp.gt.f32.partialorder %v2473, 0.0
        %vm2532 = vcmp.gt.f32.partialorder %v2475, 0.0
        %vm2533 = vcmp.gt.f32.partialorder %v2477, 0.0
        %vm2534 = vcmp.gt.f32.partialorder %v2479, 0.0
        %vm2535 = vcmp.gt.f32.partialorder %v2481, 0.0
        %vm2536 = vcmp.gt.f32.partialorder %v2483, 0.0
        %vm2537 = vcmp.gt.f32.partialorder %v2485, 0.0
        %vm2538 = vcmp.gt.f32.partialorder %v2487, 0.0
        %vm2539 = vcmp.gt.f32.partialorder %v2489, 0.0
        %vm2540 = vcmp.gt.f32.partialorder %v2491, 0.0
        %vm2541 = vcmp.gt.f32.partialorder %v2493, 0.0
        %vm2542 = vcmp.gt.f32.partialorder %v2495, 0.0
        %vm2543 = vcmp.gt.f32.partialorder %v2497, 0.0
        %vm2544 = vcmp.gt.f32.partialorder %v2499, 0.0
        %vm2545 = vcmp.gt.f32.partialorder %v2501, 0.0
        %vm2546 = vcmp.gt.f32.partialorder %v2503, 0.0
        %vm2547 = vcmp.gt.f32.partialorder %v2505, 0.0
        %vm2548 = vcmp.gt.f32.partialorder %v2507, 0.0
        %vm2549 = vcmp.gt.f32.partialorder %v2509, 0.0
        %vm2550 = vcmp.gt.f32.partialorder %v2511, 0.0
        %vm2551 = vcmp.gt.f32.partialorder %v2513, 0.0
        %vm2552 = vcmp.gt.f32.partialorder %v2515, 0.0
        %vm2553 = vcmp.gt.f32.partialorder %v2517, 0.0
        %vm2554 = vcmp.gt.f32.partialorder %v2519, 0.0
        %vm2555 = vcmp.gt.f32.partialorder %v2521, 0.0
        %vm2556 = vcmp.gt.f32.partialorder %v2523, 0.0
        %vm2557 = vcmp.gt.f32.partialorder %v2525, 0.0
        %v2558 = vsel %vm2526, %v2463, 1.0
        %v2559 = vsel %vm2527, %v2465, 1.0
        %v2560 = vsel %vm2528, %v2467, 1.0
        %v2561 = vsel %vm2529, %v2469, 1.0
        %v2562 = vsel %vm2530, %v2471, 1.0
        %v2563 = vsel %vm2531, %v2473, 1.0
        %v2564 = vsel %vm2532, %v2475, 1.0
        %v2565 = vsel %vm2533, %v2477, 1.0
        %v2566 = vsel %vm2534, %v2479, 1.0
        %v2567 = vsel %vm2535, %v2481, 1.0
        %v2568 = vsel %vm2536, %v2483, 1.0
        %v2569 = vsel %vm2537, %v2485, 1.0
        %v2570 = vsel %vm2538, %v2487, 1.0
        %v2571 = vsel %vm2539, %v2489, 1.0
        %v2572 = vsel %vm2540, %v2491, 1.0
        %v2573 = vsel %vm2541, %v2493, 1.0
        %v2574 = vsel %vm2542, %v2495, 1.0
        %v2575 = vsel %vm2543, %v2497, 1.0
        %v2576 = vsel %vm2544, %v2499, 1.0
        %v2577 = vsel %vm2545, %v2501, 1.0
        %v2578 = vsel %vm2546, %v2503, 1.0
        %v2579 = vsel %vm2547, %v2505, 1.0
        %v2580 = vsel %vm2548, %v2507, 1.0
        %v2581 = vsel %vm2549, %v2509, 1.0
        %v2582 = vsel %vm2550, %v2511, 1.0
        %v2583 = vsel %vm2551, %v2513, 1.0
        %v2584 = vsel %vm2552, %v2515, 1.0
        %v2585 = vsel %vm2553, %v2517, 1.0
        %v2586 = vsel %vm2554, %v2519, 1.0
        %v2587 = vsel %vm2555, %v2521, 1.0
        %v2588 = vsel %vm2556, %v2523, 1.0
        %v2589 = vsel %vm2557, %v2525, 1.0
        %v2590 = vrcp.pop %v2558
        %v2591 = vrcp.pop %v2559
        %v2592 = vrcp.pop %v2560
        %v2593 = vrcp.pop %v2561
        %v2594 = vrcp.pop %v2562
        %v2595 = vrcp.pop %v2563
        %v2596 = vrcp.pop %v2564
        %v2597 = vrcp.pop %v2565
        %v2598 = vrcp.pop %v2566
        %v2599 = vrcp.pop %v2567
        %v2600 = vrcp.pop %v2568
        %v2601 = vrcp.pop %v2569
        %v2602 = vrcp.pop %v2570
        %v2603 = vrcp.pop %v2571
        %v2604 = vrcp.pop %v2572
        %v2605 = vrcp.pop %v2573
        %v2606 = vrcp.pop %v2574
        %v2607 = vrcp.pop %v2575
        %v2608 = vrcp.pop %v2576
        %v2609 = vrcp.pop %v2577
        %v2610 = vrcp.pop %v2578
        %v2611 = vrcp.pop %v2579
        %v2612 = vrcp.pop %v2580
        %v2613 = vrcp.pop %v2581
        %v2614 = vrcp.pop %v2582
        %v2615 = vrcp.pop %v2583
        %v2616 = vrcp.pop %v2584
        %v2617 = vrcp.pop %v2585
        %v2618 = vrcp.pop %v2586
        %v2619 = vrcp.pop %v2587
        %v2620 = vrcp.pop %v2588
        %v2621 = vrcp.pop %v2589
        %v2622 = vmul.f32 %v2430, %v2590
        %v2623 = vmul.f32 %v2431, %v2591
        %v2624 = vmul.f32 %v2432, %v2592
        %v2625 = vmul.f32 %v2433, %v2593
        %v2626 = vmul.f32 %v2434, %v2594
        %v2627 = vmul.f32 %v2435, %v2595
        %v2628 = vmul.f32 %v2436, %v2596
        %v2629 = vmul.f32 %v2437, %v2597
        %v2630 = vmul.f32 %v2438, %v2598
        %v2631 = vmul.f32 %v2439, %v2599
        %v2632 = vmul.f32 %v2440, %v2600
        %v2633 = vmul.f32 %v2441, %v2601
        %v2634 = vmul.f32 %v2442, %v2602
        %v2635 = vmul.f32 %v2443, %v2603
        %v2636 = vmul.f32 %v2444, %v2604
        %v2637 = vmul.f32 %v2445, %v2605
        %v2638 = vmul.f32 %v2446, %v2606
        %v2639 = vmul.f32 %v2447, %v2607
        %v2640 = vmul.f32 %v2448, %v2608
        %v2641 = vmul.f32 %v2449, %v2609
        %v2642 = vmul.f32 %v2450, %v2610
        %v2643 = vmul.f32 %v2451, %v2611
        %v2644 = vmul.f32 %v2452, %v2612
        %v2645 = vmul.f32 %v2453, %v2613
        %v2646 = vmul.f32 %v2454, %v2614
        %v2647 = vmul.f32 %v2455, %v2615
        %v2648 = vmul.f32 %v2456, %v2616
        %v2649 = vmul.f32 %v2457, %v2617
        %v2650 = vmul.f32 %v2458, %v2618
        %v2651 = vmul.f32 %v2459, %v2619
        %v2652 = vmul.f32 %v2460, %v2620
        %v2653 = vmul.f32 %v2461, %v2621
        %v2654 = vpack.c.bf16 %v2623, %v2622
        %v2655 = vpack.c.bf16 %v2625, %v2624
        %v2656 = vpack.c.bf16 %v2627, %v2626
        %v2657 = vpack.c.bf16 %v2629, %v2628
        %v2658 = vpack.c.bf16 %v2631, %v2630
        %v2659 = vpack.c.bf16 %v2633, %v2632
        %v2660 = vpack.c.bf16 %v2635, %v2634
        %v2661 = vpack.c.bf16 %v2637, %v2636
        %v2662 = vpack.c.bf16 %v2639, %v2638
        %v2663 = vpack.c.bf16 %v2641, %v2640
        %v2664 = vpack.c.bf16 %v2643, %v2642
        %v2665 = vpack.c.bf16 %v2645, %v2644
        %v2666 = vpack.c.bf16 %v2647, %v2646
        %v2667 = vpack.c.bf16 %v2649, %v2648
        %v2668 = vpack.c.bf16 %v2651, %v2650
        %v2669 = vpack.c.bf16 %v2653, %v2652
        %v2670 = vadd.f32 %v1768, %v2622
        %v2671 = vadd.f32 %v1769, %v2623
        %v2672 = vadd.f32 %v1770, %v2624
        %v2673 = vadd.f32 %v1771, %v2625
        %v2674 = vadd.f32 %v1772, %v2626
        %v2675 = vadd.f32 %v1773, %v2627
        %v2676 = vadd.f32 %v1774, %v2628
        %v2677 = vadd.f32 %v1775, %v2629
        %v2678 = vadd.f32 %v1776, %v2630
        %v2679 = vadd.f32 %v1777, %v2631
        %v2680 = vadd.f32 %v1778, %v2632
        %v2681 = vadd.f32 %v1779, %v2633
        %v2682 = vadd.f32 %v1780, %v2634
        %v2683 = vadd.f32 %v1781, %v2635
        %v2684 = vadd.f32 %v1782, %v2636
        %v2685 = vadd.f32 %v1783, %v2637
        %v2686 = vadd.f32 %v1784, %v2638
        %v2687 = vadd.f32 %v1785, %v2639
        %v2688 = vadd.f32 %v1786, %v2640
        %v2689 = vadd.f32 %v1787, %v2641
        %v2690 = vadd.f32 %v1788, %v2642
        %v2691 = vadd.f32 %v1789, %v2643
        %v2692 = vadd.f32 %v1790, %v2644
        %v2693 = vadd.f32 %v1791, %v2645
        %v2694 = vadd.f32 %v1792, %v2646
        %v2695 = vadd.f32 %v1793, %v2647
        %v2696 = vadd.f32 %v1794, %v2648
        %v2697 = vadd.f32 %v1795, %v2649
        %v2698 = vadd.f32 %v1796, %v2650
        %v2699 = vadd.f32 %v1797, %v2651
        %v2700 = vadd.f32 %v1798, %v2652
        %v2701 = vadd.f32 %v1799, %v2653
        %v2702 = vld [vmem:[#allocation11 + $0x4] sm:$0xf]
        %v2703 = vld [vmem:[#allocation11 + $0x14] sm:$0xf]
        %v2704 = vld [vmem:[#allocation11 + $0x24] sm:$0xf]
        %v2705 = vld [vmem:[#allocation11 + $0x34] sm:$0xf]
        %v2706 = vld [vmem:[#allocation11 + $0x44] sm:$0xf]
        %v2707 = vld [vmem:[#allocation11 + $0x54] sm:$0xf]
        %v2708 = vld [vmem:[#allocation11 + $0x64] sm:$0xf]
        %v2709 = vld [vmem:[#allocation11 + $0x74] sm:$0xf]
        %v2710 = vld [vmem:[#allocation11 + $0x84] sm:$0xf]
        %v2711 = vld [vmem:[#allocation11 + $0x94] sm:$0xf]
        %v2712 = vld [vmem:[#allocation11 + $0xa4] sm:$0xf]
        %v2713 = vld [vmem:[#allocation11 + $0xb4] sm:$0xf]
        %v2714 = vld [vmem:[#allocation11 + $0xc4] sm:$0xf]
        %v2715 = vld [vmem:[#allocation11 + $0xd4] sm:$0xf]
        %v2716 = vld [vmem:[#allocation11 + $0xe4] sm:$0xf]
        %v2717 = vld [vmem:[#allocation11 + $0xf4] sm:$0xf]
        %v2734 = vunpack.c.l.b16 %v2702
        %v2735 = vunpack.c.l.b16 %v2703
        %v2736 = vunpack.c.l.b16 %v2704
        %v2737 = vunpack.c.l.b16 %v2705
        %v2738 = vunpack.c.l.b16 %v2706
        %v2739 = vunpack.c.l.b16 %v2707
        %v2740 = vunpack.c.l.b16 %v2708
        %v2741 = vunpack.c.l.b16 %v2709
        %v2742 = vunpack.c.l.b16 %v2710
        %v2743 = vunpack.c.l.b16 %v2711
        %v2744 = vunpack.c.l.b16 %v2712
        %v2745 = vunpack.c.l.b16 %v2713
        %v2746 = vunpack.c.l.b16 %v2714
        %v2747 = vunpack.c.l.b16 %v2715
        %v2748 = vunpack.c.l.b16 %v2716
        %v2749 = vunpack.c.l.b16 %v2717
        %v2750 = vpack.c.b16 %v2735, %v2734
        %v2751 = vpack.c.b16 %v2737, %v2736
        %v2752 = vpack.c.b16 %v2739, %v2738
        %v2753 = vpack.c.b16 %v2741, %v2740
        %v2754 = vpack.c.b16 %v2743, %v2742
        %v2755 = vpack.c.b16 %v2745, %v2744
        %v2756 = vpack.c.b16 %v2747, %v2746
        %v2757 = vpack.c.b16 %v2749, %v2748
        %2766 = vmatprep.subr.bf16.mxu0 0
        %2767 = vmatpush1.bf16.msra.mxu0 %v2750
        %2768 = vmatprep.subr.bf16.mxu0 0
        %2769 = vmatpush1.bf16.msra.mxu0 %v2751
        %2770 = vmatprep.subr.bf16.mxu0 0
        %2771 = vmatpush1.bf16.msra.mxu0 %v2752
        %2772 = vmatprep.subr.bf16.mxu0 0
        %2773 = vmatpush1.bf16.msra.mxu0 %v2753
        %2774 = vmatprep.subr.bf16.mxu0 0
        %2775 = vmatpush1.bf16.msra.mxu0 %v2754
        %2776 = vmatprep.subr.bf16.mxu0 0
        %2777 = vmatpush1.bf16.msra.mxu0 %v2755
        %2778 = vmatprep.subr.bf16.mxu0 0
        %2779 = vmatpush1.bf16.msra.mxu0 %v2756
        %2780 = vmatprep.subr.bf16.mxu0 0
        %2781 = vmatpush1.bf16.msra.mxu0 %v2757
        %2782 = vmatprep.subr.bf16.mxu0 0
        %2783 = vmatpush1.bf16.msra.mxu0 0
        %2784 = vmatprep.subr.bf16.mxu0 0
        %2785 = vmatpush1.bf16.msra.mxu0 0
        %2786 = vmatprep.subr.bf16.mxu0 0
        %2787 = vmatpush1.bf16.msra.mxu0 0
        %2788 = vmatprep.subr.bf16.mxu0 0
        %2789 = vmatpush1.bf16.msra.mxu0 0
        %2790 = vmatprep.subr.bf16.mxu0 0
        %2791 = vmatpush1.bf16.msra.mxu0 0
        %2792 = vmatprep.subr.bf16.mxu0 0
        %2793 = vmatpush1.bf16.msra.mxu0 0
        %2794 = vmatprep.subr.bf16.mxu0 0
        %2795 = vmatpush1.bf16.msra.mxu0 0
        %2796 = vmatprep.subr.bf16.mxu0 0
        %2797 = vmatpush1.bf16.msra.mxu0 0
        %2798 = vmatprep.mubr.bf16.mxu0 0
        %2799 = vmatmul.mubr.bf16.gmra.mrb[0].mxu0 %v802
        %v2800 = vpop.f32.mrb[0].mxu0
        %v2801 = vadd.f32 0.0, %v2800
        %v2802 = vpop.f32.mrb[0].mxu0
        %v2803 = vpop.f32.mrb[0].mxu0
        %v2804 = vadd.f32 0.0, %v2803
        %v2805 = vpop.f32.mrb[0].mxu0
        %2806 = vmatprep.mubr.bf16.mxu0 0
        %2807 = vmatmul.mubr.bf16.gmra.mrb[0].mxu0 %v803
        %v2808 = vpop.f32.mrb[0].mxu0
        %v2809 = vadd.f32 0.0, %v2808
        %v2810 = vpop.f32.mrb[0].mxu0
        %v2811 = vpop.f32.mrb[0].mxu0
        %v2812 = vadd.f32 0.0, %v2811
        %v2813 = vpop.f32.mrb[0].mxu0
        %2814 = vmatprep.mubr.bf16.mxu0 0
        %2815 = vmatmul.mubr.bf16.gmra.mrb[0].mxu0 %v804
        %v2816 = vpop.f32.mrb[0].mxu0
        %v2817 = vadd.f32 0.0, %v2816
        %v2818 = vpop.f32.mrb[0].mxu0
        %v2819 = vpop.f32.mrb[0].mxu0
        %v2820 = vadd.f32 0.0, %v2819
        %v2821 = vpop.f32.mrb[0].mxu0
        %2822 = vmatprep.mubr.bf16.mxu0 0
        %2823 = vmatmul.mubr.bf16.gmra.mrb[0].mxu0 %v805
        %v2824 = vpop.f32.mrb[0].mxu0
        %v2825 = vadd.f32 0.0, %v2824
        %v2826 = vpop.f32.mrb[0].mxu0
        %v2827 = vpop.f32.mrb[0].mxu0
        %v2828 = vadd.f32 0.0, %v2827
        %v2829 = vpop.f32.mrb[0].mxu0
        %2830 = vmatprep.mubr.bf16.mxu0 0
        %2831 = vmatmul.mubr.bf16.gmra.mrb[0].mxu0 %v806
        %v2832 = vpop.f32.mrb[0].mxu0
        %v2833 = vadd.f32 0.0, %v2832
        %v2834 = vpop.f32.mrb[0].mxu0
        %v2835 = vpop.f32.mrb[0].mxu0
        %v2836 = vadd.f32 0.0, %v2835
        %v2837 = vpop.f32.mrb[0].mxu0
        %2838 = vmatprep.mubr.bf16.mxu0 0
        %2839 = vmatmul.mubr.bf16.gmra.mrb[0].mxu0 %v807
        %v2840 = vpop.f32.mrb[0].mxu0
        %v2841 = vadd.f32 0.0, %v2840
        %v2842 = vpop.f32.mrb[0].mxu0
        %v2843 = vpop.f32.mrb[0].mxu0
        %v2844 = vadd.f32 0.0, %v2843
        %v2845 = vpop.f32.mrb[0].mxu0
        %2846 = vmatprep.mubr.bf16.mxu0 0
        %2847 = vmatmul.mubr.bf16.gmra.mrb[0].mxu0 %v808
        %v2848 = vpop.f32.mrb[0].mxu0
        %v2849 = vadd.f32 0.0, %v2848
        %v2850 = vpop.f32.mrb[0].mxu0
        %v2851 = vpop.f32.mrb[0].mxu0
        %v2852 = vadd.f32 0.0, %v2851
        %v2853 = vpop.f32.mrb[0].mxu0
        %2854 = vmatprep.mubr.bf16.mxu0 0
        %2855 = vmatmul.mubr.bf16.gmra.mrb[0].mxu0 %v809
        %v2856 = vpop.f32.mrb[0].mxu0
        %v2857 = vadd.f32 0.0, %v2856
        %v2858 = vpop.f32.mrb[0].mxu0
        %v2859 = vpop.f32.mrb[0].mxu0
        %v2860 = vadd.f32 0.0, %v2859
        %v2861 = vpop.f32.mrb[0].mxu0
        %2862 = vmatprep.mubr.bf16.mxu0 0
        %2863 = vmatmul.mubr.bf16.gmra.mrb[0].mxu0 %v810
        %v2864 = vpop.f32.mrb[0].mxu0
        %v2865 = vadd.f32 0.0, %v2864
        %v2866 = vpop.f32.mrb[0].mxu0
        %v2867 = vpop.f32.mrb[0].mxu0
        %v2868 = vadd.f32 0.0, %v2867
        %v2869 = vpop.f32.mrb[0].mxu0
        %2870 = vmatprep.mubr.bf16.mxu0 0
        %2871 = vmatmul.mubr.bf16.gmra.mrb[0].mxu0 %v811
        %v2872 = vpop.f32.mrb[0].mxu0
        %v2873 = vadd.f32 0.0, %v2872
        %v2874 = vpop.f32.mrb[0].mxu0
        %v2875 = vpop.f32.mrb[0].mxu0
        %v2876 = vadd.f32 0.0, %v2875
        %v2877 = vpop.f32.mrb[0].mxu0
        %2878 = vmatprep.mubr.bf16.mxu0 0
        %2879 = vmatmul.mubr.bf16.gmra.mrb[0].mxu0 %v812
        %v2880 = vpop.f32.mrb[0].mxu0
        %v2881 = vadd.f32 0.0, %v2880
        %v2882 = vpop.f32.mrb[0].mxu0
        %v2883 = vpop.f32.mrb[0].mxu0
        %v2884 = vadd.f32 0.0, %v2883
        %v2885 = vpop.f32.mrb[0].mxu0
        %2886 = vmatprep.mubr.bf16.mxu0 0
        %2887 = vmatmul.mubr.bf16.gmra.mrb[0].mxu0 %v813
        %v2888 = vpop.f32.mrb[0].mxu0
        %v2889 = vadd.f32 0.0, %v2888
        %v2890 = vpop.f32.mrb[0].mxu0
        %v2891 = vpop.f32.mrb[0].mxu0
        %v2892 = vadd.f32 0.0, %v2891
        %v2893 = vpop.f32.mrb[0].mxu0
        %2894 = vmatprep.mubr.bf16.mxu0 0
        %2895 = vmatmul.mubr.bf16.gmra.mrb[0].mxu0 %v814
        %v2896 = vpop.f32.mrb[0].mxu0
        %v2897 = vadd.f32 0.0, %v2896
        %v2898 = vpop.f32.mrb[0].mxu0
        %v2899 = vpop.f32.mrb[0].mxu0
        %v2900 = vadd.f32 0.0, %v2899
        %v2901 = vpop.f32.mrb[0].mxu0
        %2902 = vmatprep.mubr.bf16.mxu0 0
        %2903 = vmatmul.mubr.bf16.gmra.mrb[0].mxu0 %v815
        %v2904 = vpop.f32.mrb[0].mxu0
        %v2905 = vadd.f32 0.0, %v2904
        %v2906 = vpop.f32.mrb[0].mxu0
        %v2907 = vpop.f32.mrb[0].mxu0
        %v2908 = vadd.f32 0.0, %v2907
        %v2909 = vpop.f32.mrb[0].mxu0
        %2910 = vmatprep.mubr.bf16.mxu0 0
        %2911 = vmatmul.mubr.bf16.gmra.mrb[0].mxu0 %v816
        %v2912 = vpop.f32.mrb[0].mxu0
        %v2913 = vadd.f32 0.0, %v2912
        %v2914 = vpop.f32.mrb[0].mxu0
        %v2915 = vpop.f32.mrb[0].mxu0
        %v2916 = vadd.f32 0.0, %v2915
        %v2917 = vpop.f32.mrb[0].mxu0
        %2918 = vmatprep.mubr.bf16.mxu0 0
        %2919 = vmatmul.mubr.bf16.gmra.mrb[0].mxu0 %v817
        %v2920 = vpop.f32.mrb[0].mxu0
        %v2921 = vadd.f32 0.0, %v2920
        %v2922 = vpop.f32.mrb[0].mxu0
        %v2923 = vpop.f32.mrb[0].mxu0
        %v2924 = vadd.f32 0.0, %v2923
        %v2925 = vpop.f32.mrb[0].mxu0
        %2926 = vdwg.mxu0
        %v2927 = vpack.c.bf16 %v2804, %v2801
        %v2928 = vpack.c.bf16 %v2812, %v2809
        %v2929 = vpack.c.bf16 %v2820, %v2817
        %v2930 = vpack.c.bf16 %v2828, %v2825
        %v2931 = vpack.c.bf16 %v2836, %v2833
        %v2932 = vpack.c.bf16 %v2844, %v2841
        %v2933 = vpack.c.bf16 %v2852, %v2849
        %v2934 = vpack.c.bf16 %v2860, %v2857
        %v2935 = vpack.c.bf16 %v2868, %v2865
        %v2936 = vpack.c.bf16 %v2876, %v2873
        %v2937 = vpack.c.bf16 %v2884, %v2881
        %v2938 = vpack.c.bf16 %v2892, %v2889
        %v2939 = vpack.c.bf16 %v2900, %v2897
        %v2940 = vpack.c.bf16 %v2908, %v2905
        %v2941 = vpack.c.bf16 %v2916, %v2913
        %v2942 = vpack.c.bf16 %v2924, %v2921
        %2943 = vxpose.xlu0.c.b16.start [1/8] %v2654, 128
        %2944 = vxpose.xlu0.c.b16.cont [2/8] %v2655, 128
        %2945 = vxpose.xlu0.c.b16.cont [3/8] %v2656, 128
        %2946 = vxpose.xlu0.c.b16.cont [4/8] %v2657, 128
        %2947 = vxpose.xlu0.c.b16.cont [5/8] %v2658, 128
        %2948 = vxpose.xlu0.c.b16.cont [6/8] %v2659, 128
        %2949 = vxpose.xlu0.c.b16.cont [7/8] %v2660, 128
        %2950 = vxpose.xlu0.c.b16.end [8/8] %v2661, 128
        %v2951 = vpop.trf.xlu0
        %v2952 = vpop.trf.xlu0
        %v2953 = vpop.trf.xlu0
        %v2954 = vpop.trf.xlu0
        %v2955 = vpop.trf.xlu0
        %v2956 = vpop.trf.xlu0
        %v2957 = vpop.trf.xlu0
        %v2958 = vpop.trf.xlu0
        %2959 = vxpose.xlu0.c.b16.start [1/8] %v2662, 128
        %2960 = vxpose.xlu0.c.b16.cont [2/8] %v2663, 128
        %2961 = vxpose.xlu0.c.b16.cont [3/8] %v2664, 128
        %2962 = vxpose.xlu0.c.b16.cont [4/8] %v2665, 128
        %2963 = vxpose.xlu0.c.b16.cont [5/8] %v2666, 128
        %2964 = vxpose.xlu0.c.b16.cont [6/8] %v2667, 128
        %2965 = vxpose.xlu0.c.b16.cont [7/8] %v2668, 128
        %2966 = vxpose.xlu0.c.b16.end [8/8] %v2669, 128
        %v2967 = vpop.trf.xlu0
        %v2968 = vpop.trf.xlu0
        %v2969 = vpop.trf.xlu0
        %v2970 = vpop.trf.xlu0
        %v2971 = vpop.trf.xlu0
        %v2972 = vpop.trf.xlu0
        %v2973 = vpop.trf.xlu0
        %v2974 = vpop.trf.xlu0
        %2975 = vmatprep.subr.bf16.mxu0 0
        %2976 = vmatpush1.bf16.msra.mxu0 %v2927
        %2977 = vmatprep.subr.bf16.mxu0 0
        %2978 = vmatpush1.bf16.msra.mxu0 %v2928
        %2979 = vmatprep.subr.bf16.mxu0 0
        %2980 = vmatpush1.bf16.msra.mxu0 %v2929
        %2981 = vmatprep.subr.bf16.mxu0 0
        %2982 = vmatpush1.bf16.msra.mxu0 %v2930
        %2983 = vmatprep.subr.bf16.mxu0 0
        %2984 = vmatpush1.bf16.msra.mxu0 %v2931
        %2985 = vmatprep.subr.bf16.mxu0 0
        %2986 = vmatpush1.bf16.msra.mxu0 %v2932
        %2987 = vmatprep.subr.bf16.mxu0 0
        %2988 = vmatpush1.bf16.msra.mxu0 %v2933
        %2989 = vmatprep.subr.bf16.mxu0 0
        %2990 = vmatpush1.bf16.msra.mxu0 %v2934
        %2991 = vmatprep.subr.bf16.mxu0 0
        %2992 = vmatpush1.bf16.msra.mxu0 %v2935
        %2993 = vmatprep.subr.bf16.mxu0 0
        %2994 = vmatpush1.bf16.msra.mxu0 %v2936
        %2995 = vmatprep.subr.bf16.mxu0 0
        %2996 = vmatpush1.bf16.msra.mxu0 %v2937
        %2997 = vmatprep.subr.bf16.mxu0 0
        %2998 = vmatpush1.bf16.msra.mxu0 %v2938
        %2999 = vmatprep.subr.bf16.mxu0 0
        %3000 = vmatpush1.bf16.msra.mxu0 %v2939
        %3001 = vmatprep.subr.bf16.mxu0 0
        %3002 = vmatpush1.bf16.msra.mxu0 %v2940
        %3003 = vmatprep.subr.bf16.mxu0 0
        %3004 = vmatpush1.bf16.msra.mxu0 %v2941
        %3005 = vmatprep.subr.bf16.mxu0 0
        %3006 = vmatpush1.bf16.msra.mxu0 %v2942
        %3007 = vmatprep.mubr.bf16.mxu0 %v2967
        %3008 = vmatmul.mubr.bf16.gmra.mrb[0].mxu0 %v2951
        %v3009 = vpop.f32.mrb[0].mxu0
        %v3010 = vadd.f32 0.0, %v3009
        %v3011 = vpop.f32.mrb[0].mxu0
        %v3012 = vpop.f32.mrb[0].mxu0
        %v3013 = vadd.f32 0.0, %v3012
        %v3014 = vpop.f32.mrb[0].mxu0
        %3015 = vmatprep.mubr.bf16.mxu0 %v2968
        %3016 = vmatmul.mubr.bf16.gmra.mrb[0].mxu0 %v2952
        %v3017 = vpop.f32.mrb[0].mxu0
        %v3018 = vadd.f32 0.0, %v3017
        %v3019 = vpop.f32.mrb[0].mxu0
        %v3020 = vpop.f32.mrb[0].mxu0
        %v3021 = vadd.f32 0.0, %v3020
        %v3022 = vpop.f32.mrb[0].mxu0
        %3023 = vmatprep.mubr.bf16.mxu0 %v2969
        %3024 = vmatmul.mubr.bf16.gmra.mrb[0].mxu0 %v2953
        %v3025 = vpop.f32.mrb[0].mxu0
        %v3026 = vadd.f32 0.0, %v3025
        %v3027 = vpop.f32.mrb[0].mxu0
        %v3028 = vpop.f32.mrb[0].mxu0
        %v3029 = vadd.f32 0.0, %v3028
        %v3030 = vpop.f32.mrb[0].mxu0
        %3031 = vmatprep.mubr.bf16.mxu0 %v2970
        %3032 = vmatmul.mubr.bf16.gmra.mrb[0].mxu0 %v2954
        %v3033 = vpop.f32.mrb[0].mxu0
        %v3034 = vadd.f32 0.0, %v3033
        %v3035 = vpop.f32.mrb[0].mxu0
        %v3036 = vpop.f32.mrb[0].mxu0
        %v3037 = vadd.f32 0.0, %v3036
        %v3038 = vpop.f32.mrb[0].mxu0
        %3039 = vmatprep.mubr.bf16.mxu0 %v2971
        %3040 = vmatmul.mubr.bf16.gmra.mrb[0].mxu0 %v2955
        %v3041 = vpop.f32.mrb[0].mxu0
        %v3042 = vadd.f32 0.0, %v3041
        %v3043 = vpop.f32.mrb[0].mxu0
        %v3044 = vpop.f32.mrb[0].mxu0
        %v3045 = vadd.f32 0.0, %v3044
        %v3046 = vpop.f32.mrb[0].mxu0
        %3047 = vmatprep.mubr.bf16.mxu0 %v2972
        %3048 = vmatmul.mubr.bf16.gmra.mrb[0].mxu0 %v2956
        %v3049 = vpop.f32.mrb[0].mxu0
        %v3050 = vadd.f32 0.0, %v3049
        %v3051 = vpop.f32.mrb[0].mxu0
        %v3052 = vpop.f32.mrb[0].mxu0
        %v3053 = vadd.f32 0.0, %v3052
        %v3054 = vpop.f32.mrb[0].mxu0
        %3055 = vmatprep.mubr.bf16.mxu0 %v2973
        %3056 = vmatmul.mubr.bf16.gmra.mrb[0].mxu0 %v2957
        %v3057 = vpop.f32.mrb[0].mxu0
        %v3058 = vadd.f32 0.0, %v3057
        %v3059 = vpop.f32.mrb[0].mxu0
        %v3060 = vpop.f32.mrb[0].mxu0
        %v3061 = vadd.f32 0.0, %v3060
        %v3062 = vpop.f32.mrb[0].mxu0
        %3063 = vmatprep.mubr.bf16.mxu0 %v2974
        %3064 = vmatmul.mubr.bf16.gmra.mrb[0].mxu0 %v2958
        %v3065 = vpop.f32.mrb[0].mxu0
        %v3066 = vadd.f32 0.0, %v3065
        %v3067 = vpop.f32.mrb[0].mxu0
        %v3068 = vpop.f32.mrb[0].mxu0
        %v3069 = vadd.f32 0.0, %v3068
        %v3070 = vpop.f32.mrb[0].mxu0
        %3071 = vdwg.mxu0
        %3072 = vxpose.xlu0.c.b16.start [1/8] %v1752, 128
        %3073 = vxpose.xlu0.c.b16.cont [2/8] %v1753, 128
        %3074 = vxpose.xlu0.c.b16.cont [3/8] %v1754, 128
        %3075 = vxpose.xlu0.c.b16.cont [4/8] %v1755, 128
        %3076 = vxpose.xlu0.c.b16.cont [5/8] %v1756, 128
        %3077 = vxpose.xlu0.c.b16.cont [6/8] %v1757, 128
        %3078 = vxpose.xlu0.c.b16.cont [7/8] %v1758, 128
        %3079 = vxpose.xlu0.c.b16.end [8/8] %v1759, 128
        %v3080 = vpop.trf.xlu0
        %v3081 = vpop.trf.xlu0
        %v3082 = vpop.trf.xlu0
        %v3083 = vpop.trf.xlu0
        %v3084 = vpop.trf.xlu0
        %v3085 = vpop.trf.xlu0
        %v3086 = vpop.trf.xlu0
        %v3087 = vpop.trf.xlu0
        %3088 = vxpose.xlu0.c.b16.start [1/8] %v1760, 128
        %3089 = vxpose.xlu0.c.b16.cont [2/8] %v1761, 128
        %3090 = vxpose.xlu0.c.b16.cont [3/8] %v1762, 128
        %3091 = vxpose.xlu0.c.b16.cont [4/8] %v1763, 128
        %3092 = vxpose.xlu0.c.b16.cont [5/8] %v1764, 128
        %3093 = vxpose.xlu0.c.b16.cont [6/8] %v1765, 128
        %3094 = vxpose.xlu0.c.b16.cont [7/8] %v1766, 128
        %3095 = vxpose.xlu0.c.b16.end [8/8] %v1767, 128
        %v3096 = vpop.trf.xlu0
        %v3097 = vpop.trf.xlu0
        %v3098 = vpop.trf.xlu0
        %v3099 = vpop.trf.xlu0
        %v3100 = vpop.trf.xlu0
        %v3101 = vpop.trf.xlu0
        %v3102 = vpop.trf.xlu0
        %v3103 = vpop.trf.xlu0
        %3104 = vmatprep.subr.bf16.mxu0 0
        %3105 = vmatpush1.bf16.msra.mxu0 %v2025
        %3106 = vmatprep.subr.bf16.mxu0 0
        %3107 = vmatpush1.bf16.msra.mxu0 %v2026
        %3108 = vmatprep.subr.bf16.mxu0 0
        %3109 = vmatpush1.bf16.msra.mxu0 %v2027
        %3110 = vmatprep.subr.bf16.mxu0 0
        %3111 = vmatpush1.bf16.msra.mxu0 %v2028
        %3112 = vmatprep.subr.bf16.mxu0 0
        %3113 = vmatpush1.bf16.msra.mxu0 %v2029
        %3114 = vmatprep.subr.bf16.mxu0 0
        %3115 = vmatpush1.bf16.msra.mxu0 %v2030
        %3116 = vmatprep.subr.bf16.mxu0 0
        %3117 = vmatpush1.bf16.msra.mxu0 %v2031
        %3118 = vmatprep.subr.bf16.mxu0 0
        %3119 = vmatpush1.bf16.msra.mxu0 %v2032
        %3120 = vmatprep.subr.bf16.mxu0 0
        %3121 = vmatpush1.bf16.msra.mxu0 %v2033
        %3122 = vmatprep.subr.bf16.mxu0 0
        %3123 = vmatpush1.bf16.msra.mxu0 %v2034
        %3124 = vmatprep.subr.bf16.mxu0 0
        %3125 = vmatpush1.bf16.msra.mxu0 %v2035
        %3126 = vmatprep.subr.bf16.mxu0 0
        %3127 = vmatpush1.bf16.msra.mxu0 %v2036
        %3128 = vmatprep.subr.bf16.mxu0 0
        %3129 = vmatpush1.bf16.msra.mxu0 %v2037
        %3130 = vmatprep.subr.bf16.mxu0 0
        %3131 = vmatpush1.bf16.msra.mxu0 %v2038
        %3132 = vmatprep.subr.bf16.mxu0 0
        %3133 = vmatpush1.bf16.msra.mxu0 %v2039
        %3134 = vmatprep.subr.bf16.mxu0 0
        %3135 = vmatpush1.bf16.msra.mxu0 %v2040
        %3136 = vmatprep.mubr.bf16.mxu0 %v3096
        %3137 = vmatmul.mubr.bf16.gmra.mrb[0].mxu0 %v3080
        %v3138 = vpop.f32.mrb[0].mxu0
        %v3139 = vadd.f32 %v3010, %v3138
        %v3140 = vpop.f32.mrb[0].mxu0
        %v3141 = vpop.f32.mrb[0].mxu0
        %v3142 = vadd.f32 %v3013, %v3141
        %v3143 = vpop.f32.mrb[0].mxu0
        %3144 = vmatprep.mubr.bf16.mxu0 %v3097
        %3145 = vmatmul.mubr.bf16.gmra.mrb[0].mxu0 %v3081
        %v3146 = vpop.f32.mrb[0].mxu0
        %v3147 = vadd.f32 %v3018, %v3146
        %v3148 = vpop.f32.mrb[0].mxu0
        %v3149 = vpop.f32.mrb[0].mxu0
        %v3150 = vadd.f32 %v3021, %v3149
        %v3151 = vpop.f32.mrb[0].mxu0
        %3152 = vmatprep.mubr.bf16.mxu0 %v3098
        %3153 = vmatmul.mubr.bf16.gmra.mrb[0].mxu0 %v3082
        %v3154 = vpop.f32.mrb[0].mxu0
        %v3155 = vadd.f32 %v3026, %v3154
        %v3156 = vpop.f32.mrb[0].mxu0
        %v3157 = vpop.f32.mrb[0].mxu0
        %v3158 = vadd.f32 %v3029, %v3157
        %v3159 = vpop.f32.mrb[0].mxu0
        %3160 = vmatprep.mubr.bf16.mxu0 %v3099
        %3161 = vmatmul.mubr.bf16.gmra.mrb[0].mxu0 %v3083
        %v3162 = vpop.f32.mrb[0].mxu0
        %v3163 = vadd.f32 %v3034, %v3162
        %v3164 = vpop.f32.mrb[0].mxu0
        %v3165 = vpop.f32.mrb[0].mxu0
        %v3166 = vadd.f32 %v3037, %v3165
        %v3167 = vpop.f32.mrb[0].mxu0
        %3168 = vmatprep.mubr.bf16.mxu0 %v3100
        %3169 = vmatmul.mubr.bf16.gmra.mrb[0].mxu0 %v3084
        %v3170 = vpop.f32.mrb[0].mxu0
        %v3171 = vadd.f32 %v3042, %v3170
        %v3172 = vpop.f32.mrb[0].mxu0
        %v3173 = vpop.f32.mrb[0].mxu0
        %v3174 = vadd.f32 %v3045, %v3173
        %v3175 = vpop.f32.mrb[0].mxu0
        %3176 = vmatprep.mubr.bf16.mxu0 %v3101
        %3177 = vmatmul.mubr.bf16.gmra.mrb[0].mxu0 %v3085
        %v3178 = vpop.f32.mrb[0].mxu0
        %v3179 = vadd.f32 %v3050, %v3178
        %v3180 = vpop.f32.mrb[0].mxu0
        %v3181 = vpop.f32.mrb[0].mxu0
        %v3182 = vadd.f32 %v3053, %v3181
        %v3183 = vpop.f32.mrb[0].mxu0
        %3184 = vmatprep.mubr.bf16.mxu0 %v3102
        %3185 = vmatmul.mubr.bf16.gmra.mrb[0].mxu0 %v3086
        %v3186 = vpop.f32.mrb[0].mxu0
        %v3187 = vadd.f32 %v3058, %v3186
        %v3188 = vpop.f32.mrb[0].mxu0
        %v3189 = vpop.f32.mrb[0].mxu0
        %v3190 = vadd.f32 %v3061, %v3189
        %v3191 = vpop.f32.mrb[0].mxu0
        %3192 = vmatprep.mubr.bf16.mxu0 %v3103
        %3193 = vmatmul.mubr.bf16.gmra.mrb[0].mxu0 %v3087
        %v3194 = vpop.f32.mrb[0].mxu0
        %v3195 = vadd.f32 %v3066, %v3194
        %v3196 = vpop.f32.mrb[0].mxu0
        %v3197 = vpop.f32.mrb[0].mxu0
        %v3198 = vadd.f32 %v3069, %v3197
        %v3199 = vpop.f32.mrb[0].mxu0
        %3200 = vdwg.mxu0
        %v3201 = vld [vmem:[#allocation2 + $0x2] sm:$0x1]
        %3202 = vset.pattern.permute.xlu0 2
        %3203 = vperm.xlu0 %3202, %v981
        %v3204 = vpop.permute.xlu0 %3203
        %3206 = vset.pattern.permute.xlu0 2
        %3207 = vperm.xlu0 %3206, %v984
        %v3208 = vpop.permute.xlu0 %3207
        %3210 = vset.pattern.permute.xlu0 2
        %3211 = vperm.xlu0 %3210, %v989
        %v3212 = vpop.permute.xlu0 %3211
        %3214 = vset.pattern.permute.xlu0 2
        %3215 = vperm.xlu0 %3214, %v992
        %v3216 = vpop.permute.xlu0 %3215
        %3218 = vset.pattern.permute.xlu0 2
        %3219 = vperm.xlu0 %3218, %v997
        %v3220 = vpop.permute.xlu0 %3219
        %3222 = vset.pattern.permute.xlu0 2
        %3223 = vperm.xlu0 %3222, %v1000
        %v3224 = vpop.permute.xlu0 %3223
        %3226 = vset.pattern.permute.xlu0 2
        %3227 = vperm.xlu0 %3226, %v1005
        %v3228 = vpop.permute.xlu0 %3227
        %3230 = vset.pattern.permute.xlu0 2
        %3231 = vperm.xlu0 %3230, %v1008
        %v3232 = vpop.permute.xlu0 %3231
        %3234 = vset.pattern.permute.xlu0 2
        %3235 = vperm.xlu0 %3234, %v1013
        %v3236 = vpop.permute.xlu0 %3235
        %3238 = vset.pattern.permute.xlu0 2
        %3239 = vperm.xlu0 %3238, %v1016
        %v3240 = vpop.permute.xlu0 %3239
        %3242 = vset.pattern.permute.xlu0 2
        %3243 = vperm.xlu0 %3242, %v1021
        %v3244 = vpop.permute.xlu0 %3243
        %3246 = vset.pattern.permute.xlu0 2
        %3247 = vperm.xlu0 %3246, %v1024
        %v3248 = vpop.permute.xlu0 %3247
        %3250 = vset.pattern.permute.xlu0 2
        %3251 = vperm.xlu0 %3250, %v1029
        %v3252 = vpop.permute.xlu0 %3251
        %3254 = vset.pattern.permute.xlu0 2
        %3255 = vperm.xlu0 %3254, %v1032
        %v3256 = vpop.permute.xlu0 %3255
        %3258 = vset.pattern.permute.xlu0 2
        %3259 = vperm.xlu0 %3258, %v1037
        %v3260 = vpop.permute.xlu0 %3259
        %3262 = vset.pattern.permute.xlu0 2
        %3263 = vperm.xlu0 %3262, %v1040
        %v3264 = vpop.permute.xlu0 %3263
        %3266 = vset.pattern.permute.xlu0 2
        %3267 = vperm.xlu0 %3266, %v1045
        %v3268 = vpop.permute.xlu0 %3267
        %3270 = vset.pattern.permute.xlu0 2
        %3271 = vperm.xlu0 %3270, %v1048
        %v3272 = vpop.permute.xlu0 %3271
        %3274 = vset.pattern.permute.xlu0 2
        %3275 = vperm.xlu0 %3274, %v1053
        %v3276 = vpop.permute.xlu0 %3275
        %3278 = vset.pattern.permute.xlu0 2
        %3279 = vperm.xlu0 %3278, %v1056
        %v3280 = vpop.permute.xlu0 %3279
        %3282 = vset.pattern.permute.xlu0 2
        %3283 = vperm.xlu0 %3282, %v1061
        %v3284 = vpop.permute.xlu0 %3283
        %3286 = vset.pattern.permute.xlu0 2
        %3287 = vperm.xlu0 %3286, %v1064
        %v3288 = vpop.permute.xlu0 %3287
        %3290 = vset.pattern.permute.xlu0 2
        %3291 = vperm.xlu0 %3290, %v1069
        %v3292 = vpop.permute.xlu0 %3291
        %3294 = vset.pattern.permute.xlu0 2
        %3295 = vperm.xlu0 %3294, %v1072
        %v3296 = vpop.permute.xlu0 %3295
        %3298 = vset.pattern.permute.xlu0 2
        %3299 = vperm.xlu0 %3298, %v1077
        %v3300 = vpop.permute.xlu0 %3299
        %3302 = vset.pattern.permute.xlu0 2
        %3303 = vperm.xlu0 %3302, %v1080
        %v3304 = vpop.permute.xlu0 %3303
        %3306 = vset.pattern.permute.xlu0 2
        %3307 = vperm.xlu0 %3306, %v1085
        %v3308 = vpop.permute.xlu0 %3307
        %3310 = vset.pattern.permute.xlu0 2
        %3311 = vperm.xlu0 %3310, %v1088
        %v3312 = vpop.permute.xlu0 %3311
        %3314 = vset.pattern.permute.xlu0 2
        %3315 = vperm.xlu0 %3314, %v1093
        %v3316 = vpop.permute.xlu0 %3315
        %3318 = vset.pattern.permute.xlu0 2
        %3319 = vperm.xlu0 %3318, %v1096
        %v3320 = vpop.permute.xlu0 %3319
        %3322 = vset.pattern.permute.xlu0 2
        %3323 = vperm.xlu0 %3322, %v1101
        %v3324 = vpop.permute.xlu0 %3323
        %3326 = vset.pattern.permute.xlu0 2
        %3327 = vperm.xlu0 %3326, %v1104
        %v3328 = vpop.permute.xlu0 %3327
        %v3330 = vlaneseq
        %v3331 = vshrl.u32 %v3330, 7
        %v3332 = vsub.s32 0, %v3331
        %v3333 = vrot.slane %v3201, %v3332
        %v3334 = vadd.f32 %v3204, %v3333
        %v3335 = vadd.f32 %v3208, %v3333
        %v3336 = vadd.f32 %v3212, %v3333
        %v3337 = vadd.f32 %v3216, %v3333
        %v3338 = vadd.f32 %v3220, %v3333
        %v3339 = vadd.f32 %v3224, %v3333
        %v3340 = vadd.f32 %v3228, %v3333
        %v3341 = vadd.f32 %v3232, %v3333
        %v3342 = vadd.f32 %v3236, %v3333
        %v3343 = vadd.f32 %v3240, %v3333
        %v3344 = vadd.f32 %v3244, %v3333
        %v3345 = vadd.f32 %v3248, %v3333
        %v3346 = vadd.f32 %v3252, %v3333
        %v3347 = vadd.f32 %v3256, %v3333
        %v3348 = vadd.f32 %v3260, %v3333
        %v3349 = vadd.f32 %v3264, %v3333
        %v3350 = vadd.f32 %v3268, %v3333
        %v3351 = vadd.f32 %v3272, %v3333
        %v3352 = vadd.f32 %v3276, %v3333
        %v3353 = vadd.f32 %v3280, %v3333
        %v3354 = vadd.f32 %v3284, %v3333
        %v3355 = vadd.f32 %v3288, %v3333
        %v3356 = vadd.f32 %v3292, %v3333
        %v3357 = vadd.f32 %v3296, %v3333
        %v3358 = vadd.f32 %v3300, %v3333
        %v3359 = vadd.f32 %v3304, %v3333
        %v3360 = vadd.f32 %v3308, %v3333
        %v3361 = vadd.f32 %v3312, %v3333
        %v3362 = vadd.f32 %v3316, %v3333
        %v3363 = vadd.f32 %v3320, %v3333
        %v3364 = vadd.f32 %v3324, %v3333
        %v3365 = vadd.f32 %v3328, %v3333
        %v3366 = vmax.f32 %v3334, 0.0
        %v3367 = vmax.f32 %v3335, 0.0
        %v3368 = vmax.f32 %v3336, 0.0
        %v3369 = vmax.f32 %v3337, 0.0
        %v3370 = vmax.f32 %v3338, 0.0
        %v3371 = vmax.f32 %v3339, 0.0
        %v3372 = vmax.f32 %v3340, 0.0
        %v3373 = vmax.f32 %v3341, 0.0
        %v3374 = vmax.f32 %v3342, 0.0
        %v3375 = vmax.f32 %v3343, 0.0
        %v3376 = vmax.f32 %v3344, 0.0
        %v3377 = vmax.f32 %v3345, 0.0
        %v3378 = vmax.f32 %v3346, 0.0
        %v3379 = vmax.f32 %v3347, 0.0
        %v3380 = vmax.f32 %v3348, 0.0
        %v3381 = vmax.f32 %v3349, 0.0
        %v3382 = vmax.f32 %v3350, 0.0
        %v3383 = vmax.f32 %v3351, 0.0
        %v3384 = vmax.f32 %v3352, 0.0
        %v3385 = vmax.f32 %v3353, 0.0
        %v3386 = vmax.f32 %v3354, 0.0
        %v3387 = vmax.f32 %v3355, 0.0
        %v3388 = vmax.f32 %v3356, 0.0
        %v3389 = vmax.f32 %v3357, 0.0
        %v3390 = vmax.f32 %v3358, 0.0
        %v3391 = vmax.f32 %v3359, 0.0
        %v3392 = vmax.f32 %v3360, 0.0
        %v3393 = vmax.f32 %v3361, 0.0
        %v3394 = vmax.f32 %v3362, 0.0
        %v3395 = vmax.f32 %v3363, 0.0
        %v3396 = vmax.f32 %v3364, 0.0
        %v3397 = vmax.f32 %v3365, 0.0
        %v3398 = vmul.f32 %v3366, %v850
        %v3399 = vmul.f32 %v3367, %v851
        %v3400 = vmul.f32 %v3368, %v852
        %v3401 = vmul.f32 %v3369, %v853
        %v3402 = vmul.f32 %v3370, %v854
        %v3403 = vmul.f32 %v3371, %v855
        %v3404 = vmul.f32 %v3372, %v856
        %v3405 = vmul.f32 %v3373, %v857
        %v3406 = vmul.f32 %v3374, %v858
        %v3407 = vmul.f32 %v3375, %v859
        %v3408 = vmul.f32 %v3376, %v860
        %v3409 = vmul.f32 %v3377, %v861
        %v3410 = vmul.f32 %v3378, %v862
        %v3411 = vmul.f32 %v3379, %v863
        %v3412 = vmul.f32 %v3380, %v864
        %v3413 = vmul.f32 %v3381, %v865
        %v3414 = vmul.f32 %v3382, %v866
        %v3415 = vmul.f32 %v3383, %v867
        %v3416 = vmul.f32 %v3384, %v868
        %v3417 = vmul.f32 %v3385, %v869
        %v3418 = vmul.f32 %v3386, %v870
        %v3419 = vmul.f32 %v3387, %v871
        %v3420 = vmul.f32 %v3388, %v872
        %v3421 = vmul.f32 %v3389, %v873
        %v3422 = vmul.f32 %v3390, %v874
        %v3423 = vmul.f32 %v3391, %v875
        %v3424 = vmul.f32 %v3392, %v876
        %v3425 = vmul.f32 %v3393, %v877
        %v3426 = vmul.f32 %v3394, %v878
        %v3427 = vmul.f32 %v3395, %v879
        %v3428 = vmul.f32 %v3396, %v880
        %v3429 = vmul.f32 %v3397, %v881
        %3430 = vmax.xlane.f32.xlu0 %v3398
        %v3431 = vpop.xlane.xlu0 %3430
        %3432 = vmax.xlane.f32.xlu0 %v3399
        %v3433 = vpop.xlane.xlu0 %3432
        %3434 = vmax.xlane.f32.xlu0 %v3400
        %v3435 = vpop.xlane.xlu0 %3434
        %3436 = vmax.xlane.f32.xlu0 %v3401
        %v3437 = vpop.xlane.xlu0 %3436
        %3438 = vmax.xlane.f32.xlu0 %v3402
        %v3439 = vpop.xlane.xlu0 %3438
        %3440 = vmax.xlane.f32.xlu0 %v3403
        %v3441 = vpop.xlane.xlu0 %3440
        %3442 = vmax.xlane.f32.xlu0 %v3404
        %v3443 = vpop.xlane.xlu0 %3442
        %3444 = vmax.xlane.f32.xlu0 %v3405
        %v3445 = vpop.xlane.xlu0 %3444
        %3446 = vmax.xlane.f32.xlu0 %v3406
        %v3447 = vpop.xlane.xlu0 %3446
        %3448 = vmax.xlane.f32.xlu0 %v3407
        %v3449 = vpop.xlane.xlu0 %3448
        %3450 = vmax.xlane.f32.xlu0 %v3408
        %v3451 = vpop.xlane.xlu0 %3450
        %3452 = vmax.xlane.f32.xlu0 %v3409
        %v3453 = vpop.xlane.xlu0 %3452
        %3454 = vmax.xlane.f32.xlu0 %v3410
        %v3455 = vpop.xlane.xlu0 %3454
        %3456 = vmax.xlane.f32.xlu0 %v3411
        %v3457 = vpop.xlane.xlu0 %3456
        %3458 = vmax.xlane.f32.xlu0 %v3412
        %v3459 = vpop.xlane.xlu0 %3458
        %3460 = vmax.xlane.f32.xlu0 %v3413
        %v3461 = vpop.xlane.xlu0 %3460
        %3462 = vmax.xlane.f32.xlu0 %v3414
        %v3463 = vpop.xlane.xlu0 %3462
        %3464 = vmax.xlane.f32.xlu0 %v3415
        %v3465 = vpop.xlane.xlu0 %3464
        %3466 = vmax.xlane.f32.xlu0 %v3416
        %v3467 = vpop.xlane.xlu0 %3466
        %3468 = vmax.xlane.f32.xlu0 %v3417
        %v3469 = vpop.xlane.xlu0 %3468
        %3470 = vmax.xlane.f32.xlu0 %v3418
        %v3471 = vpop.xlane.xlu0 %3470
        %3472 = vmax.xlane.f32.xlu0 %v3419
        %v3473 = vpop.xlane.xlu0 %3472
        %3474 = vmax.xlane.f32.xlu0 %v3420
        %v3475 = vpop.xlane.xlu0 %3474
        %3476 = vmax.xlane.f32.xlu0 %v3421
        %v3477 = vpop.xlane.xlu0 %3476
        %3478 = vmax.xlane.f32.xlu0 %v3422
        %v3479 = vpop.xlane.xlu0 %3478
        %3480 = vmax.xlane.f32.xlu0 %v3423
        %v3481 = vpop.xlane.xlu0 %3480
        %3482 = vmax.xlane.f32.xlu0 %v3424
        %v3483 = vpop.xlane.xlu0 %3482
        %3484 = vmax.xlane.f32.xlu0 %v3425
        %v3485 = vpop.xlane.xlu0 %3484
        %3486 = vmax.xlane.f32.xlu0 %v3426
        %v3487 = vpop.xlane.xlu0 %3486
        %3488 = vmax.xlane.f32.xlu0 %v3427
        %v3489 = vpop.xlane.xlu0 %3488
        %3490 = vmax.xlane.f32.xlu0 %v3428
        %v3491 = vpop.xlane.xlu0 %3490
        %3492 = vmax.xlane.f32.xlu0 %v3429
        %v3493 = vpop.xlane.xlu0 %3492
        %v3494 = vsub.f32 %v3398, %v3431
        %v3495 = vsub.f32 %v3399, %v3433
        %v3496 = vsub.f32 %v3400, %v3435
        %v3497 = vsub.f32 %v3401, %v3437
        %v3498 = vsub.f32 %v3402, %v3439
        %v3499 = vsub.f32 %v3403, %v3441
        %v3500 = vsub.f32 %v3404, %v3443
        %v3501 = vsub.f32 %v3405, %v3445
        %v3502 = vsub.f32 %v3406, %v3447
        %v3503 = vsub.f32 %v3407, %v3449
        %v3504 = vsub.f32 %v3408, %v3451
        %v3505 = vsub.f32 %v3409, %v3453
        %v3506 = vsub.f32 %v3410, %v3455
        %v3507 = vsub.f32 %v3411, %v3457
        %v3508 = vsub.f32 %v3412, %v3459
        %v3509 = vsub.f32 %v3413, %v3461
        %v3510 = vsub.f32 %v3414, %v3463
        %v3511 = vsub.f32 %v3415, %v3465
        %v3512 = vsub.f32 %v3416, %v3467
        %v3513 = vsub.f32 %v3417, %v3469
        %v3514 = vsub.f32 %v3418, %v3471
        %v3515 = vsub.f32 %v3419, %v3473
        %v3516 = vsub.f32 %v3420, %v3475
        %v3517 = vsub.f32 %v3421, %v3477
        %v3518 = vsub.f32 %v3422, %v3479
        %v3519 = vsub.f32 %v3423, %v3481
        %v3520 = vsub.f32 %v3424, %v3483
        %v3521 = vsub.f32 %v3425, %v3485
        %v3522 = vsub.f32 %v3426, %v3487
        %v3523 = vsub.f32 %v3427, %v3489
        %v3524 = vsub.f32 %v3428, %v3491
        %v3525 = vsub.f32 %v3429, %v3493
        %v3526 = vmul.f32 %v3494, 1.442695
        %v3527 = vpow.pop %v3526
        %v3528 = vmul.f32 %v3495, 1.442695
        %v3529 = vpow.pop %v3528
        %v3530 = vmul.f32 %v3496, 1.442695
        %v3531 = vpow.pop %v3530
        %v3532 = vmul.f32 %v3497, 1.442695
        %v3533 = vpow.pop %v3532
        %v3534 = vmul.f32 %v3498, 1.442695
        %v3535 = vpow.pop %v3534
        %v3536 = vmul.f32 %v3499, 1.442695
        %v3537 = vpow.pop %v3536
        %v3538 = vmul.f32 %v3500, 1.442695
        %v3539 = vpow.pop %v3538
        %v3540 = vmul.f32 %v3501, 1.442695
        %v3541 = vpow.pop %v3540
        %v3542 = vmul.f32 %v3502, 1.442695
        %v3543 = vpow.pop %v3542
        %v3544 = vmul.f32 %v3503, 1.442695
        %v3545 = vpow.pop %v3544
        %v3546 = vmul.f32 %v3504, 1.442695
        %v3547 = vpow.pop %v3546
        %v3548 = vmul.f32 %v3505, 1.442695
        %v3549 = vpow.pop %v3548
        %v3550 = vmul.f32 %v3506, 1.442695
        %v3551 = vpow.pop %v3550
        %v3552 = vmul.f32 %v3507, 1.442695
        %v3553 = vpow.pop %v3552
        %v3554 = vmul.f32 %v3508, 1.442695
        %v3555 = vpow.pop %v3554
        %v3556 = vmul.f32 %v3509, 1.442695
        %v3557 = vpow.pop %v3556
        %v3558 = vmul.f32 %v3510, 1.442695
        %v3559 = vpow.pop %v3558
        %v3560 = vmul.f32 %v3511, 1.442695
        %v3561 = vpow.pop %v3560
        %v3562 = vmul.f32 %v3512, 1.442695
        %v3563 = vpow.pop %v3562
        %v3564 = vmul.f32 %v3513, 1.442695
        %v3565 = vpow.pop %v3564
        %v3566 = vmul.f32 %v3514, 1.442695
        %v3567 = vpow.pop %v3566
        %v3568 = vmul.f32 %v3515, 1.442695
        %v3569 = vpow.pop %v3568
        %v3570 = vmul.f32 %v3516, 1.442695
        %v3571 = vpow.pop %v3570
        %v3572 = vmul.f32 %v3517, 1.442695
        %v3573 = vpow.pop %v3572
        %v3574 = vmul.f32 %v3518, 1.442695
        %v3575 = vpow.pop %v3574
        %v3576 = vmul.f32 %v3519, 1.442695
        %v3577 = vpow.pop %v3576
        %v3578 = vmul.f32 %v3520, 1.442695
        %v3579 = vpow.pop %v3578
        %v3580 = vmul.f32 %v3521, 1.442695
        %v3581 = vpow.pop %v3580
        %v3582 = vmul.f32 %v3522, 1.442695
        %v3583 = vpow.pop %v3582
        %v3584 = vmul.f32 %v3523, 1.442695
        %v3585 = vpow.pop %v3584
        %v3586 = vmul.f32 %v3524, 1.442695
        %v3587 = vpow.pop %v3586
        %v3588 = vmul.f32 %v3525, 1.442695
        %v3589 = vpow.pop %v3588
        %v3590 = vmul.f32 %v3527, %v850
        %v3591 = vmul.f32 %v3529, %v851
        %v3592 = vmul.f32 %v3531, %v852
        %v3593 = vmul.f32 %v3533, %v853
        %v3594 = vmul.f32 %v3535, %v854
        %v3595 = vmul.f32 %v3537, %v855
        %v3596 = vmul.f32 %v3539, %v856
        %v3597 = vmul.f32 %v3541, %v857
        %v3598 = vmul.f32 %v3543, %v858
        %v3599 = vmul.f32 %v3545, %v859
        %v3600 = vmul.f32 %v3547, %v860
        %v3601 = vmul.f32 %v3549, %v861
        %v3602 = vmul.f32 %v3551, %v862
        %v3603 = vmul.f32 %v3553, %v863
        %v3604 = vmul.f32 %v3555, %v864
        %v3605 = vmul.f32 %v3557, %v865
        %v3606 = vmul.f32 %v3559, %v866
        %v3607 = vmul.f32 %v3561, %v867
        %v3608 = vmul.f32 %v3563, %v868
        %v3609 = vmul.f32 %v3565, %v869
        %v3610 = vmul.f32 %v3567, %v870
        %v3611 = vmul.f32 %v3569, %v871
        %v3612 = vmul.f32 %v3571, %v872
        %v3613 = vmul.f32 %v3573, %v873
        %v3614 = vmul.f32 %v3575, %v874
        %v3615 = vmul.f32 %v3577, %v875
        %v3616 = vmul.f32 %v3579, %v876
        %v3617 = vmul.f32 %v3581, %v877
        %v3618 = vmul.f32 %v3583, %v878
        %v3619 = vmul.f32 %v3585, %v879
        %v3620 = vmul.f32 %v3587, %v880
        %v3621 = vmul.f32 %v3589, %v881
        %3622 = vadd.xlane.f32.xlu0 %v3590
        %v3623 = vpop.xlane.xlu0 %3622
        %3624 = vadd.xlane.f32.xlu0 %v3591
        %v3625 = vpop.xlane.xlu0 %3624
        %3626 = vadd.xlane.f32.xlu0 %v3592
        %v3627 = vpop.xlane.xlu0 %3626
        %3628 = vadd.xlane.f32.xlu0 %v3593
        %v3629 = vpop.xlane.xlu0 %3628
        %3630 = vadd.xlane.f32.xlu0 %v3594
        %v3631 = vpop.xlane.xlu0 %3630
        %3632 = vadd.xlane.f32.xlu0 %v3595
        %v3633 = vpop.xlane.xlu0 %3632
        %3634 = vadd.xlane.f32.xlu0 %v3596
        %v3635 = vpop.xlane.xlu0 %3634
        %3636 = vadd.xlane.f32.xlu0 %v3597
        %v3637 = vpop.xlane.xlu0 %3636
        %3638 = vadd.xlane.f32.xlu0 %v3598
        %v3639 = vpop.xlane.xlu0 %3638
        %3640 = vadd.xlane.f32.xlu0 %v3599
        %v3641 = vpop.xlane.xlu0 %3640
        %3642 = vadd.xlane.f32.xlu0 %v3600
        %v3643 = vpop.xlane.xlu0 %3642
        %3644 = vadd.xlane.f32.xlu0 %v3601
        %v3645 = vpop.xlane.xlu0 %3644
        %3646 = vadd.xlane.f32.xlu0 %v3602
        %v3647 = vpop.xlane.xlu0 %3646
        %3648 = vadd.xlane.f32.xlu0 %v3603
        %v3649 = vpop.xlane.xlu0 %3648
        %3650 = vadd.xlane.f32.xlu0 %v3604
        %v3651 = vpop.xlane.xlu0 %3650
        %3652 = vadd.xlane.f32.xlu0 %v3605
        %v3653 = vpop.xlane.xlu0 %3652
        %3654 = vadd.xlane.f32.xlu0 %v3606
        %v3655 = vpop.xlane.xlu0 %3654
        %3656 = vadd.xlane.f32.xlu0 %v3607
        %v3657 = vpop.xlane.xlu0 %3656
        %3658 = vadd.xlane.f32.xlu0 %v3608
        %v3659 = vpop.xlane.xlu0 %3658
        %3660 = vadd.xlane.f32.xlu0 %v3609
        %v3661 = vpop.xlane.xlu0 %3660
        %3662 = vadd.xlane.f32.xlu0 %v3610
        %v3663 = vpop.xlane.xlu0 %3662
        %3664 = vadd.xlane.f32.xlu0 %v3611
        %v3665 = vpop.xlane.xlu0 %3664
        %3666 = vadd.xlane.f32.xlu0 %v3612
        %v3667 = vpop.xlane.xlu0 %3666
        %3668 = vadd.xlane.f32.xlu0 %v3613
        %v3669 = vpop.xlane.xlu0 %3668
        %3670 = vadd.xlane.f32.xlu0 %v3614
        %v3671 = vpop.xlane.xlu0 %3670
        %3672 = vadd.xlane.f32.xlu0 %v3615
        %v3673 = vpop.xlane.xlu0 %3672
        %3674 = vadd.xlane.f32.xlu0 %v3616
        %v3675 = vpop.xlane.xlu0 %3674
        %3676 = vadd.xlane.f32.xlu0 %v3617
        %v3677 = vpop.xlane.xlu0 %3676
        %3678 = vadd.xlane.f32.xlu0 %v3618
        %v3679 = vpop.xlane.xlu0 %3678
        %3680 = vadd.xlane.f32.xlu0 %v3619
        %v3681 = vpop.xlane.xlu0 %3680
        %3682 = vadd.xlane.f32.xlu0 %v3620
        %v3683 = vpop.xlane.xlu0 %3682
        %3684 = vadd.xlane.f32.xlu0 %v3621
        %v3685 = vpop.xlane.xlu0 %3684
        %vm3686 = vcmp.gt.f32.partialorder %v3623, 0.0
        %vm3687 = vcmp.gt.f32.partialorder %v3625, 0.0
        %vm3688 = vcmp.gt.f32.partialorder %v3627, 0.0
        %vm3689 = vcmp.gt.f32.partialorder %v3629, 0.0
        %vm3690 = vcmp.gt.f32.partialorder %v3631, 0.0
        %vm3691 = vcmp.gt.f32.partialorder %v3633, 0.0
        %vm3692 = vcmp.gt.f32.partialorder %v3635, 0.0
        %vm3693 = vcmp.gt.f32.partialorder %v3637, 0.0
        %vm3694 = vcmp.gt.f32.partialorder %v3639, 0.0
        %vm3695 = vcmp.gt.f32.partialorder %v3641, 0.0
        %vm3696 = vcmp.gt.f32.partialorder %v3643, 0.0
        %vm3697 = vcmp.gt.f32.partialorder %v3645, 0.0
        %vm3698 = vcmp.gt.f32.partialorder %v3647, 0.0
        %vm3699 = vcmp.gt.f32.partialorder %v3649, 0.0
        %vm3700 = vcmp.gt.f32.partialorder %v3651, 0.0
        %vm3701 = vcmp.gt.f32.partialorder %v3653, 0.0
        %vm3702 = vcmp.gt.f32.partialorder %v3655, 0.0
        %vm3703 = vcmp.gt.f32.partialorder %v3657, 0.0
        %vm3704 = vcmp.gt.f32.partialorder %v3659, 0.0
        %vm3705 = vcmp.gt.f32.partialorder %v3661, 0.0
        %vm3706 = vcmp.gt.f32.partialorder %v3663, 0.0
        %vm3707 = vcmp.gt.f32.partialorder %v3665, 0.0
        %vm3708 = vcmp.gt.f32.partialorder %v3667, 0.0
        %vm3709 = vcmp.gt.f32.partialorder %v3669, 0.0
        %vm3710 = vcmp.gt.f32.partialorder %v3671, 0.0
        %vm3711 = vcmp.gt.f32.partialorder %v3673, 0.0
        %vm3712 = vcmp.gt.f32.partialorder %v3675, 0.0
        %vm3713 = vcmp.gt.f32.partialorder %v3677, 0.0
        %vm3714 = vcmp.gt.f32.partialorder %v3679, 0.0
        %vm3715 = vcmp.gt.f32.partialorder %v3681, 0.0
        %vm3716 = vcmp.gt.f32.partialorder %v3683, 0.0
        %vm3717 = vcmp.gt.f32.partialorder %v3685, 0.0
        %v3718 = vsel %vm3686, %v3623, 1.0
        %v3719 = vsel %vm3687, %v3625, 1.0
        %v3720 = vsel %vm3688, %v3627, 1.0
        %v3721 = vsel %vm3689, %v3629, 1.0
        %v3722 = vsel %vm3690, %v3631, 1.0
        %v3723 = vsel %vm3691, %v3633, 1.0
        %v3724 = vsel %vm3692, %v3635, 1.0
        %v3725 = vsel %vm3693, %v3637, 1.0
        %v3726 = vsel %vm3694, %v3639, 1.0
        %v3727 = vsel %vm3695, %v3641, 1.0
        %v3728 = vsel %vm3696, %v3643, 1.0
        %v3729 = vsel %vm3697, %v3645, 1.0
        %v3730 = vsel %vm3698, %v3647, 1.0
        %v3731 = vsel %vm3699, %v3649, 1.0
        %v3732 = vsel %vm3700, %v3651, 1.0
        %v3733 = vsel %vm3701, %v3653, 1.0
        %v3734 = vsel %vm3702, %v3655, 1.0
        %v3735 = vsel %vm3703, %v3657, 1.0
        %v3736 = vsel %vm3704, %v3659, 1.0
        %v3737 = vsel %vm3705, %v3661, 1.0
        %v3738 = vsel %vm3706, %v3663, 1.0
        %v3739 = vsel %vm3707, %v3665, 1.0
        %v3740 = vsel %vm3708, %v3667, 1.0
        %v3741 = vsel %vm3709, %v3669, 1.0
        %v3742 = vsel %vm3710, %v3671, 1.0
        %v3743 = vsel %vm3711, %v3673, 1.0
        %v3744 = vsel %vm3712, %v3675, 1.0
        %v3745 = vsel %vm3713, %v3677, 1.0
        %v3746 = vsel %vm3714, %v3679, 1.0
        %v3747 = vsel %vm3715, %v3681, 1.0
        %v3748 = vsel %vm3716, %v3683, 1.0
        %v3749 = vsel %vm3717, %v3685, 1.0
        %v3750 = vrcp.pop %v3718
        %v3751 = vrcp.pop %v3719
        %v3752 = vrcp.pop %v3720
        %v3753 = vrcp.pop %v3721
        %v3754 = vrcp.pop %v3722
        %v3755 = vrcp.pop %v3723
        %v3756 = vrcp.pop %v3724
        %v3757 = vrcp.pop %v3725
        %v3758 = vrcp.pop %v3726
        %v3759 = vrcp.pop %v3727
        %v3760 = vrcp.pop %v3728
        %v3761 = vrcp.pop %v3729
        %v3762 = vrcp.pop %v3730
        %v3763 = vrcp.pop %v3731
        %v3764 = vrcp.pop %v3732
        %v3765 = vrcp.pop %v3733
        %v3766 = vrcp.pop %v3734
        %v3767 = vrcp.pop %v3735
        %v3768 = vrcp.pop %v3736
        %v3769 = vrcp.pop %v3737
        %v3770 = vrcp.pop %v3738
        %v3771 = vrcp.pop %v3739
        %v3772 = vrcp.pop %v3740
        %v3773 = vrcp.pop %v3741
        %v3774 = vrcp.pop %v3742
        %v3775 = vrcp.pop %v3743
        %v3776 = vrcp.pop %v3744
        %v3777 = vrcp.pop %v3745
        %v3778 = vrcp.pop %v3746
        %v3779 = vrcp.pop %v3747
        %v3780 = vrcp.pop %v3748
        %v3781 = vrcp.pop %v3749
        %v3782 = vmul.f32 %v3590, %v3750
        %v3783 = vmul.f32 %v3591, %v3751
        %v3784 = vmul.f32 %v3592, %v3752
        %v3785 = vmul.f32 %v3593, %v3753
        %v3786 = vmul.f32 %v3594, %v3754
        %v3787 = vmul.f32 %v3595, %v3755
        %v3788 = vmul.f32 %v3596, %v3756
        %v3789 = vmul.f32 %v3597, %v3757
        %v3790 = vmul.f32 %v3598, %v3758
        %v3791 = vmul.f32 %v3599, %v3759
        %v3792 = vmul.f32 %v3600, %v3760
        %v3793 = vmul.f32 %v3601, %v3761
        %v3794 = vmul.f32 %v3602, %v3762
        %v3795 = vmul.f32 %v3603, %v3763
        %v3796 = vmul.f32 %v3604, %v3764
        %v3797 = vmul.f32 %v3605, %v3765
        %v3798 = vmul.f32 %v3606, %v3766
        %v3799 = vmul.f32 %v3607, %v3767
        %v3800 = vmul.f32 %v3608, %v3768
        %v3801 = vmul.f32 %v3609, %v3769
        %v3802 = vmul.f32 %v3610, %v3770
        %v3803 = vmul.f32 %v3611, %v3771
        %v3804 = vmul.f32 %v3612, %v3772
        %v3805 = vmul.f32 %v3613, %v3773
        %v3806 = vmul.f32 %v3614, %v3774
        %v3807 = vmul.f32 %v3615, %v3775
        %v3808 = vmul.f32 %v3616, %v3776
        %v3809 = vmul.f32 %v3617, %v3777
        %v3810 = vmul.f32 %v3618, %v3778
        %v3811 = vmul.f32 %v3619, %v3779
        %v3812 = vmul.f32 %v3620, %v3780
        %v3813 = vmul.f32 %v3621, %v3781
        %v3814 = vpack.c.bf16 %v3783, %v3782
        %v3815 = vpack.c.bf16 %v3785, %v3784
        %v3816 = vpack.c.bf16 %v3787, %v3786
        %v3817 = vpack.c.bf16 %v3789, %v3788
        %v3818 = vpack.c.bf16 %v3791, %v3790
        %v3819 = vpack.c.bf16 %v3793, %v3792
        %v3820 = vpack.c.bf16 %v3795, %v3794
        %v3821 = vpack.c.bf16 %v3797, %v3796
        %v3822 = vpack.c.bf16 %v3799, %v3798
        %v3823 = vpack.c.bf16 %v3801, %v3800
        %v3824 = vpack.c.bf16 %v3803, %v3802
        %v3825 = vpack.c.bf16 %v3805, %v3804
        %v3826 = vpack.c.bf16 %v3807, %v3806
        %v3827 = vpack.c.bf16 %v3809, %v3808
        %v3828 = vpack.c.bf16 %v3811, %v3810
        %v3829 = vpack.c.bf16 %v3813, %v3812
        %v3830 = vadd.f32 %v2670, %v3782
        %v3831 = vadd.f32 %v2671, %v3783
        %v3832 = vadd.f32 %v2672, %v3784
        %v3833 = vadd.f32 %v2673, %v3785
        %v3834 = vadd.f32 %v2674, %v3786
        %v3835 = vadd.f32 %v2675, %v3787
        %v3836 = vadd.f32 %v2676, %v3788
        %v3837 = vadd.f32 %v2677, %v3789
        %v3838 = vadd.f32 %v2678, %v3790
        %v3839 = vadd.f32 %v2679, %v3791
        %v3840 = vadd.f32 %v2680, %v3792
        %v3841 = vadd.f32 %v2681, %v3793
        %v3842 = vadd.f32 %v2682, %v3794
        %v3843 = vadd.f32 %v2683, %v3795
        %v3844 = vadd.f32 %v2684, %v3796
        %v3845 = vadd.f32 %v2685, %v3797
        %v3846 = vadd.f32 %v2686, %v3798
        %v3847 = vadd.f32 %v2687, %v3799
        %v3848 = vadd.f32 %v2688, %v3800
        %v3849 = vadd.f32 %v2689, %v3801
        %v3850 = vadd.f32 %v2690, %v3802
        %v3851 = vadd.f32 %v2691, %v3803
        %v3852 = vadd.f32 %v2692, %v3804
        %v3853 = vadd.f32 %v2693, %v3805
        %v3854 = vadd.f32 %v2694, %v3806
        %v3855 = vadd.f32 %v2695, %v3807
        %v3856 = vadd.f32 %v2696, %v3808
        %v3857 = vadd.f32 %v2697, %v3809
        %v3858 = vadd.f32 %v2698, %v3810
        %v3859 = vadd.f32 %v2699, %v3811
        %v3860 = vadd.f32 %v2700, %v3812
        %v3861 = vadd.f32 %v2701, %v3813
        %v3862 = vld [vmem:[#allocation11 + $0x8] sm:$0xf]
        %v3863 = vld [vmem:[#allocation11 + $0x18] sm:$0xf]
        %v3864 = vld [vmem:[#allocation11 + $0x28] sm:$0xf]
        %v3865 = vld [vmem:[#allocation11 + $0x38] sm:$0xf]
        %v3866 = vld [vmem:[#allocation11 + $0x48] sm:$0xf]
        %v3867 = vld [vmem:[#allocation11 + $0x58] sm:$0xf]
        %v3868 = vld [vmem:[#allocation11 + $0x68] sm:$0xf]
        %v3869 = vld [vmem:[#allocation11 + $0x78] sm:$0xf]
        %v3870 = vld [vmem:[#allocation11 + $0x88] sm:$0xf]
        %v3871 = vld [vmem:[#allocation11 + $0x98] sm:$0xf]
        %v3872 = vld [vmem:[#allocation11 + $0xa8] sm:$0xf]
        %v3873 = vld [vmem:[#allocation11 + $0xb8] sm:$0xf]
        %v3874 = vld [vmem:[#allocation11 + $0xc8] sm:$0xf]
        %v3875 = vld [vmem:[#allocation11 + $0xd8] sm:$0xf]
        %v3876 = vld [vmem:[#allocation11 + $0xe8] sm:$0xf]
        %v3877 = vld [vmem:[#allocation11 + $0xf8] sm:$0xf]
        %v3894 = vunpack.c.l.b16 %v3862
        %v3895 = vunpack.c.l.b16 %v3863
        %v3896 = vunpack.c.l.b16 %v3864
        %v3897 = vunpack.c.l.b16 %v3865
        %v3898 = vunpack.c.l.b16 %v3866
        %v3899 = vunpack.c.l.b16 %v3867
        %v3900 = vunpack.c.l.b16 %v3868
        %v3901 = vunpack.c.l.b16 %v3869
        %v3902 = vunpack.c.l.b16 %v3870
        %v3903 = vunpack.c.l.b16 %v3871
        %v3904 = vunpack.c.l.b16 %v3872
        %v3905 = vunpack.c.l.b16 %v3873
        %v3906 = vunpack.c.l.b16 %v3874
        %v3907 = vunpack.c.l.b16 %v3875
        %v3908 = vunpack.c.l.b16 %v3876
        %v3909 = vunpack.c.l.b16 %v3877
        %v3910 = vpack.c.b16 %v3895, %v3894
        %v3911 = vpack.c.b16 %v3897, %v3896
        %v3912 = vpack.c.b16 %v3899, %v3898
        %v3913 = vpack.c.b16 %v3901, %v3900
        %v3914 = vpack.c.b16 %v3903, %v3902
        %v3915 = vpack.c.b16 %v3905, %v3904
        %v3916 = vpack.c.b16 %v3907, %v3906
        %v3917 = vpack.c.b16 %v3909, %v3908
        %3926 = vmatprep.subr.bf16.mxu0 0
        %3927 = vmatpush1.bf16.msra.mxu0 %v3910
        %3928 = vmatprep.subr.bf16.mxu0 0
        %3929 = vmatpush1.bf16.msra.mxu0 %v3911
        %3930 = vmatprep.subr.bf16.mxu0 0
        %3931 = vmatpush1.bf16.msra.mxu0 %v3912
        %3932 = vmatprep.subr.bf16.mxu0 0
        %3933 = vmatpush1.bf16.msra.mxu0 %v3913
        %3934 = vmatprep.subr.bf16.mxu0 0
        %3935 = vmatpush1.bf16.msra.mxu0 %v3914
        %3936 = vmatprep.subr.bf16.mxu0 0
        %3937 = vmatpush1.bf16.msra.mxu0 %v3915
        %3938 = vmatprep.subr.bf16.mxu0 0
        %3939 = vmatpush1.bf16.msra.mxu0 %v3916
        %3940 = vmatprep.subr.bf16.mxu0 0
        %3941 = vmatpush1.bf16.msra.mxu0 %v3917
        %3942 = vmatprep.subr.bf16.mxu0 0
        %3943 = vmatpush1.bf16.msra.mxu0 0
        %3944 = vmatprep.subr.bf16.mxu0 0
        %3945 = vmatpush1.bf16.msra.mxu0 0
        %3946 = vmatprep.subr.bf16.mxu0 0
        %3947 = vmatpush1.bf16.msra.mxu0 0
        %3948 = vmatprep.subr.bf16.mxu0 0
        %3949 = vmatpush1.bf16.msra.mxu0 0
        %3950 = vmatprep.subr.bf16.mxu0 0
        %3951 = vmatpush1.bf16.msra.mxu0 0
        %3952 = vmatprep.subr.bf16.mxu0 0
        %3953 = vmatpush1.bf16.msra.mxu0 0
        %3954 = vmatprep.subr.bf16.mxu0 0
        %3955 = vmatpush1.bf16.msra.mxu0 0
        %3956 = vmatprep.subr.bf16.mxu0 0
        %3957 = vmatpush1.bf16.msra.mxu0 0
        %3958 = vmatprep.mubr.bf16.mxu0 0
        %3959 = vmatmul.mubr.bf16.gmra.mrb[0].mxu0 %v802
        %v3960 = vpop.f32.mrb[0].mxu0
        %v3961 = vadd.f32 0.0, %v3960
        %v3962 = vpop.f32.mrb[0].mxu0
        %v3963 = vpop.f32.mrb[0].mxu0
        %v3964 = vadd.f32 0.0, %v3963
        %v3965 = vpop.f32.mrb[0].mxu0
        %3966 = vmatprep.mubr.bf16.mxu0 0
        %3967 = vmatmul.mubr.bf16.gmra.mrb[0].mxu0 %v803
        %v3968 = vpop.f32.mrb[0].mxu0
        %v3969 = vadd.f32 0.0, %v3968
        %v3970 = vpop.f32.mrb[0].mxu0
        %v3971 = vpop.f32.mrb[0].mxu0
        %v3972 = vadd.f32 0.0, %v3971
        %v3973 = vpop.f32.mrb[0].mxu0
        %3974 = vmatprep.mubr.bf16.mxu0 0
        %3975 = vmatmul.mubr.bf16.gmra.mrb[0].mxu0 %v804
        %v3976 = vpop.f32.mrb[0].mxu0
        %v3977 = vadd.f32 0.0, %v3976
        %v3978 = vpop.f32.mrb[0].mxu0
        %v3979 = vpop.f32.mrb[0].mxu0
        %v3980 = vadd.f32 0.0, %v3979
        %v3981 = vpop.f32.mrb[0].mxu0
        %3982 = vmatprep.mubr.bf16.mxu0 0
        %3983 = vmatmul.mubr.bf16.gmra.mrb[0].mxu0 %v805
        %v3984 = vpop.f32.mrb[0].mxu0
        %v3985 = vadd.f32 0.0, %v3984
        %v3986 = vpop.f32.mrb[0].mxu0
        %v3987 = vpop.f32.mrb[0].mxu0
        %v3988 = vadd.f32 0.0, %v3987
        %v3989 = vpop.f32.mrb[0].mxu0
        %3990 = vmatprep.mubr.bf16.mxu0 0
        %3991 = vmatmul.mubr.bf16.gmra.mrb[0].mxu0 %v806
        %v3992 = vpop.f32.mrb[0].mxu0
        %v3993 = vadd.f32 0.0, %v3992
        %v3994 = vpop.f32.mrb[0].mxu0
        %v3995 = vpop.f32.mrb[0].mxu0
        %v3996 = vadd.f32 0.0, %v3995
        %v3997 = vpop.f32.mrb[0].mxu0
        %3998 = vmatprep.mubr.bf16.mxu0 0
        %3999 = vmatmul.mubr.bf16.gmra.mrb[0].mxu0 %v807
        %v4000 = vpop.f32.mrb[0].mxu0
        %v4001 = vadd.f32 0.0, %v4000
        %v4002 = vpop.f32.mrb[0].mxu0
        %v4003 = vpop.f32.mrb[0].mxu0
        %v4004 = vadd.f32 0.0, %v4003
        %v4005 = vpop.f32.mrb[0].mxu0
        %4006 = vmatprep.mubr.bf16.mxu0 0
        %4007 = vmatmul.mubr.bf16.gmra.mrb[0].mxu0 %v808
        %v4008 = vpop.f32.mrb[0].mxu0
        %v4009 = vadd.f32 0.0, %v4008
        %v4010 = vpop.f32.mrb[0].mxu0
        %v4011 = vpop.f32.mrb[0].mxu0
        %v4012 = vadd.f32 0.0, %v4011
        %v4013 = vpop.f32.mrb[0].mxu0
        %4014 = vmatprep.mubr.bf16.mxu0 0
        %4015 = vmatmul.mubr.bf16.gmra.mrb[0].mxu0 %v809
        %v4016 = vpop.f32.mrb[0].mxu0
        %v4017 = vadd.f32 0.0, %v4016
        %v4018 = vpop.f32.mrb[0].mxu0
        %v4019 = vpop.f32.mrb[0].mxu0
        %v4020 = vadd.f32 0.0, %v4019
        %v4021 = vpop.f32.mrb[0].mxu0
        %4022 = vmatprep.mubr.bf16.mxu0 0
        %4023 = vmatmul.mubr.bf16.gmra.mrb[0].mxu0 %v810
        %v4024 = vpop.f32.mrb[0].mxu0
        %v4025 = vadd.f32 0.0, %v4024
        %v4026 = vpop.f32.mrb[0].mxu0
        %v4027 = vpop.f32.mrb[0].mxu0
        %v4028 = vadd.f32 0.0, %v4027
        %v4029 = vpop.f32.mrb[0].mxu0
        %4030 = vmatprep.mubr.bf16.mxu0 0
        %4031 = vmatmul.mubr.bf16.gmra.mrb[0].mxu0 %v811
        %v4032 = vpop.f32.mrb[0].mxu0
        %v4033 = vadd.f32 0.0, %v4032
        %v4034 = vpop.f32.mrb[0].mxu0
        %v4035 = vpop.f32.mrb[0].mxu0
        %v4036 = vadd.f32 0.0, %v4035
        %v4037 = vpop.f32.mrb[0].mxu0
        %4038 = vmatprep.mubr.bf16.mxu0 0
        %4039 = vmatmul.mubr.bf16.gmra.mrb[0].mxu0 %v812
        %v4040 = vpop.f32.mrb[0].mxu0
        %v4041 = vadd.f32 0.0, %v4040
        %v4042 = vpop.f32.mrb[0].mxu0
        %v4043 = vpop.f32.mrb[0].mxu0
        %v4044 = vadd.f32 0.0, %v4043
        %v4045 = vpop.f32.mrb[0].mxu0
        %4046 = vmatprep.mubr.bf16.mxu0 0
        %4047 = vmatmul.mubr.bf16.gmra.mrb[0].mxu0 %v813
        %v4048 = vpop.f32.mrb[0].mxu0
        %v4049 = vadd.f32 0.0, %v4048
        %v4050 = vpop.f32.mrb[0].mxu0
        %v4051 = vpop.f32.mrb[0].mxu0
        %v4052 = vadd.f32 0.0, %v4051
        %v4053 = vpop.f32.mrb[0].mxu0
        %4054 = vmatprep.mubr.bf16.mxu0 0
        %4055 = vmatmul.mubr.bf16.gmra.mrb[0].mxu0 %v814
        %v4056 = vpop.f32.mrb[0].mxu0
        %v4057 = vadd.f32 0.0, %v4056
        %v4058 = vpop.f32.mrb[0].mxu0
        %v4059 = vpop.f32.mrb[0].mxu0
        %v4060 = vadd.f32 0.0, %v4059
        %v4061 = vpop.f32.mrb[0].mxu0
        %4062 = vmatprep.mubr.bf16.mxu0 0
        %4063 = vmatmul.mubr.bf16.gmra.mrb[0].mxu0 %v815
        %v4064 = vpop.f32.mrb[0].mxu0
        %v4065 = vadd.f32 0.0, %v4064
        %v4066 = vpop.f32.mrb[0].mxu0
        %v4067 = vpop.f32.mrb[0].mxu0
        %v4068 = vadd.f32 0.0, %v4067
        %v4069 = vpop.f32.mrb[0].mxu0
        %4070 = vmatprep.mubr.bf16.mxu0 0
        %4071 = vmatmul.mubr.bf16.gmra.mrb[0].mxu0 %v816
        %v4072 = vpop.f32.mrb[0].mxu0
        %v4073 = vadd.f32 0.0, %v4072
        %v4074 = vpop.f32.mrb[0].mxu0
        %v4075 = vpop.f32.mrb[0].mxu0
        %v4076 = vadd.f32 0.0, %v4075
        %v4077 = vpop.f32.mrb[0].mxu0
        %4078 = vmatprep.mubr.bf16.mxu0 0
        %4079 = vmatmul.mubr.bf16.gmra.mrb[0].mxu0 %v817
        %v4080 = vpop.f32.mrb[0].mxu0
        %v4081 = vadd.f32 0.0, %v4080
        %v4082 = vpop.f32.mrb[0].mxu0
        %v4083 = vpop.f32.mrb[0].mxu0
        %v4084 = vadd.f32 0.0, %v4083
        %v4085 = vpop.f32.mrb[0].mxu0
        %4086 = vdwg.mxu0
        %v4087 = vpack.c.bf16 %v3964, %v3961
        %v4088 = vpack.c.bf16 %v3972, %v3969
        %v4089 = vpack.c.bf16 %v3980, %v3977
        %v4090 = vpack.c.bf16 %v3988, %v3985
        %v4091 = vpack.c.bf16 %v3996, %v3993
        %v4092 = vpack.c.bf16 %v4004, %v4001
        %v4093 = vpack.c.bf16 %v4012, %v4009
        %v4094 = vpack.c.bf16 %v4020, %v4017
        %v4095 = vpack.c.bf16 %v4028, %v4025
        %v4096 = vpack.c.bf16 %v4036, %v4033
        %v4097 = vpack.c.bf16 %v4044, %v4041
        %v4098 = vpack.c.bf16 %v4052, %v4049
        %v4099 = vpack.c.bf16 %v4060, %v4057
        %v4100 = vpack.c.bf16 %v4068, %v4065
        %v4101 = vpack.c.bf16 %v4076, %v4073
        %v4102 = vpack.c.bf16 %v4084, %v4081
        %4103 = vxpose.xlu0.c.b16.start [1/8] %v3814, 128
        %4104 = vxpose.xlu0.c.b16.cont [2/8] %v3815, 128
        %4105 = vxpose.xlu0.c.b16.cont [3/8] %v3816, 128
        %4106 = vxpose.xlu0.c.b16.cont [4/8] %v3817, 128
        %4107 = vxpose.xlu0.c.b16.cont [5/8] %v3818, 128
        %4108 = vxpose.xlu0.c.b16.cont [6/8] %v3819, 128
        %4109 = vxpose.xlu0.c.b16.cont [7/8] %v3820, 128
        %4110 = vxpose.xlu0.c.b16.end [8/8] %v3821, 128
        %v4111 = vpop.trf.xlu0
        %v4112 = vpop.trf.xlu0
        %v4113 = vpop.trf.xlu0
        %v4114 = vpop.trf.xlu0
        %v4115 = vpop.trf.xlu0
        %v4116 = vpop.trf.xlu0
        %v4117 = vpop.trf.xlu0
        %v4118 = vpop.trf.xlu0
        %4119 = vxpose.xlu0.c.b16.start [1/8] %v3822, 128
        %4120 = vxpose.xlu0.c.b16.cont [2/8] %v3823, 128
        %4121 = vxpose.xlu0.c.b16.cont [3/8] %v3824, 128
        %4122 = vxpose.xlu0.c.b16.cont [4/8] %v3825, 128
        %4123 = vxpose.xlu0.c.b16.cont [5/8] %v3826, 128
        %4124 = vxpose.xlu0.c.b16.cont [6/8] %v3827, 128
        %4125 = vxpose.xlu0.c.b16.cont [7/8] %v3828, 128
        %4126 = vxpose.xlu0.c.b16.end [8/8] %v3829, 128
        %v4127 = vpop.trf.xlu0
        %v4128 = vpop.trf.xlu0
        %v4129 = vpop.trf.xlu0
        %v4130 = vpop.trf.xlu0
        %v4131 = vpop.trf.xlu0
        %v4132 = vpop.trf.xlu0
        %v4133 = vpop.trf.xlu0
        %v4134 = vpop.trf.xlu0
        %4135 = vmatprep.subr.bf16.mxu0 0
        %4136 = vmatpush1.bf16.msra.mxu0 %v4087
        %4137 = vmatprep.subr.bf16.mxu0 0
        %4138 = vmatpush1.bf16.msra.mxu0 %v4088
        %4139 = vmatprep.subr.bf16.mxu0 0
        %4140 = vmatpush1.bf16.msra.mxu0 %v4089
        %4141 = vmatprep.subr.bf16.mxu0 0
        %4142 = vmatpush1.bf16.msra.mxu0 %v4090
        %4143 = vmatprep.subr.bf16.mxu0 0
        %4144 = vmatpush1.bf16.msra.mxu0 %v4091
        %4145 = vmatprep.subr.bf16.mxu0 0
        %4146 = vmatpush1.bf16.msra.mxu0 %v4092
        %4147 = vmatprep.subr.bf16.mxu0 0
        %4148 = vmatpush1.bf16.msra.mxu0 %v4093
        %4149 = vmatprep.subr.bf16.mxu0 0
        %4150 = vmatpush1.bf16.msra.mxu0 %v4094
        %4151 = vmatprep.subr.bf16.mxu0 0
        %4152 = vmatpush1.bf16.msra.mxu0 %v4095
        %4153 = vmatprep.subr.bf16.mxu0 0
        %4154 = vmatpush1.bf16.msra.mxu0 %v4096
        %4155 = vmatprep.subr.bf16.mxu0 0
        %4156 = vmatpush1.bf16.msra.mxu0 %v4097
        %4157 = vmatprep.subr.bf16.mxu0 0
        %4158 = vmatpush1.bf16.msra.mxu0 %v4098
        %4159 = vmatprep.subr.bf16.mxu0 0
        %4160 = vmatpush1.bf16.msra.mxu0 %v4099
        %4161 = vmatprep.subr.bf16.mxu0 0
        %4162 = vmatpush1.bf16.msra.mxu0 %v4100
        %4163 = vmatprep.subr.bf16.mxu0 0
        %4164 = vmatpush1.bf16.msra.mxu0 %v4101
        %4165 = vmatprep.subr.bf16.mxu0 0
        %4166 = vmatpush1.bf16.msra.mxu0 %v4102
        %4167 = vmatprep.mubr.bf16.mxu0 %v4127
        %4168 = vmatmul.mubr.bf16.gmra.mrb[0].mxu0 %v4111
        %v4169 = vpop.f32.mrb[0].mxu0
        %v4170 = vadd.f32 0.0, %v4169
        %v4171 = vpop.f32.mrb[0].mxu0
        %v4172 = vpop.f32.mrb[0].mxu0
        %v4173 = vadd.f32 0.0, %v4172
        %v4174 = vpop.f32.mrb[0].mxu0
        %4175 = vmatprep.mubr.bf16.mxu0 %v4128
        %4176 = vmatmul.mubr.bf16.gmra.mrb[0].mxu0 %v4112
        %v4177 = vpop.f32.mrb[0].mxu0
        %v4178 = vadd.f32 0.0, %v4177
        %v4179 = vpop.f32.mrb[0].mxu0
        %v4180 = vpop.f32.mrb[0].mxu0
        %v4181 = vadd.f32 0.0, %v4180
        %v4182 = vpop.f32.mrb[0].mxu0
        %4183 = vmatprep.mubr.bf16.mxu0 %v4129
        %4184 = vmatmul.mubr.bf16.gmra.mrb[0].mxu0 %v4113
        %v4185 = vpop.f32.mrb[0].mxu0
        %v4186 = vadd.f32 0.0, %v4185
        %v4187 = vpop.f32.mrb[0].mxu0
        %v4188 = vpop.f32.mrb[0].mxu0
        %v4189 = vadd.f32 0.0, %v4188
        %v4190 = vpop.f32.mrb[0].mxu0
        %4191 = vmatprep.mubr.bf16.mxu0 %v4130
        %4192 = vmatmul.mubr.bf16.gmra.mrb[0].mxu0 %v4114
        %v4193 = vpop.f32.mrb[0].mxu0
        %v4194 = vadd.f32 0.0, %v4193
        %v4195 = vpop.f32.mrb[0].mxu0
        %v4196 = vpop.f32.mrb[0].mxu0
        %v4197 = vadd.f32 0.0, %v4196
        %v4198 = vpop.f32.mrb[0].mxu0
        %4199 = vmatprep.mubr.bf16.mxu0 %v4131
        %4200 = vmatmul.mubr.bf16.gmra.mrb[0].mxu0 %v4115
        %v4201 = vpop.f32.mrb[0].mxu0
        %v4202 = vadd.f32 0.0, %v4201
        %v4203 = vpop.f32.mrb[0].mxu0
        %v4204 = vpop.f32.mrb[0].mxu0
        %v4205 = vadd.f32 0.0, %v4204
        %v4206 = vpop.f32.mrb[0].mxu0
        %4207 = vmatprep.mubr.bf16.mxu0 %v4132
        %4208 = vmatmul.mubr.bf16.gmra.mrb[0].mxu0 %v4116
        %v4209 = vpop.f32.mrb[0].mxu0
        %v4210 = vadd.f32 0.0, %v4209
        %v4211 = vpop.f32.mrb[0].mxu0
        %v4212 = vpop.f32.mrb[0].mxu0
        %v4213 = vadd.f32 0.0, %v4212
        %v4214 = vpop.f32.mrb[0].mxu0
        %4215 = vmatprep.mubr.bf16.mxu0 %v4133
        %4216 = vmatmul.mubr.bf16.gmra.mrb[0].mxu0 %v4117
        %v4217 = vpop.f32.mrb[0].mxu0
        %v4218 = vadd.f32 0.0, %v4217
        %v4219 = vpop.f32.mrb[0].mxu0
        %v4220 = vpop.f32.mrb[0].mxu0
        %v4221 = vadd.f32 0.0, %v4220
        %v4222 = vpop.f32.mrb[0].mxu0
        %4223 = vmatprep.mubr.bf16.mxu0 %v4134
        %4224 = vmatmul.mubr.bf16.gmra.mrb[0].mxu0 %v4118
        %v4225 = vpop.f32.mrb[0].mxu0
        %v4226 = vadd.f32 0.0, %v4225
        %v4227 = vpop.f32.mrb[0].mxu0
        %v4228 = vpop.f32.mrb[0].mxu0
        %v4229 = vadd.f32 0.0, %v4228
        %v4230 = vpop.f32.mrb[0].mxu0
        %4231 = vdwg.mxu0
        %v4232 = vadd.f32 %v3139, %v4170
        %v4233 = vadd.f32 %v3142, %v4173
        %v4234 = vadd.f32 %v3147, %v4178
        %v4235 = vadd.f32 %v3150, %v4181
        %v4236 = vadd.f32 %v3155, %v4186
        %v4237 = vadd.f32 %v3158, %v4189
        %v4238 = vadd.f32 %v3163, %v4194
        %v4239 = vadd.f32 %v3166, %v4197
        %v4240 = vadd.f32 %v3171, %v4202
        %v4241 = vadd.f32 %v3174, %v4205
        %v4242 = vadd.f32 %v3179, %v4210
        %v4243 = vadd.f32 %v3182, %v4213
        %v4244 = vadd.f32 %v3187, %v4218
        %v4245 = vadd.f32 %v3190, %v4221
        %v4246 = vadd.f32 %v3195, %v4226
        %v4247 = vadd.f32 %v3198, %v4229
        %v4248 = vld [vmem:[#allocation2 + $0x3] sm:$0x1]
        %4249 = vset.pattern.permute.xlu0 3
        %4250 = vperm.xlu0 %4249, %v981
        %v4251 = vpop.permute.xlu0 %4250
        %4253 = vset.pattern.permute.xlu0 3
        %4254 = vperm.xlu0 %4253, %v984
        %v4255 = vpop.permute.xlu0 %4254
        %4257 = vset.pattern.permute.xlu0 3
        %4258 = vperm.xlu0 %4257, %v989
        %v4259 = vpop.permute.xlu0 %4258
        %4261 = vset.pattern.permute.xlu0 3
        %4262 = vperm.xlu0 %4261, %v992
        %v4263 = vpop.permute.xlu0 %4262
        %4265 = vset.pattern.permute.xlu0 3
        %4266 = vperm.xlu0 %4265, %v997
        %v4267 = vpop.permute.xlu0 %4266
        %4269 = vset.pattern.permute.xlu0 3
        %4270 = vperm.xlu0 %4269, %v1000
        %v4271 = vpop.permute.xlu0 %4270
        %4273 = vset.pattern.permute.xlu0 3
        %4274 = vperm.xlu0 %4273, %v1005
        %v4275 = vpop.permute.xlu0 %4274
        %4277 = vset.pattern.permute.xlu0 3
        %4278 = vperm.xlu0 %4277, %v1008
        %v4279 = vpop.permute.xlu0 %4278
        %4281 = vset.pattern.permute.xlu0 3
        %4282 = vperm.xlu0 %4281, %v1013
        %v4283 = vpop.permute.xlu0 %4282
        %4285 = vset.pattern.permute.xlu0 3
        %4286 = vperm.xlu0 %4285, %v1016
        %v4287 = vpop.permute.xlu0 %4286
        %4289 = vset.pattern.permute.xlu0 3
        %4290 = vperm.xlu0 %4289, %v1021
        %v4291 = vpop.permute.xlu0 %4290
        %4293 = vset.pattern.permute.xlu0 3
        %4294 = vperm.xlu0 %4293, %v1024
        %v4295 = vpop.permute.xlu0 %4294
        %4297 = vset.pattern.permute.xlu0 3
        %4298 = vperm.xlu0 %4297, %v1029
        %v4299 = vpop.permute.xlu0 %4298
        %4301 = vset.pattern.permute.xlu0 3
        %4302 = vperm.xlu0 %4301, %v1032
        %v4303 = vpop.permute.xlu0 %4302
        %4305 = vset.pattern.permute.xlu0 3
        %4306 = vperm.xlu0 %4305, %v1037
        %v4307 = vpop.permute.xlu0 %4306
        %4309 = vset.pattern.permute.xlu0 3
        %4310 = vperm.xlu0 %4309, %v1040
        %v4311 = vpop.permute.xlu0 %4310
        %4313 = vset.pattern.permute.xlu0 3
        %4314 = vperm.xlu0 %4313, %v1045
        %v4315 = vpop.permute.xlu0 %4314
        %4317 = vset.pattern.permute.xlu0 3
        %4318 = vperm.xlu0 %4317, %v1048
        %v4319 = vpop.permute.xlu0 %4318
        %4321 = vset.pattern.permute.xlu0 3
        %4322 = vperm.xlu0 %4321, %v1053
        %v4323 = vpop.permute.xlu0 %4322
        %4325 = vset.pattern.permute.xlu0 3
        %4326 = vperm.xlu0 %4325, %v1056
        %v4327 = vpop.permute.xlu0 %4326
        %4329 = vset.pattern.permute.xlu0 3
        %4330 = vperm.xlu0 %4329, %v1061
        %v4331 = vpop.permute.xlu0 %4330
        %4333 = vset.pattern.permute.xlu0 3
        %4334 = vperm.xlu0 %4333, %v1064
        %v4335 = vpop.permute.xlu0 %4334
        %4337 = vset.pattern.permute.xlu0 3
        %4338 = vperm.xlu0 %4337, %v1069
        %v4339 = vpop.permute.xlu0 %4338
        %4341 = vset.pattern.permute.xlu0 3
        %4342 = vperm.xlu0 %4341, %v1072
        %v4343 = vpop.permute.xlu0 %4342
        %4345 = vset.pattern.permute.xlu0 3
        %4346 = vperm.xlu0 %4345, %v1077
        %v4347 = vpop.permute.xlu0 %4346
        %4349 = vset.pattern.permute.xlu0 3
        %4350 = vperm.xlu0 %4349, %v1080
        %v4351 = vpop.permute.xlu0 %4350
        %4353 = vset.pattern.permute.xlu0 3
        %4354 = vperm.xlu0 %4353, %v1085
        %v4355 = vpop.permute.xlu0 %4354
        %4357 = vset.pattern.permute.xlu0 3
        %4358 = vperm.xlu0 %4357, %v1088
        %v4359 = vpop.permute.xlu0 %4358
        %4361 = vset.pattern.permute.xlu0 3
        %4362 = vperm.xlu0 %4361, %v1093
        %v4363 = vpop.permute.xlu0 %4362
        %4365 = vset.pattern.permute.xlu0 3
        %4366 = vperm.xlu0 %4365, %v1096
        %v4367 = vpop.permute.xlu0 %4366
        %4369 = vset.pattern.permute.xlu0 3
        %4370 = vperm.xlu0 %4369, %v1101
        %v4371 = vpop.permute.xlu0 %4370
        %4373 = vset.pattern.permute.xlu0 3
        %4374 = vperm.xlu0 %4373, %v1104
        %v4375 = vpop.permute.xlu0 %4374
        %v4377 = vlaneseq
        %v4378 = vshrl.u32 %v4377, 7
        %v4379 = vsub.s32 0, %v4378
        %v4380 = vrot.slane %v4248, %v4379
        %v4381 = vadd.f32 %v4251, %v4380
        %v4382 = vadd.f32 %v4255, %v4380
        %v4383 = vadd.f32 %v4259, %v4380
        %v4384 = vadd.f32 %v4263, %v4380
        %v4385 = vadd.f32 %v4267, %v4380
        %v4386 = vadd.f32 %v4271, %v4380
        %v4387 = vadd.f32 %v4275, %v4380
        %v4388 = vadd.f32 %v4279, %v4380
        %v4389 = vadd.f32 %v4283, %v4380
        %v4390 = vadd.f32 %v4287, %v4380
        %v4391 = vadd.f32 %v4291, %v4380
        %v4392 = vadd.f32 %v4295, %v4380
        %v4393 = vadd.f32 %v4299, %v4380
        %v4394 = vadd.f32 %v4303, %v4380
        %v4395 = vadd.f32 %v4307, %v4380
        %v4396 = vadd.f32 %v4311, %v4380
        %v4397 = vadd.f32 %v4315, %v4380
        %v4398 = vadd.f32 %v4319, %v4380
        %v4399 = vadd.f32 %v4323, %v4380
        %v4400 = vadd.f32 %v4327, %v4380
        %v4401 = vadd.f32 %v4331, %v4380
        %v4402 = vadd.f32 %v4335, %v4380
        %v4403 = vadd.f32 %v4339, %v4380
        %v4404 = vadd.f32 %v4343, %v4380
        %v4405 = vadd.f32 %v4347, %v4380
        %v4406 = vadd.f32 %v4351, %v4380
        %v4407 = vadd.f32 %v4355, %v4380
        %v4408 = vadd.f32 %v4359, %v4380
        %v4409 = vadd.f32 %v4363, %v4380
        %v4410 = vadd.f32 %v4367, %v4380
        %v4411 = vadd.f32 %v4371, %v4380
        %v4412 = vadd.f32 %v4375, %v4380
        %v4413 = vmax.f32 %v4381, 0.0
        %v4414 = vmax.f32 %v4382, 0.0
        %v4415 = vmax.f32 %v4383, 0.0
        %v4416 = vmax.f32 %v4384, 0.0
        %v4417 = vmax.f32 %v4385, 0.0
        %v4418 = vmax.f32 %v4386, 0.0
        %v4419 = vmax.f32 %v4387, 0.0
        %v4420 = vmax.f32 %v4388, 0.0
        %v4421 = vmax.f32 %v4389, 0.0
        %v4422 = vmax.f32 %v4390, 0.0
        %v4423 = vmax.f32 %v4391, 0.0
        %v4424 = vmax.f32 %v4392, 0.0
        %v4425 = vmax.f32 %v4393, 0.0
        %v4426 = vmax.f32 %v4394, 0.0
        %v4427 = vmax.f32 %v4395, 0.0
        %v4428 = vmax.f32 %v4396, 0.0
        %v4429 = vmax.f32 %v4397, 0.0
        %v4430 = vmax.f32 %v4398, 0.0
        %v4431 = vmax.f32 %v4399, 0.0
        %v4432 = vmax.f32 %v4400, 0.0
        %v4433 = vmax.f32 %v4401, 0.0
        %v4434 = vmax.f32 %v4402, 0.0
        %v4435 = vmax.f32 %v4403, 0.0
        %v4436 = vmax.f32 %v4404, 0.0
        %v4437 = vmax.f32 %v4405, 0.0
        %v4438 = vmax.f32 %v4406, 0.0
        %v4439 = vmax.f32 %v4407, 0.0
        %v4440 = vmax.f32 %v4408, 0.0
        %v4441 = vmax.f32 %v4409, 0.0
        %v4442 = vmax.f32 %v4410, 0.0
        %v4443 = vmax.f32 %v4411, 0.0
        %v4444 = vmax.f32 %v4412, 0.0
        %v4445 = vmul.f32 %v4413, %v850
        %v4446 = vmul.f32 %v4414, %v851
        %v4447 = vmul.f32 %v4415, %v852
        %v4448 = vmul.f32 %v4416, %v853
        %v4449 = vmul.f32 %v4417, %v854
        %v4450 = vmul.f32 %v4418, %v855
        %v4451 = vmul.f32 %v4419, %v856
        %v4452 = vmul.f32 %v4420, %v857
        %v4453 = vmul.f32 %v4421, %v858
        %v4454 = vmul.f32 %v4422, %v859
        %v4455 = vmul.f32 %v4423, %v860
        %v4456 = vmul.f32 %v4424, %v861
        %v4457 = vmul.f32 %v4425, %v862
        %v4458 = vmul.f32 %v4426, %v863
        %v4459 = vmul.f32 %v4427, %v864
        %v4460 = vmul.f32 %v4428, %v865
        %v4461 = vmul.f32 %v4429, %v866
        %v4462 = vmul.f32 %v4430, %v867
        %v4463 = vmul.f32 %v4431, %v868
        %v4464 = vmul.f32 %v4432, %v869
        %v4465 = vmul.f32 %v4433, %v870
        %v4466 = vmul.f32 %v4434, %v871
        %v4467 = vmul.f32 %v4435, %v872
        %v4468 = vmul.f32 %v4436, %v873
        %v4469 = vmul.f32 %v4437, %v874
        %v4470 = vmul.f32 %v4438, %v875
        %v4471 = vmul.f32 %v4439, %v876
        %v4472 = vmul.f32 %v4440, %v877
        %v4473 = vmul.f32 %v4441, %v878
        %v4474 = vmul.f32 %v4442, %v879
        %v4475 = vmul.f32 %v4443, %v880
        %v4476 = vmul.f32 %v4444, %v881
        %4477 = vmax.xlane.f32.xlu0 %v4445
        %v4478 = vpop.xlane.xlu0 %4477
        %4479 = vmax.xlane.f32.xlu0 %v4446
        %v4480 = vpop.xlane.xlu0 %4479
        %4481 = vmax.xlane.f32.xlu0 %v4447
        %v4482 = vpop.xlane.xlu0 %4481
        %4483 = vmax.xlane.f32.xlu0 %v4448
        %v4484 = vpop.xlane.xlu0 %4483
        %4485 = vmax.xlane.f32.xlu0 %v4449
        %v4486 = vpop.xlane.xlu0 %4485
        %4487 = vmax.xlane.f32.xlu0 %v4450
        %v4488 = vpop.xlane.xlu0 %4487
        %4489 = vmax.xlane.f32.xlu0 %v4451
        %v4490 = vpop.xlane.xlu0 %4489
        %4491 = vmax.xlane.f32.xlu0 %v4452
        %v4492 = vpop.xlane.xlu0 %4491
        %4493 = vmax.xlane.f32.xlu0 %v4453
        %v4494 = vpop.xlane.xlu0 %4493
        %4495 = vmax.xlane.f32.xlu0 %v4454
        %v4496 = vpop.xlane.xlu0 %4495
        %4497 = vmax.xlane.f32.xlu0 %v4455
        %v4498 = vpop.xlane.xlu0 %4497
        %4499 = vmax.xlane.f32.xlu0 %v4456
        %v4500 = vpop.xlane.xlu0 %4499
        %4501 = vmax.xlane.f32.xlu0 %v4457
        %v4502 = vpop.xlane.xlu0 %4501
        %4503 = vmax.xlane.f32.xlu0 %v4458
        %v4504 = vpop.xlane.xlu0 %4503
        %4505 = vmax.xlane.f32.xlu0 %v4459
        %v4506 = vpop.xlane.xlu0 %4505
        %4507 = vmax.xlane.f32.xlu0 %v4460
        %v4508 = vpop.xlane.xlu0 %4507
        %4509 = vmax.xlane.f32.xlu0 %v4461
        %v4510 = vpop.xlane.xlu0 %4509
        %4511 = vmax.xlane.f32.xlu0 %v4462
        %v4512 = vpop.xlane.xlu0 %4511
        %4513 = vmax.xlane.f32.xlu0 %v4463
        %v4514 = vpop.xlane.xlu0 %4513
        %4515 = vmax.xlane.f32.xlu0 %v4464
        %v4516 = vpop.xlane.xlu0 %4515
        %4517 = vmax.xlane.f32.xlu0 %v4465
        %v4518 = vpop.xlane.xlu0 %4517
        %4519 = vmax.xlane.f32.xlu0 %v4466
        %v4520 = vpop.xlane.xlu0 %4519
        %4521 = vmax.xlane.f32.xlu0 %v4467
        %v4522 = vpop.xlane.xlu0 %4521
        %4523 = vmax.xlane.f32.xlu0 %v4468
        %v4524 = vpop.xlane.xlu0 %4523
        %4525 = vmax.xlane.f32.xlu0 %v4469
        %v4526 = vpop.xlane.xlu0 %4525
        %4527 = vmax.xlane.f32.xlu0 %v4470
        %v4528 = vpop.xlane.xlu0 %4527
        %4529 = vmax.xlane.f32.xlu0 %v4471
        %v4530 = vpop.xlane.xlu0 %4529
        %4531 = vmax.xlane.f32.xlu0 %v4472
        %v4532 = vpop.xlane.xlu0 %4531
        %4533 = vmax.xlane.f32.xlu0 %v4473
        %v4534 = vpop.xlane.xlu0 %4533
        %4535 = vmax.xlane.f32.xlu0 %v4474
        %v4536 = vpop.xlane.xlu0 %4535
        %4537 = vmax.xlane.f32.xlu0 %v4475
        %v4538 = vpop.xlane.xlu0 %4537
        %4539 = vmax.xlane.f32.xlu0 %v4476
        %v4540 = vpop.xlane.xlu0 %4539
        %v4541 = vsub.f32 %v4445, %v4478
        %v4542 = vsub.f32 %v4446, %v4480
        %v4543 = vsub.f32 %v4447, %v4482
        %v4544 = vsub.f32 %v4448, %v4484
        %v4545 = vsub.f32 %v4449, %v4486
        %v4546 = vsub.f32 %v4450, %v4488
        %v4547 = vsub.f32 %v4451, %v4490
        %v4548 = vsub.f32 %v4452, %v4492
        %v4549 = vsub.f32 %v4453, %v4494
        %v4550 = vsub.f32 %v4454, %v4496
        %v4551 = vsub.f32 %v4455, %v4498
        %v4552 = vsub.f32 %v4456, %v4500
        %v4553 = vsub.f32 %v4457, %v4502
        %v4554 = vsub.f32 %v4458, %v4504
        %v4555 = vsub.f32 %v4459, %v4506
        %v4556 = vsub.f32 %v4460, %v4508
        %v4557 = vsub.f32 %v4461, %v4510
        %v4558 = vsub.f32 %v4462, %v4512
        %v4559 = vsub.f32 %v4463, %v4514
        %v4560 = vsub.f32 %v4464, %v4516
        %v4561 = vsub.f32 %v4465, %v4518
        %v4562 = vsub.f32 %v4466, %v4520
        %v4563 = vsub.f32 %v4467, %v4522
        %v4564 = vsub.f32 %v4468, %v4524
        %v4565 = vsub.f32 %v4469, %v4526
        %v4566 = vsub.f32 %v4470, %v4528
        %v4567 = vsub.f32 %v4471, %v4530
        %v4568 = vsub.f32 %v4472, %v4532
        %v4569 = vsub.f32 %v4473, %v4534
        %v4570 = vsub.f32 %v4474, %v4536
        %v4571 = vsub.f32 %v4475, %v4538
        %v4572 = vsub.f32 %v4476, %v4540
        %v4573 = vmul.f32 %v4541, 1.442695
        %v4574 = vpow.pop %v4573
        %v4575 = vmul.f32 %v4542, 1.442695
        %v4576 = vpow.pop %v4575
        %v4577 = vmul.f32 %v4543, 1.442695
        %v4578 = vpow.pop %v4577
        %v4579 = vmul.f32 %v4544, 1.442695
        %v4580 = vpow.pop %v4579
        %v4581 = vmul.f32 %v4545, 1.442695
        %v4582 = vpow.pop %v4581
        %v4583 = vmul.f32 %v4546, 1.442695
        %v4584 = vpow.pop %v4583
        %v4585 = vmul.f32 %v4547, 1.442695
        %v4586 = vpow.pop %v4585
        %v4587 = vmul.f32 %v4548, 1.442695
        %v4588 = vpow.pop %v4587
        %v4589 = vmul.f32 %v4549, 1.442695
        %v4590 = vpow.pop %v4589
        %v4591 = vmul.f32 %v4550, 1.442695
        %v4592 = vpow.pop %v4591
        %v4593 = vmul.f32 %v4551, 1.442695
        %v4594 = vpow.pop %v4593
        %v4595 = vmul.f32 %v4552, 1.442695
        %v4596 = vpow.pop %v4595
        %v4597 = vmul.f32 %v4553, 1.442695
        %v4598 = vpow.pop %v4597
        %v4599 = vmul.f32 %v4554, 1.442695
        %v4600 = vpow.pop %v4599
        %v4601 = vmul.f32 %v4555, 1.442695
        %v4602 = vpow.pop %v4601
        %v4603 = vmul.f32 %v4556, 1.442695
        %v4604 = vpow.pop %v4603
        %v4605 = vmul.f32 %v4557, 1.442695
        %v4606 = vpow.pop %v4605
        %v4607 = vmul.f32 %v4558, 1.442695
        %v4608 = vpow.pop %v4607
        %v4609 = vmul.f32 %v4559, 1.442695
        %v4610 = vpow.pop %v4609
        %v4611 = vmul.f32 %v4560, 1.442695
        %v4612 = vpow.pop %v4611
        %v4613 = vmul.f32 %v4561, 1.442695
        %v4614 = vpow.pop %v4613
        %v4615 = vmul.f32 %v4562, 1.442695
        %v4616 = vpow.pop %v4615
        %v4617 = vmul.f32 %v4563, 1.442695
        %v4618 = vpow.pop %v4617
        %v4619 = vmul.f32 %v4564, 1.442695
        %v4620 = vpow.pop %v4619
        %v4621 = vmul.f32 %v4565, 1.442695
        %v4622 = vpow.pop %v4621
        %v4623 = vmul.f32 %v4566, 1.442695
        %v4624 = vpow.pop %v4623
        %v4625 = vmul.f32 %v4567, 1.442695
        %v4626 = vpow.pop %v4625
        %v4627 = vmul.f32 %v4568, 1.442695
        %v4628 = vpow.pop %v4627
        %v4629 = vmul.f32 %v4569, 1.442695
        %v4630 = vpow.pop %v4629
        %v4631 = vmul.f32 %v4570, 1.442695
        %v4632 = vpow.pop %v4631
        %v4633 = vmul.f32 %v4571, 1.442695
        %v4634 = vpow.pop %v4633
        %v4635 = vmul.f32 %v4572, 1.442695
        %v4636 = vpow.pop %v4635
        %v4637 = vmul.f32 %v4574, %v850
        %v4638 = vmul.f32 %v4576, %v851
        %v4639 = vmul.f32 %v4578, %v852
        %v4640 = vmul.f32 %v4580, %v853
        %v4641 = vmul.f32 %v4582, %v854
        %v4642 = vmul.f32 %v4584, %v855
        %v4643 = vmul.f32 %v4586, %v856
        %v4644 = vmul.f32 %v4588, %v857
        %v4645 = vmul.f32 %v4590, %v858
        %v4646 = vmul.f32 %v4592, %v859
        %v4647 = vmul.f32 %v4594, %v860
        %v4648 = vmul.f32 %v4596, %v861
        %v4649 = vmul.f32 %v4598, %v862
        %v4650 = vmul.f32 %v4600, %v863
        %v4651 = vmul.f32 %v4602, %v864
        %v4652 = vmul.f32 %v4604, %v865
        %v4653 = vmul.f32 %v4606, %v866
        %v4654 = vmul.f32 %v4608, %v867
        %v4655 = vmul.f32 %v4610, %v868
        %v4656 = vmul.f32 %v4612, %v869
        %v4657 = vmul.f32 %v4614, %v870
        %v4658 = vmul.f32 %v4616, %v871
        %v4659 = vmul.f32 %v4618, %v872
        %v4660 = vmul.f32 %v4620, %v873
        %v4661 = vmul.f32 %v4622, %v874
        %v4662 = vmul.f32 %v4624, %v875
        %v4663 = vmul.f32 %v4626, %v876
        %v4664 = vmul.f32 %v4628, %v877
        %v4665 = vmul.f32 %v4630, %v878
        %v4666 = vmul.f32 %v4632, %v879
        %v4667 = vmul.f32 %v4634, %v880
        %v4668 = vmul.f32 %v4636, %v881
        %4669 = vadd.xlane.f32.xlu0 %v4637
        %v4670 = vpop.xlane.xlu0 %4669
        %4671 = vadd.xlane.f32.xlu0 %v4638
        %v4672 = vpop.xlane.xlu0 %4671
        %4673 = vadd.xlane.f32.xlu0 %v4639
        %v4674 = vpop.xlane.xlu0 %4673
        %4675 = vadd.xlane.f32.xlu0 %v4640
        %v4676 = vpop.xlane.xlu0 %4675
        %4677 = vadd.xlane.f32.xlu0 %v4641
        %v4678 = vpop.xlane.xlu0 %4677
        %4679 = vadd.xlane.f32.xlu0 %v4642
        %v4680 = vpop.xlane.xlu0 %4679
        %4681 = vadd.xlane.f32.xlu0 %v4643
        %v4682 = vpop.xlane.xlu0 %4681
        %4683 = vadd.xlane.f32.xlu0 %v4644
        %v4684 = vpop.xlane.xlu0 %4683
        %4685 = vadd.xlane.f32.xlu0 %v4645
        %v4686 = vpop.xlane.xlu0 %4685
        %4687 = vadd.xlane.f32.xlu0 %v4646
        %v4688 = vpop.xlane.xlu0 %4687
        %4689 = vadd.xlane.f32.xlu0 %v4647
        %v4690 = vpop.xlane.xlu0 %4689
        %4691 = vadd.xlane.f32.xlu0 %v4648
        %v4692 = vpop.xlane.xlu0 %4691
        %4693 = vadd.xlane.f32.xlu0 %v4649
        %v4694 = vpop.xlane.xlu0 %4693
        %4695 = vadd.xlane.f32.xlu0 %v4650
        %v4696 = vpop.xlane.xlu0 %4695
        %4697 = vadd.xlane.f32.xlu0 %v4651
        %v4698 = vpop.xlane.xlu0 %4697
        %4699 = vadd.xlane.f32.xlu0 %v4652
        %v4700 = vpop.xlane.xlu0 %4699
        %4701 = vadd.xlane.f32.xlu0 %v4653
        %v4702 = vpop.xlane.xlu0 %4701
        %4703 = vadd.xlane.f32.xlu0 %v4654
        %v4704 = vpop.xlane.xlu0 %4703
        %4705 = vadd.xlane.f32.xlu0 %v4655
        %v4706 = vpop.xlane.xlu0 %4705
        %4707 = vadd.xlane.f32.xlu0 %v4656
        %v4708 = vpop.xlane.xlu0 %4707
        %4709 = vadd.xlane.f32.xlu0 %v4657
        %v4710 = vpop.xlane.xlu0 %4709
        %4711 = vadd.xlane.f32.xlu0 %v4658
        %v4712 = vpop.xlane.xlu0 %4711
        %4713 = vadd.xlane.f32.xlu0 %v4659
        %v4714 = vpop.xlane.xlu0 %4713
        %4715 = vadd.xlane.f32.xlu0 %v4660
        %v4716 = vpop.xlane.xlu0 %4715
        %4717 = vadd.xlane.f32.xlu0 %v4661
        %v4718 = vpop.xlane.xlu0 %4717
        %4719 = vadd.xlane.f32.xlu0 %v4662
        %v4720 = vpop.xlane.xlu0 %4719
        %4721 = vadd.xlane.f32.xlu0 %v4663
        %v4722 = vpop.xlane.xlu0 %4721
        %4723 = vadd.xlane.f32.xlu0 %v4664
        %v4724 = vpop.xlane.xlu0 %4723
        %4725 = vadd.xlane.f32.xlu0 %v4665
        %v4726 = vpop.xlane.xlu0 %4725
        %4727 = vadd.xlane.f32.xlu0 %v4666
        %v4728 = vpop.xlane.xlu0 %4727
        %4729 = vadd.xlane.f32.xlu0 %v4667
        %v4730 = vpop.xlane.xlu0 %4729
        %4731 = vadd.xlane.f32.xlu0 %v4668
        %v4732 = vpop.xlane.xlu0 %4731
        %vm4733 = vcmp.gt.f32.partialorder %v4670, 0.0
        %vm4734 = vcmp.gt.f32.partialorder %v4672, 0.0
        %vm4735 = vcmp.gt.f32.partialorder %v4674, 0.0
        %vm4736 = vcmp.gt.f32.partialorder %v4676, 0.0
        %vm4737 = vcmp.gt.f32.partialorder %v4678, 0.0
        %vm4738 = vcmp.gt.f32.partialorder %v4680, 0.0
        %vm4739 = vcmp.gt.f32.partialorder %v4682, 0.0
        %vm4740 = vcmp.gt.f32.partialorder %v4684, 0.0
        %vm4741 = vcmp.gt.f32.partialorder %v4686, 0.0
        %vm4742 = vcmp.gt.f32.partialorder %v4688, 0.0
        %vm4743 = vcmp.gt.f32.partialorder %v4690, 0.0
        %vm4744 = vcmp.gt.f32.partialorder %v4692, 0.0
        %vm4745 = vcmp.gt.f32.partialorder %v4694, 0.0
        %vm4746 = vcmp.gt.f32.partialorder %v4696, 0.0
        %vm4747 = vcmp.gt.f32.partialorder %v4698, 0.0
        %vm4748 = vcmp.gt.f32.partialorder %v4700, 0.0
        %vm4749 = vcmp.gt.f32.partialorder %v4702, 0.0
        %vm4750 = vcmp.gt.f32.partialorder %v4704, 0.0
        %vm4751 = vcmp.gt.f32.partialorder %v4706, 0.0
        %vm4752 = vcmp.gt.f32.partialorder %v4708, 0.0
        %vm4753 = vcmp.gt.f32.partialorder %v4710, 0.0
        %vm4754 = vcmp.gt.f32.partialorder %v4712, 0.0
        %vm4755 = vcmp.gt.f32.partialorder %v4714, 0.0
        %vm4756 = vcmp.gt.f32.partialorder %v4716, 0.0
        %vm4757 = vcmp.gt.f32.partialorder %v4718, 0.0
        %vm4758 = vcmp.gt.f32.partialorder %v4720, 0.0
        %vm4759 = vcmp.gt.f32.partialorder %v4722, 0.0
        %vm4760 = vcmp.gt.f32.partialorder %v4724, 0.0
        %vm4761 = vcmp.gt.f32.partialorder %v4726, 0.0
        %vm4762 = vcmp.gt.f32.partialorder %v4728, 0.0
        %vm4763 = vcmp.gt.f32.partialorder %v4730, 0.0
        %vm4764 = vcmp.gt.f32.partialorder %v4732, 0.0
        %v4765 = vsel %vm4733, %v4670, 1.0
        %v4766 = vsel %vm4734, %v4672, 1.0
        %v4767 = vsel %vm4735, %v4674, 1.0
        %v4768 = vsel %vm4736, %v4676, 1.0
        %v4769 = vsel %vm4737, %v4678, 1.0
        %v4770 = vsel %vm4738, %v4680, 1.0
        %v4771 = vsel %vm4739, %v4682, 1.0
        %v4772 = vsel %vm4740, %v4684, 1.0
        %v4773 = vsel %vm4741, %v4686, 1.0
        %v4774 = vsel %vm4742, %v4688, 1.0
        %v4775 = vsel %vm4743, %v4690, 1.0
        %v4776 = vsel %vm4744, %v4692, 1.0
        %v4777 = vsel %vm4745, %v4694, 1.0
        %v4778 = vsel %vm4746, %v4696, 1.0
        %v4779 = vsel %vm4747, %v4698, 1.0
        %v4780 = vsel %vm4748, %v4700, 1.0
        %v4781 = vsel %vm4749, %v4702, 1.0
        %v4782 = vsel %vm4750, %v4704, 1.0
        %v4783 = vsel %vm4751, %v4706, 1.0
        %v4784 = vsel %vm4752, %v4708, 1.0
        %v4785 = vsel %vm4753, %v4710, 1.0
        %v4786 = vsel %vm4754, %v4712, 1.0
        %v4787 = vsel %vm4755, %v4714, 1.0
        %v4788 = vsel %vm4756, %v4716, 1.0
        %v4789 = vsel %vm4757, %v4718, 1.0
        %v4790 = vsel %vm4758, %v4720, 1.0
        %v4791 = vsel %vm4759, %v4722, 1.0
        %v4792 = vsel %vm4760, %v4724, 1.0
        %v4793 = vsel %vm4761, %v4726, 1.0
        %v4794 = vsel %vm4762, %v4728, 1.0
        %v4795 = vsel %vm4763, %v4730, 1.0
        %v4796 = vsel %vm4764, %v4732, 1.0
        %v4797 = vrcp.pop %v4765
        %v4798 = vrcp.pop %v4766
        %v4799 = vrcp.pop %v4767
        %v4800 = vrcp.pop %v4768
        %v4801 = vrcp.pop %v4769
        %v4802 = vrcp.pop %v4770
        %v4803 = vrcp.pop %v4771
        %v4804 = vrcp.pop %v4772
        %v4805 = vrcp.pop %v4773
        %v4806 = vrcp.pop %v4774
        %v4807 = vrcp.pop %v4775
        %v4808 = vrcp.pop %v4776
        %v4809 = vrcp.pop %v4777
        %v4810 = vrcp.pop %v4778
        %v4811 = vrcp.pop %v4779
        %v4812 = vrcp.pop %v4780
        %v4813 = vrcp.pop %v4781
        %v4814 = vrcp.pop %v4782
        %v4815 = vrcp.pop %v4783
        %v4816 = vrcp.pop %v4784
        %v4817 = vrcp.pop %v4785
        %v4818 = vrcp.pop %v4786
        %v4819 = vrcp.pop %v4787
        %v4820 = vrcp.pop %v4788
        %v4821 = vrcp.pop %v4789
        %v4822 = vrcp.pop %v4790
        %v4823 = vrcp.pop %v4791
        %v4824 = vrcp.pop %v4792
        %v4825 = vrcp.pop %v4793
        %v4826 = vrcp.pop %v4794
        %v4827 = vrcp.pop %v4795
        %v4828 = vrcp.pop %v4796
        %v4829 = vmul.f32 %v4637, %v4797
        %v4830 = vmul.f32 %v4638, %v4798
        %v4831 = vmul.f32 %v4639, %v4799
        %v4832 = vmul.f32 %v4640, %v4800
        %v4833 = vmul.f32 %v4641, %v4801
        %v4834 = vmul.f32 %v4642, %v4802
        %v4835 = vmul.f32 %v4643, %v4803
        %v4836 = vmul.f32 %v4644, %v4804
        %v4837 = vmul.f32 %v4645, %v4805
        %v4838 = vmul.f32 %v4646, %v4806
        %v4839 = vmul.f32 %v4647, %v4807
        %v4840 = vmul.f32 %v4648, %v4808
        %v4841 = vmul.f32 %v4649, %v4809
        %v4842 = vmul.f32 %v4650, %v4810
        %v4843 = vmul.f32 %v4651, %v4811
        %v4844 = vmul.f32 %v4652, %v4812
        %v4845 = vmul.f32 %v4653, %v4813
        %v4846 = vmul.f32 %v4654, %v4814
        %v4847 = vmul.f32 %v4655, %v4815
        %v4848 = vmul.f32 %v4656, %v4816
        %v4849 = vmul.f32 %v4657, %v4817
        %v4850 = vmul.f32 %v4658, %v4818
        %v4851 = vmul.f32 %v4659, %v4819
        %v4852 = vmul.f32 %v4660, %v4820
        %v4853 = vmul.f32 %v4661, %v4821
        %v4854 = vmul.f32 %v4662, %v4822
        %v4855 = vmul.f32 %v4663, %v4823
        %v4856 = vmul.f32 %v4664, %v4824
        %v4857 = vmul.f32 %v4665, %v4825
        %v4858 = vmul.f32 %v4666, %v4826
        %v4859 = vmul.f32 %v4667, %v4827
        %v4860 = vmul.f32 %v4668, %v4828
        %v4861 = vpack.c.bf16 %v4830, %v4829
        %v4862 = vpack.c.bf16 %v4832, %v4831
        %v4863 = vpack.c.bf16 %v4834, %v4833
        %v4864 = vpack.c.bf16 %v4836, %v4835
        %v4865 = vpack.c.bf16 %v4838, %v4837
        %v4866 = vpack.c.bf16 %v4840, %v4839
        %v4867 = vpack.c.bf16 %v4842, %v4841
        %v4868 = vpack.c.bf16 %v4844, %v4843
        %v4869 = vpack.c.bf16 %v4846, %v4845
        %v4870 = vpack.c.bf16 %v4848, %v4847
        %v4871 = vpack.c.bf16 %v4850, %v4849
        %v4872 = vpack.c.bf16 %v4852, %v4851
        %v4873 = vpack.c.bf16 %v4854, %v4853
        %v4874 = vpack.c.bf16 %v4856, %v4855
        %v4875 = vpack.c.bf16 %v4858, %v4857
        %v4876 = vpack.c.bf16 %v4860, %v4859
        %v4877 = vadd.f32 %v3830, %v4829
        %v4878 = vadd.f32 %v3831, %v4830
        %v4879 = vadd.f32 %v3832, %v4831
        %v4880 = vadd.f32 %v3833, %v4832
        %v4881 = vadd.f32 %v3834, %v4833
        %v4882 = vadd.f32 %v3835, %v4834
        %v4883 = vadd.f32 %v3836, %v4835
        %v4884 = vadd.f32 %v3837, %v4836
        %v4885 = vadd.f32 %v3838, %v4837
        %v4886 = vadd.f32 %v3839, %v4838
        %v4887 = vadd.f32 %v3840, %v4839
        %v4888 = vadd.f32 %v3841, %v4840
        %v4889 = vadd.f32 %v3842, %v4841
        %v4890 = vadd.f32 %v3843, %v4842
        %v4891 = vadd.f32 %v3844, %v4843
        %v4892 = vadd.f32 %v3845, %v4844
        %v4893 = vadd.f32 %v3846, %v4845
        %v4894 = vadd.f32 %v3847, %v4846
        %v4895 = vadd.f32 %v3848, %v4847
        %v4896 = vadd.f32 %v3849, %v4848
        %v4897 = vadd.f32 %v3850, %v4849
        %v4898 = vadd.f32 %v3851, %v4850
        %v4899 = vadd.f32 %v3852, %v4851
        %v4900 = vadd.f32 %v3853, %v4852
        %v4901 = vadd.f32 %v3854, %v4853
        %v4902 = vadd.f32 %v3855, %v4854
        %v4903 = vadd.f32 %v3856, %v4855
        %v4904 = vadd.f32 %v3857, %v4856
        %v4905 = vadd.f32 %v3858, %v4857
        %v4906 = vadd.f32 %v3859, %v4858
        %v4907 = vadd.f32 %v3860, %v4859
        %v4908 = vadd.f32 %v3861, %v4860
        %v4909 = vld [vmem:[#allocation11 + $0xc] sm:$0xf]
        %v4910 = vld [vmem:[#allocation11 + $0x1c] sm:$0xf]
        %v4911 = vld [vmem:[#allocation11 + $0x2c] sm:$0xf]
        %v4912 = vld [vmem:[#allocation11 + $0x3c] sm:$0xf]
        %v4913 = vld [vmem:[#allocation11 + $0x4c] sm:$0xf]
        %v4914 = vld [vmem:[#allocation11 + $0x5c] sm:$0xf]
        %v4915 = vld [vmem:[#allocation11 + $0x6c] sm:$0xf]
        %v4916 = vld [vmem:[#allocation11 + $0x7c] sm:$0xf]
        %v4917 = vld [vmem:[#allocation11 + $0x8c] sm:$0xf]
        %v4918 = vld [vmem:[#allocation11 + $0x9c] sm:$0xf]
        %v4919 = vld [vmem:[#allocation11 + $0xac] sm:$0xf]
        %v4920 = vld [vmem:[#allocation11 + $0xbc] sm:$0xf]
        %v4921 = vld [vmem:[#allocation11 + $0xcc] sm:$0xf]
        %v4922 = vld [vmem:[#allocation11 + $0xdc] sm:$0xf]
        %v4923 = vld [vmem:[#allocation11 + $0xec] sm:$0xf]
        %v4924 = vld [vmem:[#allocation11 + $0xfc] sm:$0xf]
        %v4941 = vunpack.c.l.b16 %v4909
        %v4942 = vunpack.c.l.b16 %v4910
        %v4943 = vunpack.c.l.b16 %v4911
        %v4944 = vunpack.c.l.b16 %v4912
        %v4945 = vunpack.c.l.b16 %v4913
        %v4946 = vunpack.c.l.b16 %v4914
        %v4947 = vunpack.c.l.b16 %v4915
        %v4948 = vunpack.c.l.b16 %v4916
        %v4949 = vunpack.c.l.b16 %v4917
        %v4950 = vunpack.c.l.b16 %v4918
        %v4951 = vunpack.c.l.b16 %v4919
        %v4952 = vunpack.c.l.b16 %v4920
        %v4953 = vunpack.c.l.b16 %v4921
        %v4954 = vunpack.c.l.b16 %v4922
        %v4955 = vunpack.c.l.b16 %v4923
        %v4956 = vunpack.c.l.b16 %v4924
        %v4957 = vpack.c.b16 %v4942, %v4941
        %v4958 = vpack.c.b16 %v4944, %v4943
        %v4959 = vpack.c.b16 %v4946, %v4945
        %v4960 = vpack.c.b16 %v4948, %v4947
        %v4961 = vpack.c.b16 %v4950, %v4949
        %v4962 = vpack.c.b16 %v4952, %v4951
        %v4963 = vpack.c.b16 %v4954, %v4953
        %v4964 = vpack.c.b16 %v4956, %v4955
        %4973 = vmatprep.subr.bf16.mxu0 0
        %4974 = vmatpush1.bf16.msra.mxu0 %v4957
        %4975 = vmatprep.subr.bf16.mxu0 0
        %4976 = vmatpush1.bf16.msra.mxu0 %v4958
        %4977 = vmatprep.subr.bf16.mxu0 0
        %4978 = vmatpush1.bf16.msra.mxu0 %v4959
        %4979 = vmatprep.subr.bf16.mxu0 0
        %4980 = vmatpush1.bf16.msra.mxu0 %v4960
        %4981 = vmatprep.subr.bf16.mxu0 0
        %4982 = vmatpush1.bf16.msra.mxu0 %v4961
        %4983 = vmatprep.subr.bf16.mxu0 0
        %4984 = vmatpush1.bf16.msra.mxu0 %v4962
        %4985 = vmatprep.subr.bf16.mxu0 0
        %4986 = vmatpush1.bf16.msra.mxu0 %v4963
        %4987 = vmatprep.subr.bf16.mxu0 0
        %4988 = vmatpush1.bf16.msra.mxu0 %v4964
        %4989 = vmatprep.subr.bf16.mxu0 0
        %4990 = vmatpush1.bf16.msra.mxu0 0
        %4991 = vmatprep.subr.bf16.mxu0 0
        %4992 = vmatpush1.bf16.msra.mxu0 0
        %4993 = vmatprep.subr.bf16.mxu0 0
        %4994 = vmatpush1.bf16.msra.mxu0 0
        %4995 = vmatprep.subr.bf16.mxu0 0
        %4996 = vmatpush1.bf16.msra.mxu0 0
        %4997 = vmatprep.subr.bf16.mxu0 0
        %4998 = vmatpush1.bf16.msra.mxu0 0
        %4999 = vmatprep.subr.bf16.mxu0 0
        %5000 = vmatpush1.bf16.msra.mxu0 0
        %5001 = vmatprep.subr.bf16.mxu0 0
        %5002 = vmatpush1.bf16.msra.mxu0 0
        %5003 = vmatprep.subr.bf16.mxu0 0
        %5004 = vmatpush1.bf16.msra.mxu0 0
        %5005 = vmatprep.mubr.bf16.mxu0 0
        %5006 = vmatmul.mubr.bf16.gmra.mrb[0].mxu0 %v802
        %v5007 = vpop.f32.mrb[0].mxu0
        %v5008 = vadd.f32 0.0, %v5007
        %v5009 = vpop.f32.mrb[0].mxu0
        %v5010 = vpop.f32.mrb[0].mxu0
        %v5011 = vadd.f32 0.0, %v5010
        %v5012 = vpop.f32.mrb[0].mxu0
        %5013 = vmatprep.mubr.bf16.mxu0 0
        %5014 = vmatmul.mubr.bf16.gmra.mrb[0].mxu0 %v803
        %v5015 = vpop.f32.mrb[0].mxu0
        %v5016 = vadd.f32 0.0, %v5015
        %v5017 = vpop.f32.mrb[0].mxu0
        %v5018 = vpop.f32.mrb[0].mxu0
        %v5019 = vadd.f32 0.0, %v5018
        %v5020 = vpop.f32.mrb[0].mxu0
        %5021 = vmatprep.mubr.bf16.mxu0 0
        %5022 = vmatmul.mubr.bf16.gmra.mrb[0].mxu0 %v804
        %v5023 = vpop.f32.mrb[0].mxu0
        %v5024 = vadd.f32 0.0, %v5023
        %v5025 = vpop.f32.mrb[0].mxu0
        %v5026 = vpop.f32.mrb[0].mxu0
        %v5027 = vadd.f32 0.0, %v5026
        %v5028 = vpop.f32.mrb[0].mxu0
        %5029 = vmatprep.mubr.bf16.mxu0 0
        %5030 = vmatmul.mubr.bf16.gmra.mrb[0].mxu0 %v805
        %v5031 = vpop.f32.mrb[0].mxu0
        %v5032 = vadd.f32 0.0, %v5031
        %v5033 = vpop.f32.mrb[0].mxu0
        %v5034 = vpop.f32.mrb[0].mxu0
        %v5035 = vadd.f32 0.0, %v5034
        %v5036 = vpop.f32.mrb[0].mxu0
        %5037 = vmatprep.mubr.bf16.mxu0 0
        %5038 = vmatmul.mubr.bf16.gmra.mrb[0].mxu0 %v806
        %v5039 = vpop.f32.mrb[0].mxu0
        %v5040 = vadd.f32 0.0, %v5039
        %v5041 = vpop.f32.mrb[0].mxu0
        %v5042 = vpop.f32.mrb[0].mxu0
        %v5043 = vadd.f32 0.0, %v5042
        %v5044 = vpop.f32.mrb[0].mxu0
        %5045 = vmatprep.mubr.bf16.mxu0 0
        %5046 = vmatmul.mubr.bf16.gmra.mrb[0].mxu0 %v807
        %v5047 = vpop.f32.mrb[0].mxu0
        %v5048 = vadd.f32 0.0, %v5047
        %v5049 = vpop.f32.mrb[0].mxu0
        %v5050 = vpop.f32.mrb[0].mxu0
        %v5051 = vadd.f32 0.0, %v5050
        %v5052 = vpop.f32.mrb[0].mxu0
        %5053 = vmatprep.mubr.bf16.mxu0 0
        %5054 = vmatmul.mubr.bf16.gmra.mrb[0].mxu0 %v808
        %v5055 = vpop.f32.mrb[0].mxu0
        %v5056 = vadd.f32 0.0, %v5055
        %v5057 = vpop.f32.mrb[0].mxu0
        %v5058 = vpop.f32.mrb[0].mxu0
        %v5059 = vadd.f32 0.0, %v5058
        %v5060 = vpop.f32.mrb[0].mxu0
        %5061 = vmatprep.mubr.bf16.mxu0 0
        %5062 = vmatmul.mubr.bf16.gmra.mrb[0].mxu0 %v809
        %v5063 = vpop.f32.mrb[0].mxu0
        %v5064 = vadd.f32 0.0, %v5063
        %v5065 = vpop.f32.mrb[0].mxu0
        %v5066 = vpop.f32.mrb[0].mxu0
        %v5067 = vadd.f32 0.0, %v5066
        %v5068 = vpop.f32.mrb[0].mxu0
        %5069 = vmatprep.mubr.bf16.mxu0 0
        %5070 = vmatmul.mubr.bf16.gmra.mrb[0].mxu0 %v810
        %v5071 = vpop.f32.mrb[0].mxu0
        %v5072 = vadd.f32 0.0, %v5071
        %v5073 = vpop.f32.mrb[0].mxu0
        %v5074 = vpop.f32.mrb[0].mxu0
        %v5075 = vadd.f32 0.0, %v5074
        %v5076 = vpop.f32.mrb[0].mxu0
        %5077 = vmatprep.mubr.bf16.mxu0 0
        %5078 = vmatmul.mubr.bf16.gmra.mrb[0].mxu0 %v811
        %v5079 = vpop.f32.mrb[0].mxu0
        %v5080 = vadd.f32 0.0, %v5079
        %v5081 = vpop.f32.mrb[0].mxu0
        %v5082 = vpop.f32.mrb[0].mxu0
        %v5083 = vadd.f32 0.0, %v5082
        %v5084 = vpop.f32.mrb[0].mxu0
        %5085 = vmatprep.mubr.bf16.mxu0 0
        %5086 = vmatmul.mubr.bf16.gmra.mrb[0].mxu0 %v812
        %v5087 = vpop.f32.mrb[0].mxu0
        %v5088 = vadd.f32 0.0, %v5087
        %v5089 = vpop.f32.mrb[0].mxu0
        %v5090 = vpop.f32.mrb[0].mxu0
        %v5091 = vadd.f32 0.0, %v5090
        %v5092 = vpop.f32.mrb[0].mxu0
        %5093 = vmatprep.mubr.bf16.mxu0 0
        %5094 = vmatmul.mubr.bf16.gmra.mrb[0].mxu0 %v813
        %v5095 = vpop.f32.mrb[0].mxu0
        %v5096 = vadd.f32 0.0, %v5095
        %v5097 = vpop.f32.mrb[0].mxu0
        %v5098 = vpop.f32.mrb[0].mxu0
        %v5099 = vadd.f32 0.0, %v5098
        %v5100 = vpop.f32.mrb[0].mxu0
        %5101 = vmatprep.mubr.bf16.mxu0 0
        %5102 = vmatmul.mubr.bf16.gmra.mrb[0].mxu0 %v814
        %v5103 = vpop.f32.mrb[0].mxu0
        %v5104 = vadd.f32 0.0, %v5103
        %v5105 = vpop.f32.mrb[0].mxu0
        %v5106 = vpop.f32.mrb[0].mxu0
        %v5107 = vadd.f32 0.0, %v5106
        %v5108 = vpop.f32.mrb[0].mxu0
        %5109 = vmatprep.mubr.bf16.mxu0 0
        %5110 = vmatmul.mubr.bf16.gmra.mrb[0].mxu0 %v815
        %v5111 = vpop.f32.mrb[0].mxu0
        %v5112 = vadd.f32 0.0, %v5111
        %v5113 = vpop.f32.mrb[0].mxu0
        %v5114 = vpop.f32.mrb[0].mxu0
        %v5115 = vadd.f32 0.0, %v5114
        %v5116 = vpop.f32.mrb[0].mxu0
        %5117 = vmatprep.mubr.bf16.mxu0 0
        %5118 = vmatmul.mubr.bf16.gmra.mrb[0].mxu0 %v816
        %v5119 = vpop.f32.mrb[0].mxu0
        %v5120 = vadd.f32 0.0, %v5119
        %v5121 = vpop.f32.mrb[0].mxu0
        %v5122 = vpop.f32.mrb[0].mxu0
        %v5123 = vadd.f32 0.0, %v5122
        %v5124 = vpop.f32.mrb[0].mxu0
        %5125 = vmatprep.mubr.bf16.mxu0 0
        %5126 = vmatmul.mubr.bf16.gmra.mrb[0].mxu0 %v817
        %v5127 = vpop.f32.mrb[0].mxu0
        %v5128 = vadd.f32 0.0, %v5127
        %v5129 = vpop.f32.mrb[0].mxu0
        %v5130 = vpop.f32.mrb[0].mxu0
        %v5131 = vadd.f32 0.0, %v5130
        %v5132 = vpop.f32.mrb[0].mxu0
        %5133 = vdwg.mxu0
        %v5134 = vpack.c.bf16 %v5011, %v5008
        %v5135 = vpack.c.bf16 %v5019, %v5016
        %v5136 = vpack.c.bf16 %v5027, %v5024
        %v5137 = vpack.c.bf16 %v5035, %v5032
        %v5138 = vpack.c.bf16 %v5043, %v5040
        %v5139 = vpack.c.bf16 %v5051, %v5048
        %v5140 = vpack.c.bf16 %v5059, %v5056
        %v5141 = vpack.c.bf16 %v5067, %v5064
        %v5142 = vpack.c.bf16 %v5075, %v5072
        %v5143 = vpack.c.bf16 %v5083, %v5080
        %v5144 = vpack.c.bf16 %v5091, %v5088
        %v5145 = vpack.c.bf16 %v5099, %v5096
        %v5146 = vpack.c.bf16 %v5107, %v5104
        %v5147 = vpack.c.bf16 %v5115, %v5112
        %v5148 = vpack.c.bf16 %v5123, %v5120
        %v5149 = vpack.c.bf16 %v5131, %v5128
        %5150 = vxpose.xlu0.c.b16.start [1/8] %v4861, 128
        %5151 = vxpose.xlu0.c.b16.cont [2/8] %v4862, 128
        %5152 = vxpose.xlu0.c.b16.cont [3/8] %v4863, 128
        %5153 = vxpose.xlu0.c.b16.cont [4/8] %v4864, 128
        %5154 = vxpose.xlu0.c.b16.cont [5/8] %v4865, 128
        %5155 = vxpose.xlu0.c.b16.cont [6/8] %v4866, 128
        %5156 = vxpose.xlu0.c.b16.cont [7/8] %v4867, 128
        %5157 = vxpose.xlu0.c.b16.end [8/8] %v4868, 128
        %v5158 = vpop.trf.xlu0
        %v5159 = vpop.trf.xlu0
        %v5160 = vpop.trf.xlu0
        %v5161 = vpop.trf.xlu0
        %v5162 = vpop.trf.xlu0
        %v5163 = vpop.trf.xlu0
        %v5164 = vpop.trf.xlu0
        %v5165 = vpop.trf.xlu0
        %5166 = vxpose.xlu0.c.b16.start [1/8] %v4869, 128
        %5167 = vxpose.xlu0.c.b16.cont [2/8] %v4870, 128
        %5168 = vxpose.xlu0.c.b16.cont [3/8] %v4871, 128
        %5169 = vxpose.xlu0.c.b16.cont [4/8] %v4872, 128
        %5170 = vxpose.xlu0.c.b16.cont [5/8] %v4873, 128
        %5171 = vxpose.xlu0.c.b16.cont [6/8] %v4874, 128
        %5172 = vxpose.xlu0.c.b16.cont [7/8] %v4875, 128
        %5173 = vxpose.xlu0.c.b16.end [8/8] %v4876, 128
        %v5174 = vpop.trf.xlu0
        %v5175 = vpop.trf.xlu0
        %v5176 = vpop.trf.xlu0
        %v5177 = vpop.trf.xlu0
        %v5178 = vpop.trf.xlu0
        %v5179 = vpop.trf.xlu0
        %v5180 = vpop.trf.xlu0
        %v5181 = vpop.trf.xlu0
        %5182 = vmatprep.subr.bf16.mxu0 0
        %5183 = vmatpush1.bf16.msra.mxu0 %v5134
        %5184 = vmatprep.subr.bf16.mxu0 0
        %5185 = vmatpush1.bf16.msra.mxu0 %v5135
        %5186 = vmatprep.subr.bf16.mxu0 0
        %5187 = vmatpush1.bf16.msra.mxu0 %v5136
        %5188 = vmatprep.subr.bf16.mxu0 0
        %5189 = vmatpush1.bf16.msra.mxu0 %v5137
        %5190 = vmatprep.subr.bf16.mxu0 0
        %5191 = vmatpush1.bf16.msra.mxu0 %v5138
        %5192 = vmatprep.subr.bf16.mxu0 0
        %5193 = vmatpush1.bf16.msra.mxu0 %v5139
        %5194 = vmatprep.subr.bf16.mxu0 0
        %5195 = vmatpush1.bf16.msra.mxu0 %v5140
        %5196 = vmatprep.subr.bf16.mxu0 0
        %5197 = vmatpush1.bf16.msra.mxu0 %v5141
        %5198 = vmatprep.subr.bf16.mxu0 0
        %5199 = vmatpush1.bf16.msra.mxu0 %v5142
        %5200 = vmatprep.subr.bf16.mxu0 0
        %5201 = vmatpush1.bf16.msra.mxu0 %v5143
        %5202 = vmatprep.subr.bf16.mxu0 0
        %5203 = vmatpush1.bf16.msra.mxu0 %v5144
        %5204 = vmatprep.subr.bf16.mxu0 0
        %5205 = vmatpush1.bf16.msra.mxu0 %v5145
        %5206 = vmatprep.subr.bf16.mxu0 0
        %5207 = vmatpush1.bf16.msra.mxu0 %v5146
        %5208 = vmatprep.subr.bf16.mxu0 0
        %5209 = vmatpush1.bf16.msra.mxu0 %v5147
        %5210 = vmatprep.subr.bf16.mxu0 0
        %5211 = vmatpush1.bf16.msra.mxu0 %v5148
        %5212 = vmatprep.subr.bf16.mxu0 0
        %5213 = vmatpush1.bf16.msra.mxu0 %v5149
        %5214 = vmatprep.mubr.bf16.mxu0 %v5174
        %5215 = vmatmul.mubr.bf16.gmra.mrb[0].mxu0 %v5158
        %v5216 = vpop.f32.mrb[0].mxu0
        %v5217 = vadd.f32 0.0, %v5216
        %v5218 = vpop.f32.mrb[0].mxu0
        %v5219 = vpop.f32.mrb[0].mxu0
        %v5220 = vadd.f32 0.0, %v5219
        %v5221 = vpop.f32.mrb[0].mxu0
        %5222 = vmatprep.mubr.bf16.mxu0 %v5175
        %5223 = vmatmul.mubr.bf16.gmra.mrb[0].mxu0 %v5159
        %v5224 = vpop.f32.mrb[0].mxu0
        %v5225 = vadd.f32 0.0, %v5224
        %v5226 = vpop.f32.mrb[0].mxu0
        %v5227 = vpop.f32.mrb[0].mxu0
        %v5228 = vadd.f32 0.0, %v5227
        %v5229 = vpop.f32.mrb[0].mxu0
        %5230 = vmatprep.mubr.bf16.mxu0 %v5176
        %5231 = vmatmul.mubr.bf16.gmra.mrb[0].mxu0 %v5160
        %v5232 = vpop.f32.mrb[0].mxu0
        %v5233 = vadd.f32 0.0, %v5232
        %v5234 = vpop.f32.mrb[0].mxu0
        %v5235 = vpop.f32.mrb[0].mxu0
        %v5236 = vadd.f32 0.0, %v5235
        %v5237 = vpop.f32.mrb[0].mxu0
        %5238 = vmatprep.mubr.bf16.mxu0 %v5177
        %5239 = vmatmul.mubr.bf16.gmra.mrb[0].mxu0 %v5161
        %v5240 = vpop.f32.mrb[0].mxu0
        %v5241 = vadd.f32 0.0, %v5240
        %v5242 = vpop.f32.mrb[0].mxu0
        %v5243 = vpop.f32.mrb[0].mxu0
        %v5244 = vadd.f32 0.0, %v5243
        %v5245 = vpop.f32.mrb[0].mxu0
        %5246 = vmatprep.mubr.bf16.mxu0 %v5178
        %5247 = vmatmul.mubr.bf16.gmra.mrb[0].mxu0 %v5162
        %v5248 = vpop.f32.mrb[0].mxu0
        %v5249 = vadd.f32 0.0, %v5248
        %v5250 = vpop.f32.mrb[0].mxu0
        %v5251 = vpop.f32.mrb[0].mxu0
        %v5252 = vadd.f32 0.0, %v5251
        %v5253 = vpop.f32.mrb[0].mxu0
        %5254 = vmatprep.mubr.bf16.mxu0 %v5179
        %5255 = vmatmul.mubr.bf16.gmra.mrb[0].mxu0 %v5163
        %v5256 = vpop.f32.mrb[0].mxu0
        %v5257 = vadd.f32 0.0, %v5256
        %v5258 = vpop.f32.mrb[0].mxu0
        %v5259 = vpop.f32.mrb[0].mxu0
        %v5260 = vadd.f32 0.0, %v5259
        %v5261 = vpop.f32.mrb[0].mxu0
        %5262 = vmatprep.mubr.bf16.mxu0 %v5180
        %5263 = vmatmul.mubr.bf16.gmra.mrb[0].mxu0 %v5164
        %v5264 = vpop.f32.mrb[0].mxu0
        %v5265 = vadd.f32 0.0, %v5264
        %v5266 = vpop.f32.mrb[0].mxu0
        %v5267 = vpop.f32.mrb[0].mxu0
        %v5268 = vadd.f32 0.0, %v5267
        %v5269 = vpop.f32.mrb[0].mxu0
        %5270 = vmatprep.mubr.bf16.mxu0 %v5181
        %5271 = vmatmul.mubr.bf16.gmra.mrb[0].mxu0 %v5165
        %v5272 = vpop.f32.mrb[0].mxu0
        %v5273 = vadd.f32 0.0, %v5272
        %v5274 = vpop.f32.mrb[0].mxu0
        %v5275 = vpop.f32.mrb[0].mxu0
        %v5276 = vadd.f32 0.0, %v5275
        %v5277 = vpop.f32.mrb[0].mxu0
        %5278 = vdwg.mxu0
        %v5279 = vadd.f32 %v4232, %v5217
        %v5280 = vadd.f32 %v4233, %v5220
        %v5281 = vadd.f32 %v4234, %v5225
        %v5282 = vadd.f32 %v4235, %v5228
        %v5283 = vadd.f32 %v4236, %v5233
        %v5284 = vadd.f32 %v4237, %v5236
        %v5285 = vadd.f32 %v4238, %v5241
        %v5286 = vadd.f32 %v4239, %v5244
        %v5287 = vadd.f32 %v4240, %v5249
        %v5288 = vadd.f32 %v4241, %v5252
        %v5289 = vadd.f32 %v4242, %v5257
        %v5290 = vadd.f32 %v4243, %v5260
        %v5291 = vadd.f32 %v4244, %v5265
        %v5292 = vadd.f32 %v4245, %v5268
        %v5293 = vadd.f32 %v4246, %v5273
        %v5294 = vadd.f32 %v4247, %v5276
        %v5295 = vpack.c.bf16 %v4878, %v4877
        %v5296 = vpack.c.bf16 %v4880, %v4879
        %v5297 = vpack.c.bf16 %v4882, %v4881
        %v5298 = vpack.c.bf16 %v4884, %v4883
        %v5299 = vpack.c.bf16 %v4886, %v4885
        %v5300 = vpack.c.bf16 %v4888, %v4887
        %v5301 = vpack.c.bf16 %v4890, %v4889
        %v5302 = vpack.c.bf16 %v4892, %v4891
        %v5303 = vpack.c.bf16 %v4894, %v4893
        %v5304 = vpack.c.bf16 %v4896, %v4895
        %v5305 = vpack.c.bf16 %v4898, %v4897
        %v5306 = vpack.c.bf16 %v4900, %v4899
        %v5307 = vpack.c.bf16 %v4902, %v4901
        %v5308 = vpack.c.bf16 %v4904, %v4903
        %v5309 = vpack.c.bf16 %v4906, %v4905
        %v5310 = vpack.c.bf16 %v4908, %v4907
        %v5327 = vunpack.c.l.b16 %v5295
        %v5328 = vunpack.c.h.b16 %v5295
        %v5329 = vunpack.c.l.b16 %v5296
        %v5330 = vunpack.c.h.b16 %v5296
        %v5331 = vunpack.c.l.b16 %v5297
        %v5332 = vunpack.c.h.b16 %v5297
        %v5333 = vunpack.c.l.b16 %v5298
        %v5334 = vunpack.c.h.b16 %v5298
        %v5335 = vunpack.c.l.b16 %v5299
        %v5336 = vunpack.c.h.b16 %v5299
        %v5337 = vunpack.c.l.b16 %v5300
        %v5338 = vunpack.c.h.b16 %v5300
        %v5339 = vunpack.c.l.b16 %v5301
        %v5340 = vunpack.c.h.b16 %v5301
        %v5341 = vunpack.c.l.b16 %v5302
        %v5342 = vunpack.c.h.b16 %v5302
        %v5343 = vunpack.c.l.b16 %v5303
        %v5344 = vunpack.c.h.b16 %v5303
        %v5345 = vunpack.c.l.b16 %v5304
        %v5346 = vunpack.c.h.b16 %v5304
        %v5347 = vunpack.c.l.b16 %v5305
        %v5348 = vunpack.c.h.b16 %v5305
        %v5349 = vunpack.c.l.b16 %v5306
        %v5350 = vunpack.c.h.b16 %v5306
        %v5351 = vunpack.c.l.b16 %v5307
        %v5352 = vunpack.c.h.b16 %v5307
        %v5353 = vunpack.c.l.b16 %v5308
        %v5354 = vunpack.c.h.b16 %v5308
        %v5355 = vunpack.c.l.b16 %v5309
        %v5356 = vunpack.c.h.b16 %v5309
        %v5357 = vunpack.c.l.b16 %v5310
        %v5358 = vunpack.c.h.b16 %v5310
        %v5359 = vpack.c.b16 %v5327, %v5327
        %v5360 = vpack.c.b16 %v5328, %v5328
        %v5361 = vpack.c.b16 %v5329, %v5329
        %v5362 = vpack.c.b16 %v5330, %v5330
        %v5363 = vpack.c.b16 %v5331, %v5331
        %v5364 = vpack.c.b16 %v5332, %v5332
        %v5365 = vpack.c.b16 %v5333, %v5333
        %v5366 = vpack.c.b16 %v5334, %v5334
        %v5367 = vpack.c.b16 %v5335, %v5335
        %v5368 = vpack.c.b16 %v5336, %v5336
        %v5369 = vpack.c.b16 %v5337, %v5337
        %v5370 = vpack.c.b16 %v5338, %v5338
        %v5371 = vpack.c.b16 %v5339, %v5339
        %v5372 = vpack.c.b16 %v5340, %v5340
        %v5373 = vpack.c.b16 %v5341, %v5341
        %v5374 = vpack.c.b16 %v5342, %v5342
        %v5375 = vpack.c.b16 %v5343, %v5343
        %v5376 = vpack.c.b16 %v5344, %v5344
        %v5377 = vpack.c.b16 %v5345, %v5345
        %v5378 = vpack.c.b16 %v5346, %v5346
        %v5379 = vpack.c.b16 %v5347, %v5347
        %v5380 = vpack.c.b16 %v5348, %v5348
        %v5381 = vpack.c.b16 %v5349, %v5349
        %v5382 = vpack.c.b16 %v5350, %v5350
        %v5383 = vpack.c.b16 %v5351, %v5351
        %v5384 = vpack.c.b16 %v5352, %v5352
        %v5385 = vpack.c.b16 %v5353, %v5353
        %v5386 = vpack.c.b16 %v5354, %v5354
        %v5387 = vpack.c.b16 %v5355, %v5355
        %v5388 = vpack.c.b16 %v5356, %v5356
        %v5389 = vpack.c.b16 %v5357, %v5357
        %v5390 = vpack.c.b16 %v5358, %v5358
        %5423 = vst [vmem:[%s483] sm:$0xf] %v5359
        %5424 = vst [vmem:[%s483 + $0x4] sm:$0xf] %v5360
        %5425 = vst [vmem:[%s483 + $0x8] sm:$0xf] %v5361
        %5426 = vst [vmem:[%s483 + $0xc] sm:$0xf] %v5362
        %5427 = vst [vmem:[%s483 + $0x10] sm:$0xf] %v5363
        %5428 = vst [vmem:[%s483 + $0x14] sm:$0xf] %v5364
        %5429 = vst [vmem:[%s483 + $0x18] sm:$0xf] %v5365
        %5430 = vst [vmem:[%s483 + $0x1c] sm:$0xf] %v5366
        %5431 = vst [vmem:[%s483 + $0x20] sm:$0xf] %v5367
        %5432 = vst [vmem:[%s483 + $0x24] sm:$0xf] %v5368
        %5433 = vst [vmem:[%s483 + $0x28] sm:$0xf] %v5369
        %5434 = vst [vmem:[%s483 + $0x2c] sm:$0xf] %v5370
        %5435 = vst [vmem:[%s483 + $0x30] sm:$0xf] %v5371
        %5436 = vst [vmem:[%s483 + $0x34] sm:$0xf] %v5372
        %5437 = vst [vmem:[%s483 + $0x38] sm:$0xf] %v5373
        %5438 = vst [vmem:[%s483 + $0x3c] sm:$0xf] %v5374
        %5439 = vst [vmem:[%s483 + $0x40] sm:$0xf] %v5375
        %5440 = vst [vmem:[%s483 + $0x44] sm:$0xf] %v5376
        %5441 = vst [vmem:[%s483 + $0x48] sm:$0xf] %v5377
        %5442 = vst [vmem:[%s483 + $0x4c] sm:$0xf] %v5378
        %5443 = vst [vmem:[%s483 + $0x50] sm:$0xf] %v5379
        %5444 = vst [vmem:[%s483 + $0x54] sm:$0xf] %v5380
        %5445 = vst [vmem:[%s483 + $0x58] sm:$0xf] %v5381
        %5446 = vst [vmem:[%s483 + $0x5c] sm:$0xf] %v5382
        %5447 = vst [vmem:[%s483 + $0x60] sm:$0xf] %v5383
        %5448 = vst [vmem:[%s483 + $0x64] sm:$0xf] %v5384
        %5449 = vst [vmem:[%s483 + $0x68] sm:$0xf] %v5385
        %5450 = vst [vmem:[%s483 + $0x6c] sm:$0xf] %v5386
        %5451 = vst [vmem:[%s483 + $0x70] sm:$0xf] %v5387
        %5452 = vst [vmem:[%s483 + $0x74] sm:$0xf] %v5388
        %5453 = vst [vmem:[%s483 + $0x78] sm:$0xf] %v5389
        %5454 = vst [vmem:[%s483 + $0x7c] sm:$0xf] %v5390
        %v5455 = vld [vmem:[%s490] sm:$0xff]
        %v5456 = vld [vmem:[%s490 + $0x8] sm:$0xff]
        %v5457 = vld [vmem:[%s490 + $0x10] sm:$0xff]
        %v5458 = vld [vmem:[%s490 + $0x18] sm:$0xff]
        %v5459 = vld [vmem:[%s490 + $0x20] sm:$0xff]
        %v5460 = vld [vmem:[%s490 + $0x28] sm:$0xff]
        %v5461 = vld [vmem:[%s490 + $0x30] sm:$0xff]
        %v5462 = vld [vmem:[%s490 + $0x38] sm:$0xff]
        %v5463 = vld [vmem:[%s490 + $0x40] sm:$0xff]
        %v5464 = vld [vmem:[%s490 + $0x48] sm:$0xff]
        %v5465 = vld [vmem:[%s490 + $0x50] sm:$0xff]
        %v5466 = vld [vmem:[%s490 + $0x58] sm:$0xff]
        %v5467 = vld [vmem:[%s490 + $0x60] sm:$0xff]
        %v5468 = vld [vmem:[%s490 + $0x68] sm:$0xff]
        %v5469 = vld [vmem:[%s490 + $0x70] sm:$0xff]
        %v5470 = vld [vmem:[%s490 + $0x78] sm:$0xff]
        %v5471 = vadd.f32 %v5455, %v5279
        %v5472 = vadd.f32 %v5456, %v5280
        %v5473 = vadd.f32 %v5457, %v5281
        %v5474 = vadd.f32 %v5458, %v5282
        %v5475 = vadd.f32 %v5459, %v5283
        %v5476 = vadd.f32 %v5460, %v5284
        %v5477 = vadd.f32 %v5461, %v5285
        %v5478 = vadd.f32 %v5462, %v5286
        %v5479 = vadd.f32 %v5463, %v5287
        %v5480 = vadd.f32 %v5464, %v5288
        %v5481 = vadd.f32 %v5465, %v5289
        %v5482 = vadd.f32 %v5466, %v5290
        %v5483 = vadd.f32 %v5467, %v5291
        %v5484 = vadd.f32 %v5468, %v5292
        %v5485 = vadd.f32 %v5469, %v5293
        %v5486 = vadd.f32 %v5470, %v5294
        %5487 = vst [vmem:[%s490] sm:$0xff] %v5471
        %5488 = vst [vmem:[%s490 + $0x8] sm:$0xff] %v5472
        %5489 = vst [vmem:[%s490 + $0x10] sm:$0xff] %v5473
        %5490 = vst [vmem:[%s490 + $0x18] sm:$0xff] %v5474
        %5491 = vst [vmem:[%s490 + $0x20] sm:$0xff] %v5475
        %5492 = vst [vmem:[%s490 + $0x28] sm:$0xff] %v5476
        %5493 = vst [vmem:[%s490 + $0x30] sm:$0xff] %v5477
        %5494 = vst [vmem:[%s490 + $0x38] sm:$0xff] %v5478
        %5495 = vst [vmem:[%s490 + $0x40] sm:$0xff] %v5479
        %5496 = vst [vmem:[%s490 + $0x48] sm:$0xff] %v5480
        %5497 = vst [vmem:[%s490 + $0x50] sm:$0xff] %v5481
        %5498 = vst [vmem:[%s490 + $0x58] sm:$0xff] %v5482
        %5499 = vst [vmem:[%s490 + $0x60] sm:$0xff] %v5483
        %5500 = vst [vmem:[%s490 + $0x68] sm:$0xff] %v5484
        %5501 = vst [vmem:[%s490 + $0x70] sm:$0xff] %v5485
        %5502 = vst [vmem:[%s490 + $0x78] sm:$0xff] %v5486
        %s5503 = sand.u32 %s224, 1
        %s5504 = scalar_lea.sflag [#allocation5], %s5503
        %s5505 = sand.u32 %s224, 1
        %s5506 = smul.addr %s5505, 128
        %s5507 = scalar_lea.vmem [#allocation15], %s5506
        %s5508 = sand.u32 %s250, 1
        %s5509 = scalar_lea.sflag [#allocation17], %s5508
        %s5510 = sand.u32 %s250, 1
        %s5511 = smul.addr %s5510, 128
        %s5512 = scalar_lea.vmem [#allocation16], %s5511
        // Predicated region
        $region81: #{tpu_custom_call.1} parent=47 // pred_check
          %p5513 = pneg %p234
        $region82: #{tpu_custom_call.1} parent=47 // pred_check_branch
          %5515 = sbr.rel (%p5513) target = $region84
        $region83: #{tpu_custom_call.1} parent=47 // pred_region
          %s5516 = sadd.s32 %s38, %s39
          %s5517 = smul.u32 32, %s5516
          %s5519 = ssub.s32 2048, 2048
          %5520 = vsyncadd %s5504, %s5519
          %s5521 = smul.addr %s5517, 64
          %s5522 = scalar_lea.hbm %s7, %s5521
          %s5523 = sshll.u32 %s5507, 4
          %s5524 = int_to_ptr.vmem [resolvable:$true] %s5523
          %5529 = dma.vmem_to_hbm [thread:$0]  %s5524, 2048, %s5522, %s5504, 64, 64, 4
        $region84: #{tpu_custom_call.1} parent=47 // pred_fallthru
          _
        // Predicated region
        $region85: #{tpu_custom_call.1} parent=47 // pred_check
          %p5530 = pneg %p260
        $region86: #{tpu_custom_call.1} parent=47 // pred_check_branch
          %5532 = sbr.rel (%p5530) target = $region88
        $region87: #{tpu_custom_call.1} parent=47 // pred_region
          %s5534 = ssub.s32 2048, 2048
          %5535 = vsyncadd %s5509, %s5534
          %s5536 = smul.addr %s38, 16
          %s5537 = smul.addr %s5536, 128
          %s5538 = scalar_lea.hbm %s8, %s5537
          %s5539 = sshll.u32 %s5512, 4
          %s5540 = int_to_ptr.vmem [resolvable:$true] %s5539
          %5545 = dma.vmem_to_hbm [thread:$0]  %s5540, 2048, %s5538, %s5509, 128, 128, 8
        $region88: #{tpu_custom_call.1} parent=47 // pred_fallthru
          _
      $region48: #{tpu_custom_call.1} parent=5 // pred_fallthru
        _
      %p5546 = scmp.le.s32.totalorder 2, %s29
      // Predicated region
      $region89: #{tpu_custom_call.1} parent=5 // pred_check
        %p5547 = pneg %p5546
      $region90: #{tpu_custom_call.1} parent=5 // pred_check_branch
        %5549 = sbr.rel (%p5547) target = $region92
      $region91: #{tpu_custom_call.1} parent=5 // pred_region
        %s5550 = ssub.s32 %s29, 2
        // Predicated region
        $region93: #{tpu_custom_call.1} parent=91 // pred_check
          %p5551 = pneg %p240
        $region94: #{tpu_custom_call.1} parent=91 // pred_check_branch
          %5553 = sbr.rel (%p5551) target = $region96
        $region95: #{tpu_custom_call.1} parent=91 // pred_region
          %s5554 = sand.u32 %s225, 1
          %s5555 = scalar_lea.sflag [#allocation5], %s5554
          %s5556 = sand.u32 %s225, 1
          %s5557 = smul.addr %s5556, 128
          %s5558 = scalar_lea.vmem [#allocation15], %s5557
          %5559 = dma.done %s5555, 2048
        $region96: #{tpu_custom_call.1} parent=91 // pred_fallthru
          _
        // Predicated region
        $region97: #{tpu_custom_call.1} parent=91 // pred_check
          %p5560 = pneg %p266
        $region98: #{tpu_custom_call.1} parent=91 // pred_check_branch
          %5562 = sbr.rel (%p5560) target = $region100
        $region99: #{tpu_custom_call.1} parent=91 // pred_region
          %s5563 = sand.u32 %s251, 1
          %s5564 = scalar_lea.sflag [#allocation17], %s5563
          %s5565 = sand.u32 %s251, 1
          %s5566 = smul.addr %s5565, 128
          %s5567 = scalar_lea.vmem [#allocation16], %s5566
          %5568 = dma.done %s5564, 2048
        $region100: #{tpu_custom_call.1} parent=91 // pred_fallthru
          _
      $region92: #{tpu_custom_call.1} parent=5 // pred_fallthru
        _
    $region6: #{tpu_custom_call.1} parent=1 // loop_footer
      %s33 = sadd.s32 1, %s29
    $region7: #{tpu_custom_call.1} parent=1 // loop_footer_branch
      %28 = sbr.rel target = $region3
    $region8: #{tpu_custom_call.1} parent=1 // loop_exit
      _
    %5569 = vsyncpa [#allocation4], 1
    %s5570 = scalar_lea.sflag [#allocation4], 1
    %5571 = vsyncpa %s5570, 1
    %5572 = vsyncpa [#allocation7], 1
    %s5573 = scalar_lea.sflag [#allocation7], 1
    %5574 = vsyncpa %s5573, 1
    %5575 = vsyncpa [#allocation10], 1
    %5576 = vsyncpa [#allocation13], 1
    %5577 = vsyncpa [#allocation5], 1
    %s5578 = scalar_lea.sflag [#allocation5], 1
    %5579 = vsyncpa %s5578, 1
    %5580 = vsyncpa [#allocation17], 1
    %s5581 = scalar_lea.sflag [#allocation17], 1
    %5582 = vsyncpa %s5581, 1

</llo_original>
